<compile_context>
chip_gen: v5e
topology: v5e:2x2
jax: 0.10.0
libtpu: 0.0.40
codegen_flags: <defaults>
</compile_context>

<pallas_src>
import functools

import jax
import jax.numpy as jnp
from jax.experimental import pallas as pl
from jax.experimental.pallas import tpu as pltpu

EPS = 1e-5


# ---------------------------------------------------------------------------
# In-kernel helpers
# ---------------------------------------------------------------------------
def _col_masks(p_rows, width, c):
    """Width-border keep-masks for rows flattened as h*width + w.
    keep_l[p] is True where the 'value at w-1' is inside the image row,
    keep_r[p] is True where the 'value at w+1' is inside the image row."""
    col = jax.lax.broadcasted_iota(
        jnp.int32, (p_rows // width, width, c), 1).reshape(p_rows, c)
    return col != 0, col != (width - 1)


def _conv3x3(act, w_ref, keep_l, keep_r, th_out, width):
    """act: ((th_out+2)*width, C) fp32 activation with one halo image-row on each
    side (rows flattened as h*width + w).  w_ref: Ref of shape (3, 3*C, C) bf16,
    dy-major, rows ordered (dx, cin).  Returns the 'same' 3x3 conv of the th_out
    interior image rows, (th_out*width, C) fp32, as 3 accumulating MXU matmuls
    over row-shifted windows of one (rows, 3*C) bf16 slab."""
    p, c = act.shape
    left = jnp.where(keep_l[:p], pltpu.roll(act, shift=1, axis=0), 0.0)       # w-1
    right = jnp.where(keep_r[:p], pltpu.roll(act, shift=p - 1, axis=0), 0.0)  # w+1
    slab = jnp.concatenate(
        [left.astype(jnp.bfloat16), act.astype(jnp.bfloat16),
         right.astype(jnp.bfloat16)], axis=1)                                 # (p, 3C)
    out = jnp.zeros((th_out * width, c), jnp.float32)
    for dy in range(3):
        out = out + jnp.dot(slab[dy * width:(dy + th_out) * width, :], w_ref[dy],
                            preferred_element_type=jnp.float32)
    return out


# ---------------------------------------------------------------------------
# Pass 1: conv1 (+1 halo row each side) -> y (bf16) + per-tile BN partial sums
# ---------------------------------------------------------------------------
def _erb_pass1_kernel(x_ref, xtop_ref, xbot_ref, w1_ref, b1_ref, w2_ref,
                      y_ref, stat_ref, *, th, width, cin, cout):
    r = pl.program_id(1)
    top_valid = (r > 0).astype(jnp.float32)
    bot_valid = (r < pl.num_programs(1) - 1).astype(jnp.float32)

    keep_l, keep_r = _col_masks((th + 2) * width, width, cout)

    w1 = w1_ref[...]                                  # (cin, cout) bf16
    b1 = b1_ref[...]                                  # (1, cout)  f32

    def conv1(v):                                     # v: (rows, cin) bf16
        return jnp.dot(v, w1, preferred_element_type=jnp.float32) + b1

    y_mid = conv1(x_ref[...].reshape(th * width, cin))              # (th*W, cout)
    y_top = conv1(xtop_ref[...].reshape(width, cin)) * top_valid    # zero at top border
    y_bot = conv1(xbot_ref[...].reshape(width, cin)) * bot_valid    # zero at bottom border
    y_pad = jnp.concatenate([y_top, y_mid, y_bot], axis=0)          # ((th+2)*W, cout) f32

    y_ref[...] = y_mid.astype(jnp.bfloat16).reshape(1, th, width, cout)

    # conv2: bias b2 intentionally omitted -- exactly cancelled by BN mean subtraction.
    t = _conv3x3(y_pad, w2_ref, keep_l, keep_r, th, width)          # (th*W, cout) f32

    stat = jnp.concatenate([jnp.sum(t, axis=0, keepdims=True),
                            jnp.sum(t * t, axis=0, keepdims=True)], axis=0)
    stat_ref[...] = stat.reshape(1, 1, 2, cout)


# ---------------------------------------------------------------------------
# Pass 2: recompute conv2 + folded BN + ReLU + conv3 + residual (+ ReLU)
# ---------------------------------------------------------------------------
def _erb_pass2_kernel(y_ref, ytop_ref, ybot_ref, scale_ref, shift_ref,
                      w2_ref, w3_ref, b3_ref, out_ref, *,
                      th, width, cout, apply_relu):
    r = pl.program_id(1)
    top_valid = (r > 0).astype(jnp.float32)
    bot_valid = (r < pl.num_programs(1) - 1).astype(jnp.float32)

    keep_l, keep_r = _col_masks((th + 4) * width, width, cout)

    y_mid = y_ref[...].reshape(th * width, cout).astype(jnp.float32)
    y_top = ytop_ref[...].reshape(2 * width, cout).astype(jnp.float32)
    y_bot = ybot_ref[...].reshape(2 * width, cout).astype(jnp.float32)
    y_pad = jnp.concatenate([y_top, y_mid, y_bot], axis=0)          # ((th+4)*W, cout)

    # conv2 recomputed for the tile plus one halo image-row on each side.
    t_pad = _conv3x3(y_pad, w2_ref, keep_l, keep_r, th + 2, width)  # ((th+2)*W, cout)

    # Folded training-mode BatchNorm + ReLU.
    act = jnp.maximum(t_pad * scale_ref[...] + shift_ref[...], 0.0)

    # conv3 zero-pads its input: zero the halo rows that fall outside the image.
    n_img_rows = th + 2
    row = jax.lax.broadcasted_iota(
        jnp.int32, (n_img_rows, width, cout), 0).reshape(n_img_rows * width, cout)
    rv = (jnp.where(row == 0, top_valid, 1.0)
          * jnp.where(row == n_img_rows - 1, bot_valid, 1.0))
    act = act * rv

    res = _conv3x3(act, w3_ref, keep_l, keep_r, th, width) + b3_ref[...]
    out = y_mid + res
    if apply_relu:
        out = jnp.maximum(out, 0.0)
    out_ref[...] = out.reshape(1, th, width, cout)


# ---------------------------------------------------------------------------
# Wrapper-side helpers
# ---------------------------------------------------------------------------
def _pick_row_tile(h, row_tile):
    """Largest divisor of h that is <= row_tile (>= 2 whenever possible)."""
    row_tile = max(int(row_tile), 1)
    th = 1
    for d in range(2, min(h, row_tile) + 1):
        if h % d == 0:
            th = d
    if th == 1 and h > 1:
        d = 2
        while h % d:
            d += 1
        th = d                     # smallest divisor >= 2 (may be h itself)
    return th


def _one_row_halos(a, th, r):
    """(N,H,W,C) -> top, bot of shape (N, R, W, C): single row just above / below
    each row-tile, zero rows at the image borders."""
    n, _, w, c = a.shape
    zeros = jnp.zeros((n, 1, w, c), a.dtype)
    if r == 1:
        return zeros, zeros
    above = a[:, th - 1::th][:, :r - 1]         # last row of tiles 0..R-2
    below = a[:, th::th]                        # first row of tiles 1..R-1
    top = jnp.concatenate([zeros, above], axis=1)
    bot = jnp.concatenate([below, zeros], axis=1)
    return top, bot


def _two_row_halos(a, th, r):
    """(N,H,W,C) with H=r*th -> top2, bot2 of shape (N, 2*R, W, C): the two rows
    just above / below each row-tile, zero rows at the image borders."""
    n, _, w, c = a.shape
    if r == 1:
        z = jnp.zeros((n, 2, w, c), a.dtype)
        return z, z
    a_r = a.reshape(n, r, th, w, c)
    zeros = jnp.zeros((n, 1, 2, w, c), a.dtype)
    top = jnp.concatenate([zeros, a_r[:, :r - 1, th - 2:th]], axis=1)
    bot = jnp.concatenate([a_r[:, 1:, 0:2], zeros], axis=1)
    return top.reshape(n, 2 * r, w, c), bot.reshape(n, 2 * r, w, c)


# ---------------------------------------------------------------------------
# Forward
# ---------------------------------------------------------------------------
@functools.partial(jax.jit, static_argnames=("relu", "row_tile"))
def erb_forward_nhwc(x, params, relu=True, row_tile=32):
    """ERB forward, NHWC in / NHWC out (preferred: no layout transposes)."""
    n, h, w, cin = x.shape
    cout = params["w1"].shape[1]
    x = x.astype(jnp.bfloat16)                       # bf16 in HBM; fp32 accumulation
    th = _pick_row_tile(h, row_tile)
    r = h // th
    grid = (n, r)

    cparams = pltpu.CompilerParams(
        dimension_semantics=("parallel", "parallel"),
        vmem_limit_bytes=48 * 1024 * 1024)           # stays under v7x's 64 MiB VMEM

    # MXU operands in bf16; 3x3 weights as (3, 3*Cout, Cout): dy-major, (dx, cin) rows.
    w1_b = params["w1"].astype(jnp.bfloat16)
    w2_b = params["w2"].reshape(3, 3 * cout, cout).astype(jnp.bfloat16)
    w3_b = params["w3"].reshape(3, 3 * cout, cout).astype(jnp.bfloat16)
    b1 = params["b1"].reshape(1, cout).astype(jnp.float32)
    b3 = params["b3"].reshape(1, cout).astype(jnp.float32)

    x_top, x_bot = _one_row_halos(x, th, r)

    x_tile = pl.BlockSpec((1, th, w, cin), lambda i, j: (i, j, 0, 0))
    x_halo = pl.BlockSpec((1, 1, w, cin), lambda i, j: (i, j, 0, 0))
    y_tile = pl.BlockSpec((1, th, w, cout), lambda i, j: (i, j, 0, 0))
    y_halo = pl.BlockSpec((1, 2, w, cout), lambda i, j: (i, j, 0, 0))
    stat_sp = pl.BlockSpec((1, 1, 2, cout), lambda i, j: (i, j, 0, 0))
    w1_sp = pl.BlockSpec((cin, cout), lambda i, j: (0, 0))
    vec_sp = pl.BlockSpec((1, cout), lambda i, j: (0, 0))
    w3x3_sp = pl.BlockSpec((3, 3 * cout, cout), lambda i, j: (0, 0, 0))

    pix = n * h * w
    pad_rows = n * r * (th + 2) * w
    cost1 = pl.CostEstimate(
        flops=2 * pad_rows * cin * cout + 2 * pix * 9 * cout * cout,
        transcendentals=0,
        bytes_accessed=2 * pix * cin + 2 * pix * cout + 8 * n * r * cout)

    y, stats = pl.pallas_call(
        functools.partial(_erb_pass1_kernel, th=th, width=w, cin=cin, cout=cout),
        grid=grid,
        in_specs=[x_tile, x_halo, x_halo, w1_sp, vec_sp, w3x3_sp],
        out_specs=(y_tile, stat_sp),
        out_shape=(
            jax.ShapeDtypeStruct((n, h, w, cout), jnp.bfloat16),   # y = conv1(x)
            jax.ShapeDtypeStruct((n, r, 2, cout), jnp.float32),    # [sum; sum of squares]
        ),
        compiler_params=cparams,
        cost_estimate=cost1,
    )(x, x_top, x_bot, w1_b, b1, w2_b)

    # BatchNorm training-mode batch statistics (biased variance) from the per-tile
    # partial sums; folded into a single per-channel scale/shift (b2 cancels).
    cnt = jnp.float32(pix)
    mean = jnp.sum(stats[:, :, 0, :], axis=(0, 1)) / cnt
    var = jnp.maximum(jnp.sum(stats[:, :, 1, :], axis=(0, 1)) / cnt - mean * mean, 0.0)
    invstd = jax.lax.rsqrt(var + EPS)
    gamma = params["gamma"].reshape(-1).astype(jnp.float32)
    beta = params["beta"].reshape(-1).astype(jnp.float32)
    scale = (gamma * invstd).reshape(1, cout)
    shift = (beta - mean * gamma * invstd).reshape(1, cout)

    y_top2, y_bot2 = _two_row_halos(y, th, r)

    rec_rows = n * r * (th + 2) * w
    cost2 = pl.CostEstimate(
        flops=2 * (rec_rows + pix) * 9 * cout * cout,
        transcendentals=0,
        bytes_accessed=2 * pix * cout + 4 * pix * cout)

    out = pl.pallas_call(
        functools.partial(_erb_pass2_kernel, th=th, width=w, cout=cout, apply_relu=relu),
        grid=grid,
        in_specs=[y_tile, y_halo, y_halo, vec_sp, vec_sp, w3x3_sp, w3x3_sp, vec_sp],
        out_specs=pl.BlockSpec((1, th, w, cout), lambda i, j: (i, j, 0, 0)),
        out_shape=jax.ShapeDtypeStruct((n, h, w, cout), jnp.float32),
        compiler_params=cparams,
        cost_estimate=cost2,
    )(y, y_top2, y_bot2, scale, shift, w2_b, w3_b, b3)
    return out


@functools.partial(jax.jit, static_argnames=("relu", "row_tile"))
def erb_forward(x_nchw, params, relu=True, row_tile=32):
    """NCHW compatibility wrapper (PyTorch layout).  Prefer erb_forward_nhwc to
    avoid the two boundary transposes."""
    x = jnp.transpose(x_nchw, (0, 2, 3, 1))
    out = erb_forward_nhwc(x, params, relu=relu, row_tile=row_tile)
    return jnp.transpose(out, (0, 3, 1, 2))


# ---------------------------------------------------------------------------
# Parameters + fp32 reference
# ---------------------------------------------------------------------------
def make_erb_params(key, in_channels, out_channels):
    """Deterministic synthetic parameters (shapes follow ERB.__init__)."""
    ks = jax.random.split(key, 8)

    def init(k, shape, fan_in):
        return jax.random.normal(k, shape, jnp.float32) / jnp.sqrt(float(fan_in))

    return dict(
        # conv1: PyTorch weight (Cout, Cin, 1, 1) stored here as (Cin, Cout)
        w1=init(ks[0], (in_channels, out_channels), in_channels),
        b1=init(ks[1], (1, out_channels), in_channels),
        # conv2 / conv3: PyTorch (Cout, Cout, 3, 3) stored as HWIO (3, 3, Cout, Cout)
        w2=init(ks[2], (3, 3, out_channels, out_channels), 9 * out_channels),
        b2=init(ks[3], (1, out_channels), 9 * out_channels),   # cancelled by BN; kept for parity
        gamma=1.0 + 0.1 * jax.random.normal(ks[4], (1, out_channels), jnp.float32),
        beta=0.1 * jax.random.normal(ks[5], (1, out_channels), jnp.float32),
        w3=init(ks[6], (3, 3, out_channels, out_channels), 9 * out_channels),
        b3=init(ks[7], (1, out_channels), 9 * out_channels),
    )


def erb_reference(x_nchw, p, relu=True):
    """Plain-JAX fp32 reference of the same forward (includes b2)."""
    x = jnp.transpose(x_nchw, (0, 2, 3, 1)).astype(jnp.float32)
    cin, cout = p["w1"].shape
    dn = ("NHWC", "HWIO", "NHWC")
    y = jax.lax.conv_general_dilated(
        x, p["w1"].reshape(1, 1, cin, cout), (1, 1), "VALID",
        dimension_numbers=dn) + p["b1"]
    res = jax.lax.conv_general_dilated(
        y, p["w2"], (1, 1), "SAME", dimension_numbers=dn) + p["b2"]
    mean = jnp.mean(res, axis=(0, 1, 2), keepdims=True)
    var = jnp.mean((res - mean) ** 2, axis=(0, 1, 2), keepdims=True)
    res = (res - mean) * jax.lax.rsqrt(var + EPS) * p["gamma"] + p["beta"]
    res = jnp.maximum(res, 0.0)
    res = jax.lax.conv_general_dilated(
        res, p["w3"], (1, 1), "SAME", dimension_numbers=dn) + p["b3"]
    out = y + res
    if relu:
        out = jnp.maximum(out, 0.0)
    return jnp.transpose(out, (0, 3, 1, 2))


if __name__ == "__main__":
    key = jax.random.PRNGKey(0)
    k_x, k_p = jax.random.split(key)

    in_channels, out_channels = 4, 16
    x = jax.random.normal(k_x, (2, in_channels, 16, 16), jnp.float32)  # NCHW
    params = make_erb_params(k_p, in_channels, out_channels)

    ref = erb_reference(x, params, relu=True)
    ref_nr = erb_reference(x, params, relu=False)

    # Single row-tile per image (R=1).
    out = jax.block_until_ready(erb_forward(x, params, relu=True))
    assert out.shape == (2, out_channels, 16, 16)
    if not jnp.allclose(out, ref, atol=5e-2, rtol=5e-2):
        err = float(jnp.max(jnp.abs(out - ref)))
        raise AssertionError(f"Pallas ERB mismatch vs JAX reference (max|err|={err})")

    # Multi-tile grid (R=4) exercises the 1-row / 2-row halo paths.
    out_t = jax.block_until_ready(erb_forward(x, params, relu=True, row_tile=4))
    if not jnp.allclose(out_t, ref, atol=5e-2, rtol=5e-2):
        err = float(jnp.max(jnp.abs(out_t - ref)))
        raise AssertionError(f"Pallas ERB (tiled) mismatch vs JAX reference (max|err|={err})")

    # relu=False branch.
    out_nr = jax.block_until_ready(erb_forward(x, params, relu=False))
    if not jnp.allclose(out_nr, ref_nr, atol=5e-2, rtol=5e-2):
        raise AssertionError("Pallas ERB (relu=False) mismatch vs JAX reference")

    print("KERNEL_OK")
</pallas_src>

<mosaic_0001>
module attributes {stable_mosaic.version = 11 : i64} {
  func.func @_erb_pass1_kernel(%arg0: i32, %arg1: i32, %arg2: memref<1x16x16x4xbf16, #tpu.memory_space<vmem>>, %arg3: memref<1x1x16x4xbf16, #tpu.memory_space<vmem>>, %arg4: memref<1x1x16x4xbf16, #tpu.memory_space<vmem>>, %arg5: memref<4x16xbf16, #tpu.memory_space<vmem>>, %arg6: memref<1x16xf32, #tpu.memory_space<vmem>>, %arg7: memref<3x48x16xbf16, #tpu.memory_space<vmem>>, %arg8: memref<1x16x16x16xbf16, #tpu.memory_space<vmem>>, %arg9: memref<1x1x2x16xf32, #tpu.memory_space<vmem>>) attributes {dimension_semantics = [#tpu.dimension_semantics<parallel>, #tpu.dimension_semantics<parallel>], iteration_bounds = array<i64: 2, 1>, scalar_prefetch = 0 : i64, scratch_operands = 0 : i64, tpu.core_type = #tpu.core_type<tc>, window_params = [{transform_indices = @transform_0, window_bounds = array<i64: 1, 16, 16, 4>}, {transform_indices = @transform_1, window_bounds = array<i64: 1, 1, 16, 4>}, {transform_indices = @transform_2, window_bounds = array<i64: 1, 1, 16, 4>}, {pipeline_mode = #tpu.pipeline_mode<synchronous>, transform_indices = @transform_3, window_bounds = array<i64: 4, 16>}, {pipeline_mode = #tpu.pipeline_mode<synchronous>, transform_indices = @transform_4, window_bounds = array<i64: 1, 16>}, {pipeline_mode = #tpu.pipeline_mode<synchronous>, transform_indices = @transform_5, window_bounds = array<i64: 3, 48, 16>}, {transform_indices = @transform_6, window_bounds = array<i64: 1, 16, 16, 16>}, {transform_indices = @transform_7, window_bounds = array<i64: 1, 1, 2, 16>}]} {
    %c0_i32 = arith.constant 0 : i32
    %0 = arith.cmpi sgt, %arg1, %c0_i32 : i32
    %1 = arith.extui %0 : i1 to i32
    %2 = arith.sitofp %1 : i32 to f32
    %c0_i32_0 = arith.constant 0 : i32
    %3 = arith.cmpi slt, %arg1, %c0_i32_0 : i32
    %4 = arith.extui %3 : i1 to i32
    %5 = arith.sitofp %4 : i32 to f32
    %6 = tpu.iota {dimensions = array<i32: 1>} : vector<18x16x16xi32>
    %7 = vector.shape_cast %6 : vector<18x16x16xi32> to vector<288x16xi32>
    %c0_i32_1 = arith.constant 0 : i32
    %8 = vector.broadcast %c0_i32_1 : i32 to vector<288x16xi32>
    %9 = arith.cmpi ne, %7, %8 : vector<288x16xi32>
    %c15_i32 = arith.constant 15 : i32
    %10 = vector.broadcast %c15_i32 : i32 to vector<288x16xi32>
    %11 = arith.cmpi ne, %7, %10 : vector<288x16xi32>
    %c0 = arith.constant 0 : index
    %c0_2 = arith.constant 0 : index
    %12 = vector.load %arg5[%c0, %c0_2] : memref<4x16xbf16, #tpu.memory_space<vmem>>, vector<4x16xbf16>
    %c0_3 = arith.constant 0 : index
    %c0_4 = arith.constant 0 : index
    %13 = vector.load %arg6[%c0_3, %c0_4] : memref<1x16xf32, #tpu.memory_space<vmem>>, vector<1x16xf32>
    %c0_5 = arith.constant 0 : index
    %c0_6 = arith.constant 0 : index
    %c0_7 = arith.constant 0 : index
    %c0_8 = arith.constant 0 : index
    %14 = vector.load %arg2[%c0_5, %c0_6, %c0_7, %c0_8] : memref<1x16x16x4xbf16, #tpu.memory_space<vmem>>, vector<1x16x16x4xbf16>
    %15 = vector.shape_cast %14 : vector<1x16x16x4xbf16> to vector<256x4xbf16>
    %cst = arith.constant dense<0.000000e+00> : vector<256x16xf32>
    %16 = tpu.matmul %15, %12, %cst {dimension_numbers = #tpu.dot_dimension_numbers<[1], [0], [0], [1], [0, 0, 1, 1], [], []>} : vector<256x4xbf16>, vector<4x16xbf16>, vector<256x16xf32> -> vector<256x16xf32>
    %17 = vector.broadcast %13 : vector<1x16xf32> to vector<256x16xf32>
    %18 = arith.addf %16, %17 : vector<256x16xf32>
    %c0_9 = arith.constant 0 : index
    %c0_10 = arith.constant 0 : index
    %c0_11 = arith.constant 0 : index
    %c0_12 = arith.constant 0 : index
    %19 = vector.load %arg3[%c0_9, %c0_10, %c0_11, %c0_12] : memref<1x1x16x4xbf16, #tpu.memory_space<vmem>>, vector<1x1x16x4xbf16>
    %20 = vector.shape_cast %19 : vector<1x1x16x4xbf16> to vector<16x4xbf16>
    %cst_13 = arith.constant dense<0.000000e+00> : vector<16x16xf32>
    %21 = tpu.matmul %20, %12, %cst_13 {dimension_numbers = #tpu.dot_dimension_numbers<[1], [0], [0], [1], [0, 0, 1, 1], [], []>} : vector<16x4xbf16>, vector<4x16xbf16>, vector<16x16xf32> -> vector<16x16xf32>
    %22 = vector.broadcast %13 : vector<1x16xf32> to vector<16x16xf32>
    %23 = arith.addf %21, %22 : vector<16x16xf32>
    %24 = vector.broadcast %2 : f32 to vector<16x16xf32>
    %25 = arith.mulf %23, %24 : vector<16x16xf32>
    %c0_14 = arith.constant 0 : index
    %c0_15 = arith.constant 0 : index
    %c0_16 = arith.constant 0 : index
    %c0_17 = arith.constant 0 : index
    %26 = vector.load %arg4[%c0_14, %c0_15, %c0_16, %c0_17] : memref<1x1x16x4xbf16, #tpu.memory_space<vmem>>, vector<1x1x16x4xbf16>
    %27 = vector.shape_cast %26 : vector<1x1x16x4xbf16> to vector<16x4xbf16>
    %cst_18 = arith.constant dense<0.000000e+00> : vector<16x16xf32>
    %28 = tpu.matmul %27, %12, %cst_18 {dimension_numbers = #tpu.dot_dimension_numbers<[1], [0], [0], [1], [0, 0, 1, 1], [], []>} : vector<16x4xbf16>, vector<4x16xbf16>, vector<16x16xf32> -> vector<16x16xf32>
    %29 = vector.broadcast %13 : vector<1x16xf32> to vector<16x16xf32>
    %30 = arith.addf %28, %29 : vector<16x16xf32>
    %31 = vector.broadcast %5 : f32 to vector<16x16xf32>
    %32 = arith.mulf %30, %31 : vector<16x16xf32>
    %33 = tpu.concatenate %25, %18, %32 in 0 : vector<16x16xf32>, vector<256x16xf32>, vector<16x16xf32> -> vector<288x16xf32>
    %34 = arith.truncf %18 : vector<256x16xf32> to vector<256x16xbf16>
    %35 = vector.shape_cast %34 : vector<256x16xbf16> to vector<1x16x16x16xbf16>
    %c0_19 = arith.constant 0 : index
    %c0_20 = arith.constant 0 : index
    %c0_21 = arith.constant 0 : index
    %c0_22 = arith.constant 0 : index
    %36 = vector.load %arg8[%c0_19, %c0_20, %c0_21, %c0_22] : memref<1x16x16x16xbf16, #tpu.memory_space<vmem>>, vector<1x16x16x16xbf16>
    tpu.vector_store %arg8[%c0_19, %c0_20, %c0_21, %c0_22], %35 {strides = array<i32>} : memref<1x16x16x16xbf16, #tpu.memory_space<vmem>>, vector<1x16x16x16xbf16>,
    %c1_i32 = arith.constant 1 : i32
    %37 = tpu.dynamic_rotate %33 by %c1_i32 dim 0 : vector<288x16xf32>, i32 -> vector<288x16xf32>
    %cst_23 = arith.constant 0.000000e+00 : f32
    %38 = vector.broadcast %cst_23 : f32 to vector<288x16xf32>
    %39 = arith.select %9, %37, %38 : vector<288x16xi1>, vector<288x16xf32>
    %c287_i32 = arith.constant 287 : i32
    %40 = tpu.dynamic_rotate %33 by %c287_i32 dim 0 : vector<288x16xf32>, i32 -> vector<288x16xf32>
    %cst_24 = arith.constant 0.000000e+00 : f32
    %41 = vector.broadcast %cst_24 : f32 to vector<288x16xf32>
    %42 = arith.select %11, %40, %41 : vector<288x16xi1>, vector<288x16xf32>
    %43 = arith.truncf %39 : vector<288x16xf32> to vector<288x16xbf16>
    %44 = arith.truncf %33 : vector<288x16xf32> to vector<288x16xbf16>
    %45 = arith.truncf %42 : vector<288x16xf32> to vector<288x16xbf16>
    %46 = tpu.concatenate %43, %44, %45 in 1 : vector<288x16xbf16>, vector<288x16xbf16>, vector<288x16xbf16> -> vector<288x48xbf16>
    %cst_25 = arith.constant 0.000000e+00 : f32
    %47 = vector.broadcast %cst_25 : f32 to vector<256x16xf32>
    %48 = vector.extract_strided_slice %46 {offsets = [0, 0], sizes = [256, 48], strides = [1, 1]} : vector<288x48xbf16> to vector<256x48xbf16>
    %c0_26 = arith.constant 0 : index
    %c0_27 = arith.constant 0 : index
    %c0_28 = arith.constant 0 : index
    %49 = vector.load %arg7[%c0_26, %c0_27, %c0_28] : memref<3x48x16xbf16, #tpu.memory_space<vmem>>, vector<1x48x16xbf16>
    %50 = vector.shape_cast %49 : vector<1x48x16xbf16> to vector<48x16xbf16>
    %cst_29 = arith.constant dense<0.000000e+00> : vector<256x16xf32>
    %51 = tpu.matmul %48, %50, %cst_29 {dimension_numbers = #tpu.dot_dimension_numbers<[1], [0], [0], [1], [0, 0, 1, 1], [], []>} : vector<256x48xbf16>, vector<48x16xbf16>, vector<256x16xf32> -> vector<256x16xf32>
    %52 = arith.addf %47, %51 : vector<256x16xf32>
    %53 = vector.extract_strided_slice %46 {offsets = [16, 0], sizes = [256, 48], strides = [1, 1]} : vector<288x48xbf16> to vector<256x48xbf16>
    %c1 = arith.constant 1 : index
    %c0_30 = arith.constant 0 : index
    %c0_31 = arith.constant 0 : index
    %54 = vector.load %arg7[%c1, %c0_30, %c0_31] : memref<3x48x16xbf16, #tpu.memory_space<vmem>>, vector<1x48x16xbf16>
    %55 = vector.shape_cast %54 : vector<1x48x16xbf16> to vector<48x16xbf16>
    %cst_32 = arith.constant dense<0.000000e+00> : vector<256x16xf32>
    %56 = tpu.matmul %53, %55, %cst_32 {dimension_numbers = #tpu.dot_dimension_numbers<[1], [0], [0], [1], [0, 0, 1, 1], [], []>} : vector<256x48xbf16>, vector<48x16xbf16>, vector<256x16xf32> -> vector<256x16xf32>
    %57 = arith.addf %52, %56 : vector<256x16xf32>
    %58 = vector.extract_strided_slice %46 {offsets = [32, 0], sizes = [256, 48], strides = [1, 1]} : vector<288x48xbf16> to vector<256x48xbf16>
    %c2 = arith.constant 2 : index
    %c0_33 = arith.constant 0 : index
    %c0_34 = arith.constant 0 : index
    %59 = vector.load %arg7[%c2, %c0_33, %c0_34] : memref<3x48x16xbf16, #tpu.memory_space<vmem>>, vector<1x48x16xbf16>
    %60 = vector.shape_cast %59 : vector<1x48x16xbf16> to vector<48x16xbf16>
    %cst_35 = arith.constant dense<0.000000e+00> : vector<256x16xf32>
    %61 = tpu.matmul %58, %60, %cst_35 {dimension_numbers = #tpu.dot_dimension_numbers<[1], [0], [0], [1], [0, 0, 1, 1], [], []>} : vector<256x48xbf16>, vector<48x16xbf16>, vector<256x16xf32> -> vector<256x16xf32>
    %62 = arith.addf %57, %61 : vector<256x16xf32>
    %cst_36 = arith.constant dense<0.000000e+00> : vector<16xf32>
    %63 = vector.multi_reduction <add>, %62, %cst_36 [0] : vector<256x16xf32> to vector<16xf32>
    %64 = vector.shape_cast %63 : vector<16xf32> to vector<1x16xf32>
    %65 = arith.mulf %62, %62 : vector<256x16xf32>
    %cst_37 = arith.constant dense<0.000000e+00> : vector<16xf32>
    %66 = vector.multi_reduction <add>, %65, %cst_37 [0] : vector<256x16xf32> to vector<16xf32>
    %67 = vector.shape_cast %66 : vector<16xf32> to vector<1x16xf32>
    %68 = tpu.concatenate %64, %67 in 0 : vector<1x16xf32>, vector<1x16xf32> -> vector<2x16xf32>
    %69 = vector.shape_cast %68 : vector<2x16xf32> to vector<1x1x2x16xf32>
    %c0_38 = arith.constant 0 : index
    %c0_39 = arith.constant 0 : index
    %c0_40 = arith.constant 0 : index
    %c0_41 = arith.constant 0 : index
    %70 = vector.load %arg9[%c0_38, %c0_39, %c0_40, %c0_41] : memref<1x1x2x16xf32, #tpu.memory_space<vmem>>, vector<1x1x2x16xf32>
    tpu.vector_store %arg9[%c0_38, %c0_39, %c0_40, %c0_41], %69 {strides = array<i32>} : memref<1x1x2x16xf32, #tpu.memory_space<vmem>>, vector<1x1x2x16xf32>,
    return
  }
  func.func @transform_0(%arg0: i32, %arg1: i32) -> (i32, i32, i32, i32) {
    %c0_i32 = arith.constant 0 : i32
    %c0_i32_0 = arith.constant 0 : i32
    %c0_i32_1 = arith.constant 0 : i32
    return %arg0, %arg1, %c0_i32, %c0_i32_0 : i32, i32, i32, i32
  }
  func.func @transform_1(%arg0: i32, %arg1: i32) -> (i32, i32, i32, i32) {
    %c0_i32 = arith.constant 0 : i32
    %c0_i32_0 = arith.constant 0 : i32
    %c0_i32_1 = arith.constant 0 : i32
    return %arg0, %arg1, %c0_i32, %c0_i32_0 : i32, i32, i32, i32
  }
  func.func @transform_2(%arg0: i32, %arg1: i32) -> (i32, i32, i32, i32) {
    %c0_i32 = arith.constant 0 : i32
    %c0_i32_0 = arith.constant 0 : i32
    %c0_i32_1 = arith.constant 0 : i32
    return %arg0, %arg1, %c0_i32, %c0_i32_0 : i32, i32, i32, i32
  }
  func.func @transform_3(%arg0: i32, %arg1: i32) -> (i32, i32) {
    %c0_i32 = arith.constant 0 : i32
    %c0_i32_0 = arith.constant 0 : i32
    %c0_i32_1 = arith.constant 0 : i32
    return %c0_i32, %c0_i32_0 : i32, i32
  }
  func.func @transform_4(%arg0: i32, %arg1: i32) -> (i32, i32) {
    %c0_i32 = arith.constant 0 : i32
    %c0_i32_0 = arith.constant 0 : i32
    %c0_i32_1 = arith.constant 0 : i32
    return %c0_i32, %c0_i32_0 : i32, i32
  }
  func.func @transform_5(%arg0: i32, %arg1: i32) -> (i32, i32, i32) {
    %c0_i32 = arith.constant 0 : i32
    %c0_i32_0 = arith.constant 0 : i32
    %c0_i32_1 = arith.constant 0 : i32
    %c0_i32_2 = arith.constant 0 : i32
    return %c0_i32, %c0_i32_0, %c0_i32_1 : i32, i32, i32
  }
  func.func @transform_6(%arg0: i32, %arg1: i32) -> (i32, i32, i32, i32) {
    %c0_i32 = arith.constant 0 : i32
    %c0_i32_0 = arith.constant 0 : i32
    %c0_i32_1 = arith.constant 0 : i32
    return %arg0, %arg1, %c0_i32, %c0_i32_0 : i32, i32, i32, i32
  }
  func.func @transform_7(%arg0: i32, %arg1: i32) -> (i32, i32, i32, i32) {
    %c0_i32 = arith.constant 0 : i32
    %c0_i32_0 = arith.constant 0 : i32
    %c0_i32_1 = arith.constant 0 : i32
    return %arg0, %arg1, %c0_i32, %c0_i32_0 : i32, i32, i32, i32
  }
}

module attributes {stable_mosaic.version = 11 : i64} {
  func.func @_erb_pass2_kernel(%arg0: i32, %arg1: i32, %arg2: memref<1x16x16x16xbf16, #tpu.memory_space<vmem>>, %arg3: memref<1x2x16x16xbf16, #tpu.memory_space<vmem>>, %arg4: memref<1x2x16x16xbf16, #tpu.memory_space<vmem>>, %arg5: memref<1x16xf32, #tpu.memory_space<vmem>>, %arg6: memref<1x16xf32, #tpu.memory_space<vmem>>, %arg7: memref<3x48x16xbf16, #tpu.memory_space<vmem>>, %arg8: memref<3x48x16xbf16, #tpu.memory_space<vmem>>, %arg9: memref<1x16xf32, #tpu.memory_space<vmem>>, %arg10: memref<1x16x16x16xf32, #tpu.memory_space<vmem>>) attributes {dimension_semantics = [#tpu.dimension_semantics<parallel>, #tpu.dimension_semantics<parallel>], iteration_bounds = array<i64: 2, 1>, scalar_prefetch = 0 : i64, scratch_operands = 0 : i64, tpu.core_type = #tpu.core_type<tc>, window_params = [{transform_indices = @transform_0, window_bounds = array<i64: 1, 16, 16, 16>}, {transform_indices = @transform_1, window_bounds = array<i64: 1, 2, 16, 16>}, {transform_indices = @transform_2, window_bounds = array<i64: 1, 2, 16, 16>}, {pipeline_mode = #tpu.pipeline_mode<synchronous>, transform_indices = @transform_3, window_bounds = array<i64: 1, 16>}, {pipeline_mode = #tpu.pipeline_mode<synchronous>, transform_indices = @transform_4, window_bounds = array<i64: 1, 16>}, {pipeline_mode = #tpu.pipeline_mode<synchronous>, transform_indices = @transform_5, window_bounds = array<i64: 3, 48, 16>}, {pipeline_mode = #tpu.pipeline_mode<synchronous>, transform_indices = @transform_6, window_bounds = array<i64: 3, 48, 16>}, {pipeline_mode = #tpu.pipeline_mode<synchronous>, transform_indices = @transform_7, window_bounds = array<i64: 1, 16>}, {transform_indices = @transform_8, window_bounds = array<i64: 1, 16, 16, 16>}]} {
    %c0_i32 = arith.constant 0 : i32
    %0 = arith.cmpi sgt, %arg1, %c0_i32 : i32
    %1 = arith.extui %0 : i1 to i32
    %2 = arith.sitofp %1 : i32 to f32
    %c0_i32_0 = arith.constant 0 : i32
    %3 = arith.cmpi slt, %arg1, %c0_i32_0 : i32
    %4 = arith.extui %3 : i1 to i32
    %5 = arith.sitofp %4 : i32 to f32
    %6 = tpu.iota {dimensions = array<i32: 1>} : vector<20x16x16xi32>
    %7 = vector.shape_cast %6 : vector<20x16x16xi32> to vector<320x16xi32>
    %c0_i32_1 = arith.constant 0 : i32
    %8 = vector.broadcast %c0_i32_1 : i32 to vector<320x16xi32>
    %9 = arith.cmpi ne, %7, %8 : vector<320x16xi32>
    %c15_i32 = arith.constant 15 : i32
    %10 = vector.broadcast %c15_i32 : i32 to vector<320x16xi32>
    %11 = arith.cmpi ne, %7, %10 : vector<320x16xi32>
    %c0 = arith.constant 0 : index
    %c0_2 = arith.constant 0 : index
    %c0_3 = arith.constant 0 : index
    %c0_4 = arith.constant 0 : index
    %12 = vector.load %arg2[%c0, %c0_2, %c0_3, %c0_4] : memref<1x16x16x16xbf16, #tpu.memory_space<vmem>>, vector<1x16x16x16xbf16>
    %13 = vector.shape_cast %12 : vector<1x16x16x16xbf16> to vector<256x16xbf16>
    %14 = arith.extf %13 : vector<256x16xbf16> to vector<256x16xf32>
    %c0_5 = arith.constant 0 : index
    %c0_6 = arith.constant 0 : index
    %c0_7 = arith.constant 0 : index
    %c0_8 = arith.constant 0 : index
    %15 = vector.load %arg3[%c0_5, %c0_6, %c0_7, %c0_8] : memref<1x2x16x16xbf16, #tpu.memory_space<vmem>>, vector<1x2x16x16xbf16>
    %16 = vector.shape_cast %15 : vector<1x2x16x16xbf16> to vector<32x16xbf16>
    %17 = arith.extf %16 : vector<32x16xbf16> to vector<32x16xf32>
    %c0_9 = arith.constant 0 : index
    %c0_10 = arith.constant 0 : index
    %c0_11 = arith.constant 0 : index
    %c0_12 = arith.constant 0 : index
    %18 = vector.load %arg4[%c0_9, %c0_10, %c0_11, %c0_12] : memref<1x2x16x16xbf16, #tpu.memory_space<vmem>>, vector<1x2x16x16xbf16>
    %19 = vector.shape_cast %18 : vector<1x2x16x16xbf16> to vector<32x16xbf16>
    %20 = arith.extf %19 : vector<32x16xbf16> to vector<32x16xf32>
    %21 = tpu.concatenate %17, %14, %20 in 0 : vector<32x16xf32>, vector<256x16xf32>, vector<32x16xf32> -> vector<320x16xf32>
    %c1_i32 = arith.constant 1 : i32
    %22 = tpu.dynamic_rotate %21 by %c1_i32 dim 0 : vector<320x16xf32>, i32 -> vector<320x16xf32>
    %cst = arith.constant 0.000000e+00 : f32
    %23 = vector.broadcast %cst : f32 to vector<320x16xf32>
    %24 = arith.select %9, %22, %23 : vector<320x16xi1>, vector<320x16xf32>
    %c319_i32 = arith.constant 319 : i32
    %25 = tpu.dynamic_rotate %21 by %c319_i32 dim 0 : vector<320x16xf32>, i32 -> vector<320x16xf32>
    %cst_13 = arith.constant 0.000000e+00 : f32
    %26 = vector.broadcast %cst_13 : f32 to vector<320x16xf32>
    %27 = arith.select %11, %25, %26 : vector<320x16xi1>, vector<320x16xf32>
    %28 = arith.truncf %24 : vector<320x16xf32> to vector<320x16xbf16>
    %29 = arith.truncf %21 : vector<320x16xf32> to vector<320x16xbf16>
    %30 = arith.truncf %27 : vector<320x16xf32> to vector<320x16xbf16>
    %31 = tpu.concatenate %28, %29, %30 in 1 : vector<320x16xbf16>, vector<320x16xbf16>, vector<320x16xbf16> -> vector<320x48xbf16>
    %cst_14 = arith.constant 0.000000e+00 : f32
    %32 = vector.broadcast %cst_14 : f32 to vector<288x16xf32>
    %33 = vector.extract_strided_slice %31 {offsets = [0, 0], sizes = [288, 48], strides = [1, 1]} : vector<320x48xbf16> to vector<288x48xbf16>
    %c0_15 = arith.constant 0 : index
    %c0_16 = arith.constant 0 : index
    %c0_17 = arith.constant 0 : index
    %34 = vector.load %arg7[%c0_15, %c0_16, %c0_17] : memref<3x48x16xbf16, #tpu.memory_space<vmem>>, vector<1x48x16xbf16>
    %35 = vector.shape_cast %34 : vector<1x48x16xbf16> to vector<48x16xbf16>
    %cst_18 = arith.constant dense<0.000000e+00> : vector<288x16xf32>
    %36 = tpu.matmul %33, %35, %cst_18 {dimension_numbers = #tpu.dot_dimension_numbers<[1], [0], [0], [1], [0, 0, 1, 1], [], []>} : vector<288x48xbf16>, vector<48x16xbf16>, vector<288x16xf32> -> vector<288x16xf32>
    %37 = arith.addf %32, %36 : vector<288x16xf32>
    %38 = vector.extract_strided_slice %31 {offsets = [16, 0], sizes = [288, 48], strides = [1, 1]} : vector<320x48xbf16> to vector<288x48xbf16>
    %c1 = arith.constant 1 : index
    %c0_19 = arith.constant 0 : index
    %c0_20 = arith.constant 0 : index
    %39 = vector.load %arg7[%c1, %c0_19, %c0_20] : memref<3x48x16xbf16, #tpu.memory_space<vmem>>, vector<1x48x16xbf16>
    %40 = vector.shape_cast %39 : vector<1x48x16xbf16> to vector<48x16xbf16>
    %cst_21 = arith.constant dense<0.000000e+00> : vector<288x16xf32>
    %41 = tpu.matmul %38, %40, %cst_21 {dimension_numbers = #tpu.dot_dimension_numbers<[1], [0], [0], [1], [0, 0, 1, 1], [], []>} : vector<288x48xbf16>, vector<48x16xbf16>, vector<288x16xf32> -> vector<288x16xf32>
    %42 = arith.addf %37, %41 : vector<288x16xf32>
    %43 = vector.extract_strided_slice %31 {offsets = [32, 0], sizes = [288, 48], strides = [1, 1]} : vector<320x48xbf16> to vector<288x48xbf16>
    %c2 = arith.constant 2 : index
    %c0_22 = arith.constant 0 : index
    %c0_23 = arith.constant 0 : index
    %44 = vector.load %arg7[%c2, %c0_22, %c0_23] : memref<3x48x16xbf16, #tpu.memory_space<vmem>>, vector<1x48x16xbf16>
    %45 = vector.shape_cast %44 : vector<1x48x16xbf16> to vector<48x16xbf16>
    %cst_24 = arith.constant dense<0.000000e+00> : vector<288x16xf32>
    %46 = tpu.matmul %43, %45, %cst_24 {dimension_numbers = #tpu.dot_dimension_numbers<[1], [0], [0], [1], [0, 0, 1, 1], [], []>} : vector<288x48xbf16>, vector<48x16xbf16>, vector<288x16xf32> -> vector<288x16xf32>
    %47 = arith.addf %42, %46 : vector<288x16xf32>
    %c0_25 = arith.constant 0 : index
    %c0_26 = arith.constant 0 : index
    %48 = vector.load %arg5[%c0_25, %c0_26] : memref<1x16xf32, #tpu.memory_space<vmem>>, vector<1x16xf32>
    %49 = vector.broadcast %48 : vector<1x16xf32> to vector<288x16xf32>
    %50 = arith.mulf %47, %49 : vector<288x16xf32>
    %c0_27 = arith.constant 0 : index
    %c0_28 = arith.constant 0 : index
    %51 = vector.load %arg6[%c0_27, %c0_28] : memref<1x16xf32, #tpu.memory_space<vmem>>, vector<1x16xf32>
    %52 = vector.broadcast %51 : vector<1x16xf32> to vector<288x16xf32>
    %53 = arith.addf %50, %52 : vector<288x16xf32>
    %cst_29 = arith.constant 0.000000e+00 : f32
    %54 = vector.broadcast %cst_29 : f32 to vector<288x16xf32>
    %55 = arith.maximumf %53, %54 : vector<288x16xf32>
    %56 = tpu.iota {dimensions = array<i32: 0>} : vector<18x16x16xi32>
    %57 = vector.shape_cast %56 : vector<18x16x16xi32> to vector<288x16xi32>
    %c0_i32_30 = arith.constant 0 : i32
    %58 = vector.broadcast %c0_i32_30 : i32 to vector<288x16xi32>
    %59 = arith.cmpi eq, %57, %58 : vector<288x16xi32>
    %cst_31 = arith.constant 1.000000e+00 : f32
    %60 = vector.broadcast %2 : f32 to vector<288x16xf32>
    %61 = vector.broadcast %cst_31 : f32 to vector<288x16xf32>
    %62 = arith.select %59, %60, %61 : vector<288x16xi1>, vector<288x16xf32>
    %c17_i32 = arith.constant 17 : i32
    %63 = vector.broadcast %c17_i32 : i32 to vector<288x16xi32>
    %64 = arith.cmpi eq, %57, %63 : vector<288x16xi32>
    %cst_32 = arith.constant 1.000000e+00 : f32
    %65 = vector.broadcast %5 : f32 to vector<288x16xf32>
    %66 = vector.broadcast %cst_32 : f32 to vector<288x16xf32>
    %67 = arith.select %64, %65, %66 : vector<288x16xi1>, vector<288x16xf32>
    %68 = arith.mulf %62, %67 : vector<288x16xf32>
    %69 = arith.mulf %55, %68 : vector<288x16xf32>
    %70 = vector.extract_strided_slice %9 {offsets = [0, 0], sizes = [288, 16], strides = [1, 1]} : vector<320x16xi1> to vector<288x16xi1>
    %c1_i32_33 = arith.constant 1 : i32
    %71 = tpu.dynamic_rotate %69 by %c1_i32_33 dim 0 : vector<288x16xf32>, i32 -> vector<288x16xf32>
    %cst_34 = arith.constant 0.000000e+00 : f32
    %72 = vector.broadcast %cst_34 : f32 to vector<288x16xf32>
    %73 = arith.select %70, %71, %72 : vector<288x16xi1>, vector<288x16xf32>
    %74 = vector.extract_strided_slice %11 {offsets = [0, 0], sizes = [288, 16], strides = [1, 1]} : vector<320x16xi1> to vector<288x16xi1>
    %c287_i32 = arith.constant 287 : i32
    %75 = tpu.dynamic_rotate %69 by %c287_i32 dim 0 : vector<288x16xf32>, i32 -> vector<288x16xf32>
    %cst_35 = arith.constant 0.000000e+00 : f32
    %76 = vector.broadcast %cst_35 : f32 to vector<288x16xf32>
    %77 = arith.select %74, %75, %76 : vector<288x16xi1>, vector<288x16xf32>
    %78 = arith.truncf %73 : vector<288x16xf32> to vector<288x16xbf16>
    %79 = arith.truncf %69 : vector<288x16xf32> to vector<288x16xbf16>
    %80 = arith.truncf %77 : vector<288x16xf32> to vector<288x16xbf16>
    %81 = tpu.concatenate %78, %79, %80 in 1 : vector<288x16xbf16>, vector<288x16xbf16>, vector<288x16xbf16> -> vector<288x48xbf16>
    %cst_36 = arith.constant 0.000000e+00 : f32
    %82 = vector.broadcast %cst_36 : f32 to vector<256x16xf32>
    %83 = vector.extract_strided_slice %81 {offsets = [0, 0], sizes = [256, 48], strides = [1, 1]} : vector<288x48xbf16> to vector<256x48xbf16>
    %c0_37 = arith.constant 0 : index
    %c0_38 = arith.constant 0 : index
    %c0_39 = arith.constant 0 : index
    %84 = vector.load %arg8[%c0_37, %c0_38, %c0_39] : memref<3x48x16xbf16, #tpu.memory_space<vmem>>, vector<1x48x16xbf16>
    %85 = vector.shape_cast %84 : vector<1x48x16xbf16> to vector<48x16xbf16>
    %cst_40 = arith.constant dense<0.000000e+00> : vector<256x16xf32>
    %86 = tpu.matmul %83, %85, %cst_40 {dimension_numbers = #tpu.dot_dimension_numbers<[1], [0], [0], [1], [0, 0, 1, 1], [], []>} : vector<256x48xbf16>, vector<48x16xbf16>, vector<256x16xf32> -> vector<256x16xf32>
    %87 = arith.addf %82, %86 : vector<256x16xf32>
    %88 = vector.extract_strided_slice %81 {offsets = [16, 0], sizes = [256, 48], strides = [1, 1]} : vector<288x48xbf16> to vector<256x48xbf16>
    %c1_41 = arith.constant 1 : index
    %c0_42 = arith.constant 0 : index
    %c0_43 = arith.constant 0 : index
    %89 = vector.load %arg8[%c1_41, %c0_42, %c0_43] : memref<3x48x16xbf16, #tpu.memory_space<vmem>>, vector<1x48x16xbf16>
    %90 = vector.shape_cast %89 : vector<1x48x16xbf16> to vector<48x16xbf16>
    %cst_44 = arith.constant dense<0.000000e+00> : vector<256x16xf32>
    %91 = tpu.matmul %88, %90, %cst_44 {dimension_numbers = #tpu.dot_dimension_numbers<[1], [0], [0], [1], [0, 0, 1, 1], [], []>} : vector<256x48xbf16>, vector<48x16xbf16>, vector<256x16xf32> -> vector<256x16xf32>
    %92 = arith.addf %87, %91 : vector<256x16xf32>
    %93 = vector.extract_strided_slice %81 {offsets = [32, 0], sizes = [256, 48], strides = [1, 1]} : vector<288x48xbf16> to vector<256x48xbf16>
    %c2_45 = arith.constant 2 : index
    %c0_46 = arith.constant 0 : index
    %c0_47 = arith.constant 0 : index
    %94 = vector.load %arg8[%c2_45, %c0_46, %c0_47] : memref<3x48x16xbf16, #tpu.memory_space<vmem>>, vector<1x48x16xbf16>
    %95 = vector.shape_cast %94 : vector<1x48x16xbf16> to vector<48x16xbf16>
    %cst_48 = arith.constant dense<0.000000e+00> : vector<256x16xf32>
    %96 = tpu.matmul %93, %95, %cst_48 {dimension_numbers = #tpu.dot_dimension_numbers<[1], [0], [0], [1], [0, 0, 1, 1], [], []>} : vector<256x48xbf16>, vector<48x16xbf16>, vector<256x16xf32> -> vector<256x16xf32>
    %97 = arith.addf %92, %96 : vector<256x16xf32>
    %c0_49 = arith.constant 0 : index
    %c0_50 = arith.constant 0 : index
    %98 = vector.load %arg9[%c0_49, %c0_50] : memref<1x16xf32, #tpu.memory_space<vmem>>, vector<1x16xf32>
    %99 = vector.broadcast %98 : vector<1x16xf32> to vector<256x16xf32>
    %100 = arith.addf %97, %99 : vector<256x16xf32>
    %101 = arith.addf %14, %100 : vector<256x16xf32>
    %cst_51 = arith.constant 0.000000e+00 : f32
    %102 = vector.broadcast %cst_51 : f32 to vector<256x16xf32>
    %103 = arith.maximumf %101, %102 : vector<256x16xf32>
    %104 = vector.shape_cast %103 : vector<256x16xf32> to vector<1x16x16x16xf32>
    %c0_52 = arith.constant 0 : index
    %c0_53 = arith.constant 0 : index
    %c0_54 = arith.constant 0 : index
    %c0_55 = arith.constant 0 : index
    %105 = vector.load %arg10[%c0_52, %c0_53, %c0_54, %c0_55] : memref<1x16x16x16xf32, #tpu.memory_space<vmem>>, vector<1x16x16x16xf32>
    tpu.vector_store %arg10[%c0_52, %c0_53, %c0_54, %c0_55], %104 {strides = array<i32>} : memref<1x16x16x16xf32, #tpu.memory_space<vmem>>, vector<1x16x16x16xf32>,
    return
  }
  func.func @transform_0(%arg0: i32, %arg1: i32) -> (i32, i32, i32, i32) {
    %c0_i32 = arith.constant 0 : i32
    %c0_i32_0 = arith.constant 0 : i32
    %c0_i32_1 = arith.constant 0 : i32
    return %arg0, %arg1, %c0_i32, %c0_i32_0 : i32, i32, i32, i32
  }
  func.func @transform_1(%arg0: i32, %arg1: i32) -> (i32, i32, i32, i32) {
    %c0_i32 = arith.constant 0 : i32
    %c0_i32_0 = arith.constant 0 : i32
    %c0_i32_1 = arith.constant 0 : i32
    return %arg0, %arg1, %c0_i32, %c0_i32_0 : i32, i32, i32, i32
  }
  func.func @transform_2(%arg0: i32, %arg1: i32) -> (i32, i32, i32, i32) {
    %c0_i32 = arith.constant 0 : i32
    %c0_i32_0 = arith.constant 0 : i32
    %c0_i32_1 = arith.constant 0 : i32
    return %arg0, %arg1, %c0_i32, %c0_i32_0 : i32, i32, i32, i32
  }
  func.func @transform_3(%arg0: i32, %arg1: i32) -> (i32, i32) {
    %c0_i32 = arith.constant 0 : i32
    %c0_i32_0 = arith.constant 0 : i32
    %c0_i32_1 = arith.constant 0 : i32
    return %c0_i32, %c0_i32_0 : i32, i32
  }
  func.func @transform_4(%arg0: i32, %arg1: i32) -> (i32, i32) {
    %c0_i32 = arith.constant 0 : i32
    %c0_i32_0 = arith.constant 0 : i32
    %c0_i32_1 = arith.constant 0 : i32
    return %c0_i32, %c0_i32_0 : i32, i32
  }
  func.func @transform_5(%arg0: i32, %arg1: i32) -> (i32, i32, i32) {
    %c0_i32 = arith.constant 0 : i32
    %c0_i32_0 = arith.constant 0 : i32
    %c0_i32_1 = arith.constant 0 : i32
    %c0_i32_2 = arith.constant 0 : i32
    return %c0_i32, %c0_i32_0, %c0_i32_1 : i32, i32, i32
  }
  func.func @transform_6(%arg0: i32, %arg1: i32) -> (i32, i32, i32) {
    %c0_i32 = arith.constant 0 : i32
    %c0_i32_0 = arith.constant 0 : i32
    %c0_i32_1 = arith.constant 0 : i32
    %c0_i32_2 = arith.constant 0 : i32
    return %c0_i32, %c0_i32_0, %c0_i32_1 : i32, i32, i32
  }
  func.func @transform_7(%arg0: i32, %arg1: i32) -> (i32, i32) {
    %c0_i32 = arith.constant 0 : i32
    %c0_i32_0 = arith.constant 0 : i32
    %c0_i32_1 = arith.constant 0 : i32
    return %c0_i32, %c0_i32_0 : i32, i32
  }
  func.func @transform_8(%arg0: i32, %arg1: i32) -> (i32, i32, i32, i32) {
    %c0_i32 = arith.constant 0 : i32
    %c0_i32_0 = arith.constant 0 : i32
    %c0_i32_1 = arith.constant 0 : i32
    return %arg0, %arg1, %c0_i32, %c0_i32_0 : i32, i32, i32, i32
  }
}

</mosaic_0001>

<llo_original>
// kernel: erb_forward_nhwc.2
$region0: #{erb_forward_nhwc.2}
  #allocation0 [shape = 'u32[]', space=smem, size = 0x4, offset = 0x4, fixed_abs, tag = 'smem constant byte address 0x4 - core index']
  #allocation1 [shape = 'u32[72,128]{1,0:T(1,128)}', space=vmem, size = 0x9000, scoped, tag = 'internal scratch']
  %s0 = inlined_call_operand.vmem [shape: bf16[2,16,16,4], index: 0, kind: input, shape index: {}]
  %s1 = inlined_call_operand.vmem [shape: bf16[2,1,16,4], index: 1, kind: input, shape index: {}, may-alias: {1,2}]
  %s2 = inlined_call_operand.vmem [shape: bf16[2,1,16,4], index: 2, kind: input, shape index: {}, may-alias: {1,2}]
  %s3 = inlined_call_operand.vmem [shape: bf16[4,16], index: 3, kind: input, shape index: {}]
  %s4 = inlined_call_operand.vmem [shape: f32[1,16], index: 4, kind: input, shape index: {}]
  %s5 = inlined_call_operand.vmem [shape: bf16[3,48,16], index: 5, kind: input, shape index: {}]
  %s6 = inlined_call_operand.vmem [shape: bf16[2,16,16,16], index: 6, kind: output, shape index: {0}]
  %s7 = inlined_call_operand.vmem [shape: f32[2,1,2,16], index: 7, kind: output, shape index: {1}]
  %8 = xla_tuple %s6, %s7
  %s9 = sld [smem:[#allocation0]]
  $region65: #{erb_forward_nhwc.2} parent=0
    _
  %s11 = ssub.s32 1, %s9
  %s12 = scalar_select 0, %s11, %s9
  loop: start=0, step=1, limit=4
  $region2: #{erb_forward_nhwc.2} parent=0 // loop_pre_header
    _
  $region3: #{erb_forward_nhwc.2} parent=0 // loop_header
    %s14 = sphi 0, %s18
    %p15 = scmp.ge.s32.totalorder %s14, 4
    %s21 = sphi 0, %s33
    %s22 = sphi 0, %s29
    %s23 = sphi 0, %s21
    %s24 = sphi 0, %s22
    %s25 = sphi 0, %s23
    %s26 = sphi 0, %s24
    %s38 = sphi 0, %s40
    %s41 = sphi 0, %s38
    %s42 = sphi 0, %s41
    %s58 = sphi 0, %s42
    %s66 = sphi 0, %s68
    %s69 = sphi 0, %s66
    %s70 = sphi 0, %s69
    %s86 = sphi 0, %s70
    %s94 = sphi 0, %s96
    %s97 = sphi 0, %s94
    %s98 = sphi 0, %s97
    %s114 = sphi 0, %s98
    %s118 = sphi 0, %s118
    %s120 = sphi 0, %s118
    %s121 = sphi 0, %s120
    %s135 = sphi 0, %s121
    %s139 = sphi 0, %s139
    %s141 = sphi 0, %s139
    %s142 = sphi 0, %s141
    %s156 = sphi 0, %s142
    %s160 = sphi 0, %s160
    %s162 = sphi 0, %s160
    %s163 = sphi 0, %s162
    %s177 = sphi 0, %s163
    %s185 = sphi 0, %s187
    %s188 = sphi 0, %s185
    %s189 = sphi 0, %s188
    %s205 = sphi 0, %s189
    %s213 = sphi 0, %s215
    %s216 = sphi 0, %s213
    %s217 = sphi 0, %s216
    %s233 = sphi 0, %s217
  $region4: #{erb_forward_nhwc.2} parent=0 // loop_header_branch
    %17 = sbr.rel (%p15) target = $region8
  $region5: #{erb_forward_nhwc.2} parent=0 // loop_body
    %s19 = ssub.s32 %s14, 1
    %s20 = ssub.s32 %s14, 2
    %s27 = sadd.s32 1, %s22
    %p28 = scmp.ge.s32.totalorder %s27, 1
    %s29 = scalar_select %p28, 0, %s27
    %s30 = sadd.s32 1, %s21
    %s31 = scalar_select %p28, %s30, %s21
    %p32 = scmp.ge.s32.totalorder %s31, 2
    %s33 = scalar_select %p32, 0, %s31
    %s34 = ssub.s32 %s21, %s33
    %s35 = ssub.s32 %s22, %s29
    %s36 = sor.u32 %s34, %s35
    %p37 = scmp.eq.s32.totalorder %s36, 0
    %s39 = sadd.s32 %s38, 1
    %s40 = scalar_select %p37, %s38, %s39
    %p43 = pneg %p37
    %p44 = scmp.eq.s32.totalorder %s14, 1
    %p45 = por %p43, %p44
    %p46 = scmp.ne.s32.totalorder %s38, %s41
    %p47 = scmp.eq.s32.totalorder %s14, 0
    %p48 = por %p46, %p47
    %p49 = scmp.ne.s32.totalorder %s38, %s41
    %p50 = scmp.eq.s32.totalorder %s19, 1
    %p51 = por %p49, %p50
    %p52 = scmp.ne.s32.totalorder %s41, %s42
    %p53 = scmp.eq.s32.totalorder %s19, 0
    %p54 = por %p52, %p53
    %p55 = scmp.ne.s32.totalorder %s41, %s42
    %p56 = scmp.eq.s32.totalorder %s20, 1
    %p57 = por %p55, %p56
    %p59 = scmp.ne.s32.totalorder %s42, %s58
    %p60 = scmp.eq.s32.totalorder %s20, 0
    %p61 = por %p59, %p60
    %s62 = ssub.s32 %s21, %s33
    %s63 = ssub.s32 %s22, %s29
    %s64 = sor.u32 %s62, %s63
    %p65 = scmp.eq.s32.totalorder %s64, 0
    %s67 = sadd.s32 %s66, 1
    %s68 = scalar_select %p65, %s66, %s67
    %p71 = pneg %p65
    %p72 = scmp.eq.s32.totalorder %s14, 1
    %p73 = por %p71, %p72
    %p74 = scmp.ne.s32.totalorder %s66, %s69
    %p75 = scmp.eq.s32.totalorder %s14, 0
    %p76 = por %p74, %p75
    %p77 = scmp.ne.s32.totalorder %s66, %s69
    %p78 = scmp.eq.s32.totalorder %s19, 1
    %p79 = por %p77, %p78
    %p80 = scmp.ne.s32.totalorder %s69, %s70
    %p81 = scmp.eq.s32.totalorder %s19, 0
    %p82 = por %p80, %p81
    %p83 = scmp.ne.s32.totalorder %s69, %s70
    %p84 = scmp.eq.s32.totalorder %s20, 1
    %p85 = por %p83, %p84
    %p87 = scmp.ne.s32.totalorder %s70, %s86
    %p88 = scmp.eq.s32.totalorder %s20, 0
    %p89 = por %p87, %p88
    %s90 = ssub.s32 %s21, %s33
    %s91 = ssub.s32 %s22, %s29
    %s92 = sor.u32 %s90, %s91
    %p93 = scmp.eq.s32.totalorder %s92, 0
    %s95 = sadd.s32 %s94, 1
    %s96 = scalar_select %p93, %s94, %s95
    %p99 = pneg %p93
    %p100 = scmp.eq.s32.totalorder %s14, 1
    %p101 = por %p99, %p100
    %p102 = scmp.ne.s32.totalorder %s94, %s97
    %p103 = scmp.eq.s32.totalorder %s14, 0
    %p104 = por %p102, %p103
    %p105 = scmp.ne.s32.totalorder %s94, %s97
    %p106 = scmp.eq.s32.totalorder %s19, 1
    %p107 = por %p105, %p106
    %p108 = scmp.ne.s32.totalorder %s97, %s98
    %p109 = scmp.eq.s32.totalorder %s19, 0
    %p110 = por %p108, %p109
    %p111 = scmp.ne.s32.totalorder %s97, %s98
    %p112 = scmp.eq.s32.totalorder %s20, 1
    %p113 = por %p111, %p112
    %p115 = scmp.ne.s32.totalorder %s98, %s114
    %p116 = scmp.eq.s32.totalorder %s20, 0
    %p117 = por %p115, %p116
    %s119 = sadd.s32 %s118, 1
    %p122 = scmp.eq.s32.totalorder %s14, 1
    %p123 = scmp.ne.s32.totalorder %s118, %s120
    %p124 = scmp.eq.s32.totalorder %s14, 0
    %p125 = por %p123, %p124
    %p126 = scmp.ne.s32.totalorder %s118, %s120
    %p127 = scmp.eq.s32.totalorder %s19, 1
    %p128 = por %p126, %p127
    %p129 = scmp.ne.s32.totalorder %s120, %s121
    %p130 = scmp.eq.s32.totalorder %s19, 0
    %p131 = por %p129, %p130
    %p132 = scmp.ne.s32.totalorder %s120, %s121
    %p133 = scmp.eq.s32.totalorder %s20, 1
    %p134 = por %p132, %p133
    %p136 = scmp.ne.s32.totalorder %s121, %s135
    %p137 = scmp.eq.s32.totalorder %s20, 0
    %p138 = por %p136, %p137
    %s140 = sadd.s32 %s139, 1
    %p143 = scmp.eq.s32.totalorder %s14, 1
    %p144 = scmp.ne.s32.totalorder %s139, %s141
    %p145 = scmp.eq.s32.totalorder %s14, 0
    %p146 = por %p144, %p145
    %p147 = scmp.ne.s32.totalorder %s139, %s141
    %p148 = scmp.eq.s32.totalorder %s19, 1
    %p149 = por %p147, %p148
    %p150 = scmp.ne.s32.totalorder %s141, %s142
    %p151 = scmp.eq.s32.totalorder %s19, 0
    %p152 = por %p150, %p151
    %p153 = scmp.ne.s32.totalorder %s141, %s142
    %p154 = scmp.eq.s32.totalorder %s20, 1
    %p155 = por %p153, %p154
    %p157 = scmp.ne.s32.totalorder %s142, %s156
    %p158 = scmp.eq.s32.totalorder %s20, 0
    %p159 = por %p157, %p158
    %s161 = sadd.s32 %s160, 1
    %p164 = scmp.eq.s32.totalorder %s14, 1
    %p165 = scmp.ne.s32.totalorder %s160, %s162
    %p166 = scmp.eq.s32.totalorder %s14, 0
    %p167 = por %p165, %p166
    %p168 = scmp.ne.s32.totalorder %s160, %s162
    %p169 = scmp.eq.s32.totalorder %s19, 1
    %p170 = por %p168, %p169
    %p171 = scmp.ne.s32.totalorder %s162, %s163
    %p172 = scmp.eq.s32.totalorder %s19, 0
    %p173 = por %p171, %p172
    %p174 = scmp.ne.s32.totalorder %s162, %s163
    %p175 = scmp.eq.s32.totalorder %s20, 1
    %p176 = por %p174, %p175
    %p178 = scmp.ne.s32.totalorder %s163, %s177
    %p179 = scmp.eq.s32.totalorder %s20, 0
    %p180 = por %p178, %p179
    %s181 = ssub.s32 %s21, %s33
    %s182 = ssub.s32 %s22, %s29
    %s183 = sor.u32 %s181, %s182
    %p184 = scmp.eq.s32.totalorder %s183, 0
    %s186 = sadd.s32 %s185, 1
    %s187 = scalar_select %p184, %s185, %s186
    %p190 = pneg %p184
    %p191 = scmp.eq.s32.totalorder %s14, 1
    %p192 = por %p190, %p191
    %p193 = scmp.ne.s32.totalorder %s185, %s188
    %p194 = scmp.eq.s32.totalorder %s14, 0
    %p195 = por %p193, %p194
    %p196 = scmp.ne.s32.totalorder %s185, %s188
    %p197 = scmp.eq.s32.totalorder %s19, 1
    %p198 = por %p196, %p197
    %p199 = scmp.ne.s32.totalorder %s188, %s189
    %p200 = scmp.eq.s32.totalorder %s19, 0
    %p201 = por %p199, %p200
    %p202 = scmp.ne.s32.totalorder %s188, %s189
    %p203 = scmp.eq.s32.totalorder %s20, 1
    %p204 = por %p202, %p203
    %p206 = scmp.ne.s32.totalorder %s189, %s205
    %p207 = scmp.eq.s32.totalorder %s20, 0
    %p208 = por %p206, %p207
    %s209 = ssub.s32 %s21, %s33
    %s210 = ssub.s32 %s22, %s29
    %s211 = sor.u32 %s209, %s210
    %p212 = scmp.eq.s32.totalorder %s211, 0
    %s214 = sadd.s32 %s213, 1
    %s215 = scalar_select %p212, %s213, %s214
    %p218 = pneg %p212
    %p219 = scmp.eq.s32.totalorder %s14, 1
    %p220 = por %p218, %p219
    %p221 = scmp.ne.s32.totalorder %s213, %s216
    %p222 = scmp.eq.s32.totalorder %s14, 0
    %p223 = por %p221, %p222
    %p224 = scmp.ne.s32.totalorder %s213, %s216
    %p225 = scmp.eq.s32.totalorder %s19, 1
    %p226 = por %p224, %p225
    %p227 = scmp.ne.s32.totalorder %s216, %s217
    %p228 = scmp.eq.s32.totalorder %s19, 0
    %p229 = por %p227, %p228
    %p230 = scmp.ne.s32.totalorder %s216, %s217
    %p231 = scmp.eq.s32.totalorder %s20, 1
    %p232 = por %p230, %p231
    %p234 = scmp.ne.s32.totalorder %s217, %s233
    %p235 = scmp.eq.s32.totalorder %s20, 0
    %p236 = por %p234, %p235
    %p237 = scmp.le.s32.totalorder 1, %s14
    %p238 = scmp.lt.s32.totalorder %s14, 3
    %p239 = pnand %p237, %p238
    %p240 = pneg %p239
    // Predicated region
    $region9: #{erb_forward_nhwc.2} parent=5 // pred_check
      _
    $region10: #{erb_forward_nhwc.2} parent=5 // pred_check_branch
      %242 = sbr.rel (%p239) target = $region12
    $region11: #{erb_forward_nhwc.2} parent=5 // pred_region
      %s243 = ssub.s32 %s14, 1
      // Predicated region
      $region13: #{erb_forward_nhwc.2} parent=11 // pred_check
        %p244 = pneg %p131
      $region14: #{erb_forward_nhwc.2} parent=11 // pred_check_branch
        %246 = sbr.rel (%p244) target = $region16
      $region15: #{erb_forward_nhwc.2} parent=11 // pred_region
        _
      $region16: #{erb_forward_nhwc.2} parent=11 // pred_fallthru
        _
      // Predicated region
      $region17: #{erb_forward_nhwc.2} parent=11 // pred_check
        %p247 = pneg %p152
      $region18: #{erb_forward_nhwc.2} parent=11 // pred_check_branch
        %249 = sbr.rel (%p247) target = $region20
      $region19: #{erb_forward_nhwc.2} parent=11 // pred_region
        _
      $region20: #{erb_forward_nhwc.2} parent=11 // pred_fallthru
        _
      // Predicated region
      $region21: #{erb_forward_nhwc.2} parent=11 // pred_check
        %p250 = pneg %p173
      $region22: #{erb_forward_nhwc.2} parent=11 // pred_check_branch
        %252 = sbr.rel (%p250) target = $region24
      $region23: #{erb_forward_nhwc.2} parent=11 // pred_region
        _
      $region24: #{erb_forward_nhwc.2} parent=11 // pred_fallthru
        _
    $region12: #{erb_forward_nhwc.2} parent=5 // pred_fallthru
      _
    %p253 = scmp.lt.s32.totalorder %s14, 2
    // Predicated region
    $region25: #{erb_forward_nhwc.2} parent=5 // pred_check
      %p254 = pneg %p253
    $region26: #{erb_forward_nhwc.2} parent=5 // pred_check_branch
      %256 = sbr.rel (%p254) target = $region28
    $region27: #{erb_forward_nhwc.2} parent=5 // pred_region
      // Predicated region
      $region29: #{erb_forward_nhwc.2} parent=27 // pred_check
        %p257 = pneg %p48
      $region30: #{erb_forward_nhwc.2} parent=27 // pred_check_branch
        %259 = sbr.rel (%p257) target = $region32
      $region31: #{erb_forward_nhwc.2} parent=27 // pred_region
        %s260 = smul.u32 16, %s22
        %p261 = scmp.lt.s32.totalorder %s21, 1
        %s262 = scalar_select %p261, %s21, 1
        %p263 = scmp.lt.s32.totalorder %s260, 15
        %s264 = scalar_select %p263, %s260, 15
        %s265 = smul.addr %s264, 2
        %s266 = smul.addr %s262, 32
        %s267 = sadd.s32 %s265, %s266
        %s268 = smul.addr %s267, 4
        %s269 = scalar_lea.vmem %s0, %s268
        %s270 = smul.u32 16, %s22
      $region32: #{erb_forward_nhwc.2} parent=27 // pred_fallthru
        _
      // Predicated region
      $region33: #{erb_forward_nhwc.2} parent=27 // pred_check
        %p271 = pneg %p76
      $region34: #{erb_forward_nhwc.2} parent=27 // pred_check_branch
        %273 = sbr.rel (%p271) target = $region36
      $region35: #{erb_forward_nhwc.2} parent=27 // pred_region
        %p274 = scmp.lt.s32.totalorder %s21, 1
        %s275 = scalar_select %p274, %s21, 1
        %p276 = scmp.lt.s32.totalorder %s22, 0
        %s277 = scalar_select %p276, %s22, 0
        %s278 = smul.addr %s277, 2
        %s279 = smul.addr %s275, 2
        %s280 = sadd.s32 %s278, %s279
        %s281 = smul.addr %s280, 4
        %s282 = scalar_lea.vmem %s1, %s281
      $region36: #{erb_forward_nhwc.2} parent=27 // pred_fallthru
        _
      // Predicated region
      $region37: #{erb_forward_nhwc.2} parent=27 // pred_check
        %p283 = pneg %p104
      $region38: #{erb_forward_nhwc.2} parent=27 // pred_check_branch
        %285 = sbr.rel (%p283) target = $region40
      $region39: #{erb_forward_nhwc.2} parent=27 // pred_region
        %p286 = scmp.lt.s32.totalorder %s21, 1
        %s287 = scalar_select %p286, %s21, 1
        %p288 = scmp.lt.s32.totalorder %s22, 0
        %s289 = scalar_select %p288, %s22, 0
        %s290 = smul.addr %s289, 2
        %s291 = smul.addr %s287, 2
        %s292 = sadd.s32 %s290, %s291
        %s293 = smul.addr %s292, 4
        %s294 = scalar_lea.vmem %s2, %s293
      $region40: #{erb_forward_nhwc.2} parent=27 // pred_fallthru
        _
    $region28: #{erb_forward_nhwc.2} parent=5 // pred_fallthru
      _
    %p295 = scmp.le.s32.totalorder 1, %s14
    %p296 = scmp.lt.s32.totalorder %s14, 3
    %p297 = pnand %p295, %p296
    %p298 = pneg %p297
    // Predicated region
    $region41: #{erb_forward_nhwc.2} parent=5 // pred_check
      _
    $region42: #{erb_forward_nhwc.2} parent=5 // pred_check_branch
      %300 = sbr.rel (%p297) target = $region44
    $region43: #{erb_forward_nhwc.2} parent=5 // pred_region
      %s301 = ssub.s32 %s14, 1
      %s302 = smul.u32 16, %s24
      %p303 = scmp.lt.s32.totalorder %s23, 1
      %s304 = scalar_select %p303, %s23, 1
      %p305 = scmp.lt.s32.totalorder %s302, 15
      %s306 = scalar_select %p305, %s302, 15
      %s307 = smul.addr %s306, 2
      %s308 = smul.addr %s304, 32
      %s309 = sadd.s32 %s307, %s308
      %s310 = smul.addr %s309, 4
      %s311 = scalar_lea.vmem %s0, %s310
      %p312 = pneg %p54
      %p313 = pneg %p51
      %p314 = scmp.lt.s32.totalorder %s23, 1
      %s315 = scalar_select %p314, %s23, 1
      %p316 = scmp.lt.s32.totalorder %s24, 0
      %s317 = scalar_select %p316, %s24, 0
      %s318 = smul.addr %s317, 2
      %s319 = smul.addr %s315, 2
      %s320 = sadd.s32 %s318, %s319
      %s321 = smul.addr %s320, 4
      %s322 = scalar_lea.vmem %s1, %s321
      %p323 = pneg %p82
      %p324 = pneg %p79
      %p325 = scmp.lt.s32.totalorder %s23, 1
      %s326 = scalar_select %p325, %s23, 1
      %p327 = scmp.lt.s32.totalorder %s24, 0
      %s328 = scalar_select %p327, %s24, 0
      %s329 = smul.addr %s328, 2
      %s330 = smul.addr %s326, 2
      %s331 = sadd.s32 %s329, %s330
      %s332 = smul.addr %s331, 4
      %s333 = scalar_lea.vmem %s2, %s332
      %p334 = pneg %p110
      %p335 = pneg %p107
      %p336 = pneg %p131
      %p337 = pneg %p128
      %p338 = pneg %p152
      %p339 = pneg %p149
      %p340 = pneg %p173
      %p341 = pneg %p170
      %p342 = pneg %p201
      %p343 = pneg %p198
      %s344 = smul.u32 16, %s24
      %p345 = scmp.lt.s32.totalorder %s23, 1
      %s346 = scalar_select %p345, %s23, 1
      %p347 = scmp.lt.s32.totalorder %s344, 15
      %s348 = scalar_select %p347, %s344, 15
      %s349 = smul.addr %s348, 2
      %s350 = smul.addr %s346, 32
      %s351 = sadd.s32 %s349, %s350
      %s352 = smul.addr %s351, 4
      %s353 = scalar_lea.vmem %s6, %s352
      %p354 = pneg %p229
      %p355 = pneg %p226
      %p356 = scmp.lt.s32.totalorder %s23, 1
      %s357 = scalar_select %p356, %s23, 1
      %p358 = scmp.lt.s32.totalorder %s24, 0
      %s359 = scalar_select %p358, %s24, 0
      %s360 = sadd.s32 %s359, %s357
      %s361 = smul.addr %s360, 2
      %s362 = scalar_lea.vmem %s7, %s361
      %s363 = smul.u32 16, %s24
      %p364 = scmp.lt.s32.totalorder %s23, 1
      %s365 = scalar_select %p364, %s23, 1
      %p366 = scmp.lt.s32.totalorder %s363, 15
      %s367 = scalar_select %p366, %s363, 15
      %s368 = smul.addr %s367, 2
      %s369 = smul.addr %s365, 32
      %s370 = sadd.s32 %s368, %s369
      %s371 = smul.addr %s370, 4
      %s372 = scalar_lea.vmem %s0, %s371
      %s373 = smul.u32 16, %s24
      %p374 = scmp.lt.s32.totalorder %s23, 1
      %s375 = scalar_select %p374, %s23, 1
      %p376 = scmp.lt.s32.totalorder %s24, 0
      %s377 = scalar_select %p376, %s24, 0
      %s378 = smul.addr %s377, 2
      %s379 = smul.addr %s375, 2
      %s380 = sadd.s32 %s378, %s379
      %s381 = smul.addr %s380, 4
      %s382 = scalar_lea.vmem %s1, %s381
      %p383 = scmp.lt.s32.totalorder %s23, 1
      %s384 = scalar_select %p383, %s23, 1
      %p385 = scmp.lt.s32.totalorder %s24, 0
      %s386 = scalar_select %p385, %s24, 0
      %s387 = smul.addr %s386, 2
      %s388 = smul.addr %s384, 2
      %s389 = sadd.s32 %s387, %s388
      %s390 = smul.addr %s389, 4
      %s391 = scalar_lea.vmem %s2, %s390
      %s392 = smul.u32 16, %s24
      %p393 = scmp.lt.s32.totalorder %s23, 1
      %s394 = scalar_select %p393, %s23, 1
      %p395 = scmp.lt.s32.totalorder %s392, 15
      %s396 = scalar_select %p395, %s392, 15
      %s397 = smul.addr %s396, 2
      %s398 = smul.addr %s394, 32
      %s399 = sadd.s32 %s397, %s398
      %s400 = smul.addr %s399, 4
      %s401 = scalar_lea.vmem %s6, %s400
      %s402 = smul.u32 16, %s24
      %p403 = scmp.lt.s32.totalorder %s23, 1
      %s404 = scalar_select %p403, %s23, 1
      %p405 = scmp.lt.s32.totalorder %s24, 0
      %s406 = scalar_select %p405, %s24, 0
      %s407 = sadd.s32 %s406, %s404
      %s408 = smul.addr %s407, 2
      %s409 = scalar_lea.vmem %s7, %s408
      %p411 = scmp.gt.s32.totalorder %s24, 0
      %s412 = scalar_select %p411, 1, 0
      %s413 = scvt.s32.f32 %s412
      %p414 = scmp.lt.s32.totalorder %s24, 0
      %s415 = scalar_select %p414, 1, 0
      %s416 = scvt.s32.f32 %s415
      %v417 = vlaneseq
      %v418 = vshrl.u32 %v417, 7
      %v419 = vadd.s32 %v418, 8
      %vm420 = vcmp.ne.s32.totalorder %v418, 0
      %vm421 = vcmp.ne.s32.totalorder %v419, 0
      %vm422 = vcmp.ne.s32.totalorder %v418, 15
      %vm423 = vcmp.ne.s32.totalorder %v419, 15
      %v424 = vld [vmem:[%s3] sm:$0x3]
      %v425 = vld [vmem:[%s4] sm:$0x1]
      %v426 = vld [vmem:[%s372] sm:$0xf]
      %v427 = vld [vmem:[%s372 + $0x4] sm:$0xf]
      %v428 = vld [vmem:[%s372 + $0x8] sm:$0xf]
      %v429 = vld [vmem:[%s372 + $0xc] sm:$0xf]
      %v430 = vld [vmem:[%s372 + $0x10] sm:$0xf]
      %v431 = vld [vmem:[%s372 + $0x14] sm:$0xf]
      %v432 = vld [vmem:[%s372 + $0x18] sm:$0xf]
      %v433 = vld [vmem:[%s372 + $0x1c] sm:$0xf]
      %v434 = vld [vmem:[%s372 + $0x20] sm:$0xf]
      %v435 = vld [vmem:[%s372 + $0x24] sm:$0xf]
      %v436 = vld [vmem:[%s372 + $0x28] sm:$0xf]
      %v437 = vld [vmem:[%s372 + $0x2c] sm:$0xf]
      %v438 = vld [vmem:[%s372 + $0x30] sm:$0xf]
      %v439 = vld [vmem:[%s372 + $0x34] sm:$0xf]
      %v440 = vld [vmem:[%s372 + $0x38] sm:$0xf]
      %v441 = vld [vmem:[%s372 + $0x3c] sm:$0xf]
      %v442 = vld [vmem:[%s372 + $0x40] sm:$0xf]
      %v443 = vld [vmem:[%s372 + $0x44] sm:$0xf]
      %v444 = vld [vmem:[%s372 + $0x48] sm:$0xf]
      %v445 = vld [vmem:[%s372 + $0x4c] sm:$0xf]
      %v446 = vld [vmem:[%s372 + $0x50] sm:$0xf]
      %v447 = vld [vmem:[%s372 + $0x54] sm:$0xf]
      %v448 = vld [vmem:[%s372 + $0x58] sm:$0xf]
      %v449 = vld [vmem:[%s372 + $0x5c] sm:$0xf]
      %v450 = vld [vmem:[%s372 + $0x60] sm:$0xf]
      %v451 = vld [vmem:[%s372 + $0x64] sm:$0xf]
      %v452 = vld [vmem:[%s372 + $0x68] sm:$0xf]
      %v453 = vld [vmem:[%s372 + $0x6c] sm:$0xf]
      %v454 = vld [vmem:[%s372 + $0x70] sm:$0xf]
      %v455 = vld [vmem:[%s372 + $0x74] sm:$0xf]
      %v456 = vld [vmem:[%s372 + $0x78] sm:$0xf]
      %v457 = vld [vmem:[%s372 + $0x7c] sm:$0xf]
      %v459 = vperm.slane %v425, 0
      %v493 = vunpack.c.l.b16 %v426
      %v494 = vunpack.c.l.b16 %v427
      %v495 = vunpack.c.l.b16 %v428
      %v496 = vunpack.c.l.b16 %v429
      %v497 = vunpack.c.l.b16 %v430
      %v498 = vunpack.c.l.b16 %v431
      %v499 = vunpack.c.l.b16 %v432
      %v500 = vunpack.c.l.b16 %v433
      %v501 = vunpack.c.l.b16 %v434
      %v502 = vunpack.c.l.b16 %v435
      %v503 = vunpack.c.l.b16 %v436
      %v504 = vunpack.c.l.b16 %v437
      %v505 = vunpack.c.l.b16 %v438
      %v506 = vunpack.c.l.b16 %v439
      %v507 = vunpack.c.l.b16 %v440
      %v508 = vunpack.c.l.b16 %v441
      %v509 = vunpack.c.l.b16 %v442
      %v510 = vunpack.c.l.b16 %v443
      %v511 = vunpack.c.l.b16 %v444
      %v512 = vunpack.c.l.b16 %v445
      %v513 = vunpack.c.l.b16 %v446
      %v514 = vunpack.c.l.b16 %v447
      %v515 = vunpack.c.l.b16 %v448
      %v516 = vunpack.c.l.b16 %v449
      %v517 = vunpack.c.l.b16 %v450
      %v518 = vunpack.c.l.b16 %v451
      %v519 = vunpack.c.l.b16 %v452
      %v520 = vunpack.c.l.b16 %v453
      %v521 = vunpack.c.l.b16 %v454
      %v522 = vunpack.c.l.b16 %v455
      %v523 = vunpack.c.l.b16 %v456
      %v524 = vunpack.c.l.b16 %v457
      %v525 = vpack.c.b16 %v494, %v493
      %v526 = vpack.c.b16 %v496, %v495
      %v527 = vpack.c.b16 %v498, %v497
      %v528 = vpack.c.b16 %v500, %v499
      %v529 = vpack.c.b16 %v502, %v501
      %v530 = vpack.c.b16 %v504, %v503
      %v531 = vpack.c.b16 %v506, %v505
      %v532 = vpack.c.b16 %v508, %v507
      %v533 = vpack.c.b16 %v510, %v509
      %v534 = vpack.c.b16 %v512, %v511
      %v535 = vpack.c.b16 %v514, %v513
      %v536 = vpack.c.b16 %v516, %v515
      %v537 = vpack.c.b16 %v518, %v517
      %v538 = vpack.c.b16 %v520, %v519
      %v539 = vpack.c.b16 %v522, %v521
      %v540 = vpack.c.b16 %v524, %v523
      %vm541 = vcmask 31744
      %v543 = vsel %vm541, %v525, 0
      %v546 = vsel %vm541, %v526, 0
      %v549 = vsel %vm541, %v527, 0
      %v552 = vsel %vm541, %v528, 0
      %v555 = vsel %vm541, %v529, 0
      %v558 = vsel %vm541, %v530, 0
      %v561 = vsel %vm541, %v531, 0
      %v564 = vsel %vm541, %v532, 0
      %v567 = vsel %vm541, %v533, 0
      %v570 = vsel %vm541, %v534, 0
      %v573 = vsel %vm541, %v535, 0
      %v576 = vsel %vm541, %v536, 0
      %v579 = vsel %vm541, %v537, 0
      %v582 = vsel %vm541, %v538, 0
      %v585 = vsel %vm541, %v539, 0
      %v588 = vsel %vm541, %v540, 0
      %vm590 = vcmask 1041408
      %v592 = vsel %vm590, %v424, 0
      %594 = vmatpush.bf16.msra.mxu0 0
      %595 = vmatpush.bf16.msra.mxu0 0
      %596 = vmatpush.bf16.msra.mxu0 0
      %597 = vmatpush.bf16.msra.mxu0 0
      %598 = vmatpush.bf16.msra.mxu0 0
      %599 = vmatpush.bf16.msra.mxu0 0
      %600 = vmatpush.bf16.msra.mxu0 0
      %601 = vmatpush.bf16.msra.mxu0 %v592
      %602 = vmatmul.bf16.gmra.mxu0 %v543
      %v603 = vpop.f32.mrf.mxu0
      %v604 = vadd.f32 %v459, %v603
      %v605 = vpop.f32.mrf.mxu0
      %v606 = vadd.f32 %v459, %v605
      %607 = vmatmul.bf16.gmra.mxu0 %v546
      %v608 = vpop.f32.mrf.mxu0
      %v609 = vadd.f32 %v459, %v608
      %v610 = vpop.f32.mrf.mxu0
      %v611 = vadd.f32 %v459, %v610
      %612 = vmatmul.bf16.gmra.mxu0 %v549
      %v613 = vpop.f32.mrf.mxu0
      %v614 = vadd.f32 %v459, %v613
      %v615 = vpop.f32.mrf.mxu0
      %v616 = vadd.f32 %v459, %v615
      %617 = vmatmul.bf16.gmra.mxu0 %v552
      %v618 = vpop.f32.mrf.mxu0
      %v619 = vadd.f32 %v459, %v618
      %v620 = vpop.f32.mrf.mxu0
      %v621 = vadd.f32 %v459, %v620
      %622 = vmatmul.bf16.gmra.mxu0 %v555
      %v623 = vpop.f32.mrf.mxu0
      %v624 = vadd.f32 %v459, %v623
      %v625 = vpop.f32.mrf.mxu0
      %v626 = vadd.f32 %v459, %v625
      %627 = vmatmul.bf16.gmra.mxu0 %v558
      %v628 = vpop.f32.mrf.mxu0
      %v629 = vadd.f32 %v459, %v628
      %v630 = vpop.f32.mrf.mxu0
      %v631 = vadd.f32 %v459, %v630
      %632 = vmatmul.bf16.gmra.mxu0 %v561
      %v633 = vpop.f32.mrf.mxu0
      %v634 = vadd.f32 %v459, %v633
      %v635 = vpop.f32.mrf.mxu0
      %v636 = vadd.f32 %v459, %v635
      %637 = vmatmul.bf16.gmra.mxu0 %v564
      %v638 = vpop.f32.mrf.mxu0
      %v639 = vadd.f32 %v459, %v638
      %v640 = vpop.f32.mrf.mxu0
      %v641 = vadd.f32 %v459, %v640
      %642 = vmatmul.bf16.gmra.mxu0 %v567
      %v643 = vpop.f32.mrf.mxu0
      %v644 = vadd.f32 %v459, %v643
      %v645 = vpop.f32.mrf.mxu0
      %v646 = vadd.f32 %v459, %v645
      %647 = vmatmul.bf16.gmra.mxu0 %v570
      %v648 = vpop.f32.mrf.mxu0
      %v649 = vadd.f32 %v459, %v648
      %v650 = vpop.f32.mrf.mxu0
      %v651 = vadd.f32 %v459, %v650
      %652 = vmatmul.bf16.gmra.mxu0 %v573
      %v653 = vpop.f32.mrf.mxu0
      %v654 = vadd.f32 %v459, %v653
      %v655 = vpop.f32.mrf.mxu0
      %v656 = vadd.f32 %v459, %v655
      %657 = vmatmul.bf16.gmra.mxu0 %v576
      %v658 = vpop.f32.mrf.mxu0
      %v659 = vadd.f32 %v459, %v658
      %v660 = vpop.f32.mrf.mxu0
      %v661 = vadd.f32 %v459, %v660
      %662 = vmatmul.bf16.gmra.mxu0 %v579
      %v663 = vpop.f32.mrf.mxu0
      %v664 = vadd.f32 %v459, %v663
      %v665 = vpop.f32.mrf.mxu0
      %v666 = vadd.f32 %v459, %v665
      %667 = vmatmul.bf16.gmra.mxu0 %v582
      %v668 = vpop.f32.mrf.mxu0
      %v669 = vadd.f32 %v459, %v668
      %v670 = vpop.f32.mrf.mxu0
      %v671 = vadd.f32 %v459, %v670
      %672 = vmatmul.bf16.gmra.mxu0 %v585
      %v673 = vpop.f32.mrf.mxu0
      %v674 = vadd.f32 %v459, %v673
      %v675 = vpop.f32.mrf.mxu0
      %v676 = vadd.f32 %v459, %v675
      %677 = vmatmul.bf16.gmra.mxu0 %v588
      %v678 = vpop.f32.mrf.mxu0
      %v679 = vadd.f32 %v459, %v678
      %v680 = vpop.f32.mrf.mxu0
      %v681 = vadd.f32 %v459, %v680
      %682 = vdwg.mxu0
      %v683 = vld [vmem:[%s382] sm:$0xf]
      %v684 = vld [vmem:[%s382 + $0x4] sm:$0xf]
      %v687 = vunpack.c.l.b16 %v683
      %v688 = vunpack.c.l.b16 %v684
      %v689 = vpack.c.b16 %v688, %v687
      %v691 = vsel %vm541, %v689, 0
      %693 = vmatpush.bf16.msra.mxu0 0
      %694 = vmatpush.bf16.msra.mxu0 0
      %695 = vmatpush.bf16.msra.mxu0 0
      %696 = vmatpush.bf16.msra.mxu0 0
      %697 = vmatpush.bf16.msra.mxu0 0
      %698 = vmatpush.bf16.msra.mxu0 0
      %699 = vmatpush.bf16.msra.mxu0 0
      %700 = vmatpush.bf16.msra.mxu0 %v592
      %701 = vmatmul.bf16.gmra.mxu0 %v691
      %v702 = vpop.f32.mrf.mxu0
      %v703 = vadd.f32 %v459, %v702
      %v704 = vpop.f32.mrf.mxu0
      %v705 = vadd.f32 %v459, %v704
      %706 = vdwg.mxu0
      %v707 = vstv %s413
      %v708 = vmul.f32 %v703, %v707
      %v709 = vmul.f32 %v705, %v707
      %v710 = vld [vmem:[%s391] sm:$0xf]
      %v711 = vld [vmem:[%s391 + $0x4] sm:$0xf]
      %v714 = vunpack.c.l.b16 %v710
      %v715 = vunpack.c.l.b16 %v711
      %v716 = vpack.c.b16 %v715, %v714
      %v718 = vsel %vm541, %v716, 0
      %720 = vmatpush.bf16.msra.mxu0 0
      %721 = vmatpush.bf16.msra.mxu0 0
      %722 = vmatpush.bf16.msra.mxu0 0
      %723 = vmatpush.bf16.msra.mxu0 0
      %724 = vmatpush.bf16.msra.mxu0 0
      %725 = vmatpush.bf16.msra.mxu0 0
      %726 = vmatpush.bf16.msra.mxu0 0
      %727 = vmatpush.bf16.msra.mxu0 %v592
      %728 = vmatmul.bf16.gmra.mxu0 %v718
      %v729 = vpop.f32.mrf.mxu0
      %v730 = vadd.f32 %v459, %v729
      %v731 = vpop.f32.mrf.mxu0
      %v732 = vadd.f32 %v459, %v731
      %733 = vdwg.mxu0
      %v734 = vstv %s416
      %v735 = vmul.f32 %v730, %v734
      %v736 = vmul.f32 %v732, %v734
      %v737 = vpack.c.bf16 %v604, %v604
      %v738 = vpack.c.bf16 %v606, %v606
      %v739 = vpack.c.bf16 %v609, %v609
      %v740 = vpack.c.bf16 %v611, %v611
      %v741 = vpack.c.bf16 %v614, %v614
      %v742 = vpack.c.bf16 %v616, %v616
      %v743 = vpack.c.bf16 %v619, %v619
      %v744 = vpack.c.bf16 %v621, %v621
      %v745 = vpack.c.bf16 %v624, %v624
      %v746 = vpack.c.bf16 %v626, %v626
      %v747 = vpack.c.bf16 %v629, %v629
      %v748 = vpack.c.bf16 %v631, %v631
      %v749 = vpack.c.bf16 %v634, %v634
      %v750 = vpack.c.bf16 %v636, %v636
      %v751 = vpack.c.bf16 %v639, %v639
      %v752 = vpack.c.bf16 %v641, %v641
      %v753 = vpack.c.bf16 %v644, %v644
      %v754 = vpack.c.bf16 %v646, %v646
      %v755 = vpack.c.bf16 %v649, %v649
      %v756 = vpack.c.bf16 %v651, %v651
      %v757 = vpack.c.bf16 %v654, %v654
      %v758 = vpack.c.bf16 %v656, %v656
      %v759 = vpack.c.bf16 %v659, %v659
      %v760 = vpack.c.bf16 %v661, %v661
      %v761 = vpack.c.bf16 %v664, %v664
      %v762 = vpack.c.bf16 %v666, %v666
      %v763 = vpack.c.bf16 %v669, %v669
      %v764 = vpack.c.bf16 %v671, %v671
      %v765 = vpack.c.bf16 %v674, %v674
      %v766 = vpack.c.bf16 %v676, %v676
      %v767 = vpack.c.bf16 %v679, %v679
      %v768 = vpack.c.bf16 %v681, %v681
      %vm769 = vcmask 125952
      %770 = vst.msk [vmem:[%s401] sm:$0xf] %vm769, %v737
      %771 = vst.msk [vmem:[%s401 + $0x4] sm:$0xf] %vm769, %v738
      %772 = vst.msk [vmem:[%s401 + $0x8] sm:$0xf] %vm769, %v739
      %773 = vst.msk [vmem:[%s401 + $0xc] sm:$0xf] %vm769, %v740
      %774 = vst.msk [vmem:[%s401 + $0x10] sm:$0xf] %vm769, %v741
      %775 = vst.msk [vmem:[%s401 + $0x14] sm:$0xf] %vm769, %v742
      %776 = vst.msk [vmem:[%s401 + $0x18] sm:$0xf] %vm769, %v743
      %777 = vst.msk [vmem:[%s401 + $0x1c] sm:$0xf] %vm769, %v744
      %778 = vst.msk [vmem:[%s401 + $0x20] sm:$0xf] %vm769, %v745
      %779 = vst.msk [vmem:[%s401 + $0x24] sm:$0xf] %vm769, %v746
      %780 = vst.msk [vmem:[%s401 + $0x28] sm:$0xf] %vm769, %v747
      %781 = vst.msk [vmem:[%s401 + $0x2c] sm:$0xf] %vm769, %v748
      %782 = vst.msk [vmem:[%s401 + $0x30] sm:$0xf] %vm769, %v749
      %783 = vst.msk [vmem:[%s401 + $0x34] sm:$0xf] %vm769, %v750
      %784 = vst.msk [vmem:[%s401 + $0x38] sm:$0xf] %vm769, %v751
      %785 = vst.msk [vmem:[%s401 + $0x3c] sm:$0xf] %vm769, %v752
      %786 = vst.msk [vmem:[%s401 + $0x40] sm:$0xf] %vm769, %v753
      %787 = vst.msk [vmem:[%s401 + $0x44] sm:$0xf] %vm769, %v754
      %788 = vst.msk [vmem:[%s401 + $0x48] sm:$0xf] %vm769, %v755
      %789 = vst.msk [vmem:[%s401 + $0x4c] sm:$0xf] %vm769, %v756
      %790 = vst.msk [vmem:[%s401 + $0x50] sm:$0xf] %vm769, %v757
      %791 = vst.msk [vmem:[%s401 + $0x54] sm:$0xf] %vm769, %v758
      %792 = vst.msk [vmem:[%s401 + $0x58] sm:$0xf] %vm769, %v759
      %793 = vst.msk [vmem:[%s401 + $0x5c] sm:$0xf] %vm769, %v760
      %794 = vst.msk [vmem:[%s401 + $0x60] sm:$0xf] %vm769, %v761
      %795 = vst.msk [vmem:[%s401 + $0x64] sm:$0xf] %vm769, %v762
      %796 = vst.msk [vmem:[%s401 + $0x68] sm:$0xf] %vm769, %v763
      %797 = vst.msk [vmem:[%s401 + $0x6c] sm:$0xf] %vm769, %v764
      %798 = vst.msk [vmem:[%s401 + $0x70] sm:$0xf] %vm769, %v765
      %799 = vst.msk [vmem:[%s401 + $0x74] sm:$0xf] %vm769, %v766
      %800 = vst.msk [vmem:[%s401 + $0x78] sm:$0xf] %vm769, %v767
      %801 = vst.msk [vmem:[%s401 + $0x7c] sm:$0xf] %vm769, %v768
      %v802 = vrot.slane %v708, 7
      %v803 = vrot.slane %v709, 7
      %v804 = vrot.slane %v604, 7
      %v805 = vrot.slane %v606, 7
      %v806 = vrot.slane %v609, 7
      %v807 = vrot.slane %v611, 7
      %v808 = vrot.slane %v614, 7
      %v809 = vrot.slane %v616, 7
      %v810 = vrot.slane %v619, 7
      %v811 = vrot.slane %v621, 7
      %v812 = vrot.slane %v624, 7
      %v813 = vrot.slane %v626, 7
      %v814 = vrot.slane %v629, 7
      %v815 = vrot.slane %v631, 7
      %v816 = vrot.slane %v634, 7
      %v817 = vrot.slane %v636, 7
      %v818 = vrot.slane %v639, 7
      %v819 = vrot.slane %v641, 7
      %v820 = vrot.slane %v644, 7
      %v821 = vrot.slane %v646, 7
      %v822 = vrot.slane %v649, 7
      %v823 = vrot.slane %v651, 7
      %v824 = vrot.slane %v654, 7
      %v825 = vrot.slane %v656, 7
      %v826 = vrot.slane %v659, 7
      %v827 = vrot.slane %v661, 7
      %v828 = vrot.slane %v664, 7
      %v829 = vrot.slane %v666, 7
      %v830 = vrot.slane %v669, 7
      %v831 = vrot.slane %v671, 7
      %v832 = vrot.slane %v674, 7
      %v833 = vrot.slane %v676, 7
      %v834 = vrot.slane %v679, 7
      %v835 = vrot.slane %v681, 7
      %v836 = vrot.slane %v735, 7
      %v837 = vrot.slane %v736, 7
      %vm838 = vcmp.lt.s32.totalorder %v418, 1
      %v839 = vsel %vm838, %v836, %v837
      %v840 = vsel %vm838, %v835, %v836
      %v841 = vsel %vm838, %v834, %v835
      %v842 = vsel %vm838, %v833, %v834
      %v843 = vsel %vm838, %v832, %v833
      %v844 = vsel %vm838, %v831, %v832
      %v845 = vsel %vm838, %v830, %v831
      %v846 = vsel %vm838, %v829, %v830
      %v847 = vsel %vm838, %v828, %v829
      %v848 = vsel %vm838, %v827, %v828
      %v849 = vsel %vm838, %v826, %v827
      %v850 = vsel %vm838, %v825, %v826
      %v851 = vsel %vm838, %v824, %v825
      %v852 = vsel %vm838, %v823, %v824
      %v853 = vsel %vm838, %v822, %v823
      %v854 = vsel %vm838, %v821, %v822
      %v855 = vsel %vm838, %v820, %v821
      %v856 = vsel %vm838, %v819, %v820
      %v857 = vsel %vm838, %v818, %v819
      %v858 = vsel %vm838, %v817, %v818
      %v859 = vsel %vm838, %v816, %v817
      %v860 = vsel %vm838, %v815, %v816
      %v861 = vsel %vm838, %v814, %v815
      %v862 = vsel %vm838, %v813, %v814
      %v863 = vsel %vm838, %v812, %v813
      %v864 = vsel %vm838, %v811, %v812
      %v865 = vsel %vm838, %v810, %v811
      %v866 = vsel %vm838, %v809, %v810
      %v867 = vsel %vm838, %v808, %v809
      %v868 = vsel %vm838, %v807, %v808
      %v869 = vsel %vm838, %v806, %v807
      %v870 = vsel %vm838, %v805, %v806
      %v871 = vsel %vm838, %v804, %v805
      %v872 = vsel %vm838, %v803, %v804
      %v873 = vsel %vm838, %v802, %v803
      %v874 = vsel %vm838, %v837, %v802
      %v875 = vsel %vm420, %v874, 0.0
      %v876 = vsel %vm421, %v873, 0.0
      %v877 = vsel %vm420, %v872, 0.0
      %v878 = vsel %vm421, %v871, 0.0
      %v879 = vsel %vm420, %v870, 0.0
      %v880 = vsel %vm421, %v869, 0.0
      %v881 = vsel %vm420, %v868, 0.0
      %v882 = vsel %vm421, %v867, 0.0
      %v883 = vsel %vm420, %v866, 0.0
      %v884 = vsel %vm421, %v865, 0.0
      %v885 = vsel %vm420, %v864, 0.0
      %v886 = vsel %vm421, %v863, 0.0
      %v887 = vsel %vm420, %v862, 0.0
      %v888 = vsel %vm421, %v861, 0.0
      %v889 = vsel %vm420, %v860, 0.0
      %v890 = vsel %vm421, %v859, 0.0
      %v891 = vsel %vm420, %v858, 0.0
      %v892 = vsel %vm421, %v857, 0.0
      %v893 = vsel %vm420, %v856, 0.0
      %v894 = vsel %vm421, %v855, 0.0
      %v895 = vsel %vm420, %v854, 0.0
      %v896 = vsel %vm421, %v853, 0.0
      %v897 = vsel %vm420, %v852, 0.0
      %v898 = vsel %vm421, %v851, 0.0
      %v899 = vsel %vm420, %v850, 0.0
      %v900 = vsel %vm421, %v849, 0.0
      %v901 = vsel %vm420, %v848, 0.0
      %v902 = vsel %vm421, %v847, 0.0
      %v903 = vsel %vm420, %v846, 0.0
      %v904 = vsel %vm421, %v845, 0.0
      %v905 = vsel %vm420, %v844, 0.0
      %v906 = vsel %vm421, %v843, 0.0
      %v907 = vsel %vm420, %v842, 0.0
      %v908 = vsel %vm421, %v841, 0.0
      %v909 = vsel %vm420, %v840, 0.0
      %v910 = vsel %vm421, %v839, 0.0
      %v911 = vrot.slane %v708, 1
      %v912 = vrot.slane %v709, 1
      %v913 = vrot.slane %v604, 1
      %v914 = vrot.slane %v606, 1
      %v915 = vrot.slane %v609, 1
      %v916 = vrot.slane %v611, 1
      %v917 = vrot.slane %v614, 1
      %v918 = vrot.slane %v616, 1
      %v919 = vrot.slane %v619, 1
      %v920 = vrot.slane %v621, 1
      %v921 = vrot.slane %v624, 1
      %v922 = vrot.slane %v626, 1
      %v923 = vrot.slane %v629, 1
      %v924 = vrot.slane %v631, 1
      %v925 = vrot.slane %v634, 1
      %v926 = vrot.slane %v636, 1
      %v927 = vrot.slane %v639, 1
      %v928 = vrot.slane %v641, 1
      %v929 = vrot.slane %v644, 1
      %v930 = vrot.slane %v646, 1
      %v931 = vrot.slane %v649, 1
      %v932 = vrot.slane %v651, 1
      %v933 = vrot.slane %v654, 1
      %v934 = vrot.slane %v656, 1
      %v935 = vrot.slane %v659, 1
      %v936 = vrot.slane %v661, 1
      %v937 = vrot.slane %v664, 1
      %v938 = vrot.slane %v666, 1
      %v939 = vrot.slane %v669, 1
      %v940 = vrot.slane %v671, 1
      %v941 = vrot.slane %v674, 1
      %v942 = vrot.slane %v676, 1
      %v943 = vrot.slane %v679, 1
      %v944 = vrot.slane %v681, 1
      %v945 = vrot.slane %v735, 1
      %v946 = vrot.slane %v736, 1
      %vm947 = vcmp.lt.s32.totalorder %v418, 7
      %v948 = vsel %vm947, %v945, %v946
      %v949 = vsel %vm947, %v944, %v945
      %v950 = vsel %vm947, %v943, %v944
      %v951 = vsel %vm947, %v942, %v943
      %v952 = vsel %vm947, %v941, %v942
      %v953 = vsel %vm947, %v940, %v941
      %v954 = vsel %vm947, %v939, %v940
      %v955 = vsel %vm947, %v938, %v939
      %v956 = vsel %vm947, %v937, %v938
      %v957 = vsel %vm947, %v936, %v937
      %v958 = vsel %vm947, %v935, %v936
      %v959 = vsel %vm947, %v934, %v935
      %v960 = vsel %vm947, %v933, %v934
      %v961 = vsel %vm947, %v932, %v933
      %v962 = vsel %vm947, %v931, %v932
      %v963 = vsel %vm947, %v930, %v931
      %v964 = vsel %vm947, %v929, %v930
      %v965 = vsel %vm947, %v928, %v929
      %v966 = vsel %vm947, %v927, %v928
      %v967 = vsel %vm947, %v926, %v927
      %v968 = vsel %vm947, %v925, %v926
      %v969 = vsel %vm947, %v924, %v925
      %v970 = vsel %vm947, %v923, %v924
      %v971 = vsel %vm947, %v922, %v923
      %v972 = vsel %vm947, %v921, %v922
      %v973 = vsel %vm947, %v920, %v921
      %v974 = vsel %vm947, %v919, %v920
      %v975 = vsel %vm947, %v918, %v919
      %v976 = vsel %vm947, %v917, %v918
      %v977 = vsel %vm947, %v916, %v917
      %v978 = vsel %vm947, %v915, %v916
      %v979 = vsel %vm947, %v914, %v915
      %v980 = vsel %vm947, %v913, %v914
      %v981 = vsel %vm947, %v912, %v913
      %v982 = vsel %vm947, %v911, %v912
      %v983 = vsel %vm947, %v946, %v911
      %v984 = vsel %vm422, %v982, 0.0
      %v985 = vsel %vm423, %v981, 0.0
      %v986 = vsel %vm422, %v980, 0.0
      %v987 = vsel %vm423, %v979, 0.0
      %v988 = vsel %vm422, %v978, 0.0
      %v989 = vsel %vm423, %v977, 0.0
      %v990 = vsel %vm422, %v976, 0.0
      %v991 = vsel %vm423, %v975, 0.0
      %v992 = vsel %vm422, %v974, 0.0
      %v993 = vsel %vm423, %v973, 0.0
      %v994 = vsel %vm422, %v972, 0.0
      %v995 = vsel %vm423, %v971, 0.0
      %v996 = vsel %vm422, %v970, 0.0
      %v997 = vsel %vm423, %v969, 0.0
      %v998 = vsel %vm422, %v968, 0.0
      %v999 = vsel %vm423, %v967, 0.0
      %v1000 = vsel %vm422, %v966, 0.0
      %v1001 = vsel %vm423, %v965, 0.0
      %v1002 = vsel %vm422, %v964, 0.0
      %v1003 = vsel %vm423, %v963, 0.0
      %v1004 = vsel %vm422, %v962, 0.0
      %v1005 = vsel %vm423, %v961, 0.0
      %v1006 = vsel %vm422, %v960, 0.0
      %v1007 = vsel %vm423, %v959, 0.0
      %v1008 = vsel %vm422, %v958, 0.0
      %v1009 = vsel %vm423, %v957, 0.0
      %v1010 = vsel %vm422, %v956, 0.0
      %v1011 = vsel %vm423, %v955, 0.0
      %v1012 = vsel %vm422, %v954, 0.0
      %v1013 = vsel %vm423, %v953, 0.0
      %v1014 = vsel %vm422, %v952, 0.0
      %v1015 = vsel %vm423, %v951, 0.0
      %v1016 = vsel %vm422, %v950, 0.0
      %v1017 = vsel %vm423, %v949, 0.0
      %v1018 = vsel %vm422, %v948, 0.0
      %v1019 = vsel %vm423, %v983, 0.0
      %v1020 = vpack.c.bf16 %v875, %v875
      %v1021 = vpack.c.bf16 %v876, %v876
      %v1022 = vpack.c.bf16 %v877, %v877
      %v1023 = vpack.c.bf16 %v878, %v878
      %v1024 = vpack.c.bf16 %v879, %v879
      %v1025 = vpack.c.bf16 %v880, %v880
      %v1026 = vpack.c.bf16 %v881, %v881
      %v1027 = vpack.c.bf16 %v882, %v882
      %v1028 = vpack.c.bf16 %v883, %v883
      %v1029 = vpack.c.bf16 %v884, %v884
      %v1030 = vpack.c.bf16 %v885, %v885
      %v1031 = vpack.c.bf16 %v886, %v886
      %v1032 = vpack.c.bf16 %v887, %v887
      %v1033 = vpack.c.bf16 %v888, %v888
      %v1034 = vpack.c.bf16 %v889, %v889
      %v1035 = vpack.c.bf16 %v890, %v890
      %v1036 = vpack.c.bf16 %v891, %v891
      %v1037 = vpack.c.bf16 %v892, %v892
      %v1038 = vpack.c.bf16 %v893, %v893
      %v1039 = vpack.c.bf16 %v894, %v894
      %v1040 = vpack.c.bf16 %v895, %v895
      %v1041 = vpack.c.bf16 %v896, %v896
      %v1042 = vpack.c.bf16 %v897, %v897
      %v1043 = vpack.c.bf16 %v898, %v898
      %v1044 = vpack.c.bf16 %v899, %v899
      %v1045 = vpack.c.bf16 %v900, %v900
      %v1046 = vpack.c.bf16 %v901, %v901
      %v1047 = vpack.c.bf16 %v902, %v902
      %v1048 = vpack.c.bf16 %v903, %v903
      %v1049 = vpack.c.bf16 %v904, %v904
      %v1050 = vpack.c.bf16 %v905, %v905
      %v1051 = vpack.c.bf16 %v906, %v906
      %v1052 = vpack.c.bf16 %v907, %v907
      %v1053 = vpack.c.bf16 %v908, %v908
      %v1054 = vpack.c.bf16 %v909, %v909
      %v1055 = vpack.c.bf16 %v910, %v910
      %v1056 = vpack.c.bf16 %v708, %v708
      %v1057 = vpack.c.bf16 %v709, %v709
      %v1058 = vpack.c.bf16 %v735, %v735
      %v1059 = vpack.c.bf16 %v736, %v736
      %v1060 = vpack.c.bf16 %v984, %v984
      %v1061 = vpack.c.bf16 %v985, %v985
      %v1062 = vpack.c.bf16 %v986, %v986
      %v1063 = vpack.c.bf16 %v987, %v987
      %v1064 = vpack.c.bf16 %v988, %v988
      %v1065 = vpack.c.bf16 %v989, %v989
      %v1066 = vpack.c.bf16 %v990, %v990
      %v1067 = vpack.c.bf16 %v991, %v991
      %v1068 = vpack.c.bf16 %v992, %v992
      %v1069 = vpack.c.bf16 %v993, %v993
      %v1070 = vpack.c.bf16 %v994, %v994
      %v1071 = vpack.c.bf16 %v995, %v995
      %v1072 = vpack.c.bf16 %v996, %v996
      %v1073 = vpack.c.bf16 %v997, %v997
      %v1074 = vpack.c.bf16 %v998, %v998
      %v1075 = vpack.c.bf16 %v999, %v999
      %v1076 = vpack.c.bf16 %v1000, %v1000
      %v1077 = vpack.c.bf16 %v1001, %v1001
      %v1078 = vpack.c.bf16 %v1002, %v1002
      %v1079 = vpack.c.bf16 %v1003, %v1003
      %v1080 = vpack.c.bf16 %v1004, %v1004
      %v1081 = vpack.c.bf16 %v1005, %v1005
      %v1082 = vpack.c.bf16 %v1006, %v1006
      %v1083 = vpack.c.bf16 %v1007, %v1007
      %v1084 = vpack.c.bf16 %v1008, %v1008
      %v1085 = vpack.c.bf16 %v1009, %v1009
      %v1086 = vpack.c.bf16 %v1010, %v1010
      %v1087 = vpack.c.bf16 %v1011, %v1011
      %v1088 = vpack.c.bf16 %v1012, %v1012
      %v1089 = vpack.c.bf16 %v1013, %v1013
      %v1090 = vpack.c.bf16 %v1014, %v1014
      %v1091 = vpack.c.bf16 %v1015, %v1015
      %v1092 = vpack.c.bf16 %v1016, %v1016
      %v1093 = vpack.c.bf16 %v1017, %v1017
      %v1094 = vpack.c.bf16 %v1018, %v1018
      %v1095 = vpack.c.bf16 %v1019, %v1019
      %v1132 = vunpack.c.l.b16 %v1020
      %v1133 = vunpack.c.l.b16 %v1021
      %v1134 = vunpack.c.l.b16 %v1022
      %v1135 = vunpack.c.l.b16 %v1023
      %v1136 = vunpack.c.l.b16 %v1024
      %v1137 = vunpack.c.l.b16 %v1025
      %v1138 = vunpack.c.l.b16 %v1026
      %v1139 = vunpack.c.l.b16 %v1027
      %v1140 = vunpack.c.l.b16 %v1028
      %v1141 = vunpack.c.l.b16 %v1029
      %v1142 = vunpack.c.l.b16 %v1030
      %v1143 = vunpack.c.l.b16 %v1031
      %v1144 = vunpack.c.l.b16 %v1032
      %v1145 = vunpack.c.l.b16 %v1033
      %v1146 = vunpack.c.l.b16 %v1034
      %v1147 = vunpack.c.l.b16 %v1035
      %v1148 = vunpack.c.l.b16 %v1036
      %v1149 = vunpack.c.l.b16 %v1037
      %v1150 = vunpack.c.l.b16 %v1038
      %v1151 = vunpack.c.l.b16 %v1039
      %v1152 = vunpack.c.l.b16 %v1040
      %v1153 = vunpack.c.l.b16 %v1041
      %v1154 = vunpack.c.l.b16 %v1042
      %v1155 = vunpack.c.l.b16 %v1043
      %v1156 = vunpack.c.l.b16 %v1044
      %v1157 = vunpack.c.l.b16 %v1045
      %v1158 = vunpack.c.l.b16 %v1046
      %v1159 = vunpack.c.l.b16 %v1047
      %v1160 = vunpack.c.l.b16 %v1048
      %v1161 = vunpack.c.l.b16 %v1049
      %v1162 = vunpack.c.l.b16 %v1050
      %v1163 = vunpack.c.l.b16 %v1051
      %v1164 = vunpack.c.l.b16 %v1052
      %v1165 = vunpack.c.l.b16 %v1053
      %v1166 = vunpack.c.l.b16 %v1054
      %v1167 = vunpack.c.l.b16 %v1055
      %v1168 = vpack.c.b16 %v1133, %v1132
      %v1169 = vpack.c.b16 %v1135, %v1134
      %v1170 = vpack.c.b16 %v1137, %v1136
      %v1171 = vpack.c.b16 %v1139, %v1138
      %v1172 = vpack.c.b16 %v1141, %v1140
      %v1173 = vpack.c.b16 %v1143, %v1142
      %v1174 = vpack.c.b16 %v1145, %v1144
      %v1175 = vpack.c.b16 %v1147, %v1146
      %v1176 = vpack.c.b16 %v1149, %v1148
      %v1177 = vpack.c.b16 %v1151, %v1150
      %v1178 = vpack.c.b16 %v1153, %v1152
      %v1179 = vpack.c.b16 %v1155, %v1154
      %v1180 = vpack.c.b16 %v1157, %v1156
      %v1181 = vpack.c.b16 %v1159, %v1158
      %v1182 = vpack.c.b16 %v1161, %v1160
      %v1183 = vpack.c.b16 %v1163, %v1162
      %v1184 = vpack.c.b16 %v1165, %v1164
      %v1185 = vpack.c.b16 %v1167, %v1166
      %v1222 = vunpack.c.l.b16 %v1056
      %v1223 = vunpack.c.l.b16 %v1057
      %v1224 = vunpack.c.l.b16 %v737
      %v1225 = vunpack.c.l.b16 %v738
      %v1226 = vunpack.c.l.b16 %v739
      %v1227 = vunpack.c.l.b16 %v740
      %v1228 = vunpack.c.l.b16 %v741
      %v1229 = vunpack.c.l.b16 %v742
      %v1230 = vunpack.c.l.b16 %v743
      %v1231 = vunpack.c.l.b16 %v744
      %v1232 = vunpack.c.l.b16 %v745
      %v1233 = vunpack.c.l.b16 %v746
      %v1234 = vunpack.c.l.b16 %v747
      %v1235 = vunpack.c.l.b16 %v748
      %v1236 = vunpack.c.l.b16 %v749
      %v1237 = vunpack.c.l.b16 %v750
      %v1238 = vunpack.c.l.b16 %v751
      %v1239 = vunpack.c.l.b16 %v752
      %v1240 = vunpack.c.l.b16 %v753
      %v1241 = vunpack.c.l.b16 %v754
      %v1242 = vunpack.c.l.b16 %v755
      %v1243 = vunpack.c.l.b16 %v756
      %v1244 = vunpack.c.l.b16 %v757
      %v1245 = vunpack.c.l.b16 %v758
      %v1246 = vunpack.c.l.b16 %v759
      %v1247 = vunpack.c.l.b16 %v760
      %v1248 = vunpack.c.l.b16 %v761
      %v1249 = vunpack.c.l.b16 %v762
      %v1250 = vunpack.c.l.b16 %v763
      %v1251 = vunpack.c.l.b16 %v764
      %v1252 = vunpack.c.l.b16 %v765
      %v1253 = vunpack.c.l.b16 %v766
      %v1254 = vunpack.c.l.b16 %v767
      %v1255 = vunpack.c.l.b16 %v768
      %v1256 = vunpack.c.l.b16 %v1058
      %v1257 = vunpack.c.l.b16 %v1059
      %v1258 = vpack.c.b16 %v1223, %v1222
      %v1259 = vpack.c.b16 %v1225, %v1224
      %v1260 = vpack.c.b16 %v1227, %v1226
      %v1261 = vpack.c.b16 %v1229, %v1228
      %v1262 = vpack.c.b16 %v1231, %v1230
      %v1263 = vpack.c.b16 %v1233, %v1232
      %v1264 = vpack.c.b16 %v1235, %v1234
      %v1265 = vpack.c.b16 %v1237, %v1236
      %v1266 = vpack.c.b16 %v1239, %v1238
      %v1267 = vpack.c.b16 %v1241, %v1240
      %v1268 = vpack.c.b16 %v1243, %v1242
      %v1269 = vpack.c.b16 %v1245, %v1244
      %v1270 = vpack.c.b16 %v1247, %v1246
      %v1271 = vpack.c.b16 %v1249, %v1248
      %v1272 = vpack.c.b16 %v1251, %v1250
      %v1273 = vpack.c.b16 %v1253, %v1252
      %v1274 = vpack.c.b16 %v1255, %v1254
      %v1275 = vpack.c.b16 %v1257, %v1256
      %1276 = vrot.lane.b32.xlu0 %v1258, 16
      %v1277 = vpop.permute.xlu0 %1276
      %1278 = vrot.lane.b32.xlu0 %v1259, 16
      %v1279 = vpop.permute.xlu0 %1278
      %1280 = vrot.lane.b32.xlu0 %v1260, 16
      %v1281 = vpop.permute.xlu0 %1280
      %1282 = vrot.lane.b32.xlu0 %v1261, 16
      %v1283 = vpop.permute.xlu0 %1282
      %1284 = vrot.lane.b32.xlu0 %v1262, 16
      %v1285 = vpop.permute.xlu0 %1284
      %1286 = vrot.lane.b32.xlu0 %v1263, 16
      %v1287 = vpop.permute.xlu0 %1286
      %1288 = vrot.lane.b32.xlu0 %v1264, 16
      %v1289 = vpop.permute.xlu0 %1288
      %1290 = vrot.lane.b32.xlu0 %v1265, 16
      %v1291 = vpop.permute.xlu0 %1290
      %1292 = vrot.lane.b32.xlu0 %v1266, 16
      %v1293 = vpop.permute.xlu0 %1292
      %1294 = vrot.lane.b32.xlu0 %v1267, 16
      %v1295 = vpop.permute.xlu0 %1294
      %1296 = vrot.lane.b32.xlu0 %v1268, 16
      %v1297 = vpop.permute.xlu0 %1296
      %1298 = vrot.lane.b32.xlu0 %v1269, 16
      %v1299 = vpop.permute.xlu0 %1298
      %1300 = vrot.lane.b32.xlu0 %v1270, 16
      %v1301 = vpop.permute.xlu0 %1300
      %1302 = vrot.lane.b32.xlu0 %v1271, 16
      %v1303 = vpop.permute.xlu0 %1302
      %1304 = vrot.lane.b32.xlu0 %v1272, 16
      %v1305 = vpop.permute.xlu0 %1304
      %1306 = vrot.lane.b32.xlu0 %v1273, 16
      %v1307 = vpop.permute.xlu0 %1306
      %1308 = vrot.lane.b32.xlu0 %v1274, 16
      %v1309 = vpop.permute.xlu0 %1308
      %1310 = vrot.lane.b32.xlu0 %v1275, 16
      %v1311 = vpop.permute.xlu0 %1310
      %v1348 = vunpack.c.l.b16 %v1060
      %v1349 = vunpack.c.l.b16 %v1061
      %v1350 = vunpack.c.l.b16 %v1062
      %v1351 = vunpack.c.l.b16 %v1063
      %v1352 = vunpack.c.l.b16 %v1064
      %v1353 = vunpack.c.l.b16 %v1065
      %v1354 = vunpack.c.l.b16 %v1066
      %v1355 = vunpack.c.l.b16 %v1067
      %v1356 = vunpack.c.l.b16 %v1068
      %v1357 = vunpack.c.l.b16 %v1069
      %v1358 = vunpack.c.l.b16 %v1070
      %v1359 = vunpack.c.l.b16 %v1071
      %v1360 = vunpack.c.l.b16 %v1072
      %v1361 = vunpack.c.l.b16 %v1073
      %v1362 = vunpack.c.l.b16 %v1074
      %v1363 = vunpack.c.l.b16 %v1075
      %v1364 = vunpack.c.l.b16 %v1076
      %v1365 = vunpack.c.l.b16 %v1077
      %v1366 = vunpack.c.l.b16 %v1078
      %v1367 = vunpack.c.l.b16 %v1079
      %v1368 = vunpack.c.l.b16 %v1080
      %v1369 = vunpack.c.l.b16 %v1081
      %v1370 = vunpack.c.l.b16 %v1082
      %v1371 = vunpack.c.l.b16 %v1083
      %v1372 = vunpack.c.l.b16 %v1084
      %v1373 = vunpack.c.l.b16 %v1085
      %v1374 = vunpack.c.l.b16 %v1086
      %v1375 = vunpack.c.l.b16 %v1087
      %v1376 = vunpack.c.l.b16 %v1088
      %v1377 = vunpack.c.l.b16 %v1089
      %v1378 = vunpack.c.l.b16 %v1090
      %v1379 = vunpack.c.l.b16 %v1091
      %v1380 = vunpack.c.l.b16 %v1092
      %v1381 = vunpack.c.l.b16 %v1093
      %v1382 = vunpack.c.l.b16 %v1094
      %v1383 = vunpack.c.l.b16 %v1095
      %v1384 = vpack.c.b16 %v1349, %v1348
      %v1385 = vpack.c.b16 %v1351, %v1350
      %v1386 = vpack.c.b16 %v1353, %v1352
      %v1387 = vpack.c.b16 %v1355, %v1354
      %v1388 = vpack.c.b16 %v1357, %v1356
      %v1389 = vpack.c.b16 %v1359, %v1358
      %v1390 = vpack.c.b16 %v1361, %v1360
      %v1391 = vpack.c.b16 %v1363, %v1362
      %v1392 = vpack.c.b16 %v1365, %v1364
      %v1393 = vpack.c.b16 %v1367, %v1366
      %v1394 = vpack.c.b16 %v1369, %v1368
      %v1395 = vpack.c.b16 %v1371, %v1370
      %v1396 = vpack.c.b16 %v1373, %v1372
      %v1397 = vpack.c.b16 %v1375, %v1374
      %v1398 = vpack.c.b16 %v1377, %v1376
      %v1399 = vpack.c.b16 %v1379, %v1378
      %v1400 = vpack.c.b16 %v1381, %v1380
      %v1401 = vpack.c.b16 %v1383, %v1382
      %1402 = vrot.lane.b32.xlu0 %v1384, 32
      %v1403 = vpop.permute.xlu0 %1402
      %1404 = vrot.lane.b32.xlu0 %v1385, 32
      %v1405 = vpop.permute.xlu0 %1404
      %1406 = vrot.lane.b32.xlu0 %v1386, 32
      %v1407 = vpop.permute.xlu0 %1406
      %1408 = vrot.lane.b32.xlu0 %v1387, 32
      %v1409 = vpop.permute.xlu0 %1408
      %1410 = vrot.lane.b32.xlu0 %v1388, 32
      %v1411 = vpop.permute.xlu0 %1410
      %1412 = vrot.lane.b32.xlu0 %v1389, 32
      %v1413 = vpop.permute.xlu0 %1412
      %1414 = vrot.lane.b32.xlu0 %v1390, 32
      %v1415 = vpop.permute.xlu0 %1414
      %1416 = vrot.lane.b32.xlu0 %v1391, 32
      %v1417 = vpop.permute.xlu0 %1416
      %1418 = vrot.lane.b32.xlu0 %v1392, 32
      %v1419 = vpop.permute.xlu0 %1418
      %1420 = vrot.lane.b32.xlu0 %v1393, 32
      %v1421 = vpop.permute.xlu0 %1420
      %1422 = vrot.lane.b32.xlu0 %v1394, 32
      %v1423 = vpop.permute.xlu0 %1422
      %1424 = vrot.lane.b32.xlu0 %v1395, 32
      %v1425 = vpop.permute.xlu0 %1424
      %1426 = vrot.lane.b32.xlu0 %v1396, 32
      %v1427 = vpop.permute.xlu0 %1426
      %1428 = vrot.lane.b32.xlu0 %v1397, 32
      %v1429 = vpop.permute.xlu0 %1428
      %1430 = vrot.lane.b32.xlu0 %v1398, 32
      %v1431 = vpop.permute.xlu0 %1430
      %1432 = vrot.lane.b32.xlu0 %v1399, 32
      %v1433 = vpop.permute.xlu0 %1432
      %1434 = vrot.lane.b32.xlu0 %v1400, 32
      %v1435 = vpop.permute.xlu0 %1434
      %1436 = vrot.lane.b32.xlu0 %v1401, 32
      %v1437 = vpop.permute.xlu0 %1436
      %vm1438 = vcmask 130048
      %v1441 = vsel %vm1438, %v1168, %v1277
      %v1444 = vsel %vm1438, %v1169, %v1279
      %v1447 = vsel %vm1438, %v1170, %v1281
      %v1450 = vsel %vm1438, %v1171, %v1283
      %v1453 = vsel %vm1438, %v1172, %v1285
      %v1456 = vsel %vm1438, %v1173, %v1287
      %v1459 = vsel %vm1438, %v1174, %v1289
      %v1462 = vsel %vm1438, %v1175, %v1291
      %v1465 = vsel %vm1438, %v1176, %v1293
      %v1468 = vsel %vm1438, %v1177, %v1295
      %v1471 = vsel %vm1438, %v1178, %v1297
      %v1474 = vsel %vm1438, %v1179, %v1299
      %v1477 = vsel %vm1438, %v1180, %v1301
      %v1480 = vsel %vm1438, %v1181, %v1303
      %v1483 = vsel %vm1438, %v1182, %v1305
      %v1486 = vsel %vm1438, %v1183, %v1307
      %v1489 = vsel %vm1438, %v1184, %v1309
      %v1492 = vsel %vm1438, %v1185, %v1311
      %vm1493 = vcmask 261120
      %v1495 = vsel %vm1493, %v1441, %v1403
      %v1497 = vsel %vm1493, %v1444, %v1405
      %v1499 = vsel %vm1493, %v1447, %v1407
      %v1501 = vsel %vm1493, %v1450, %v1409
      %v1503 = vsel %vm1493, %v1453, %v1411
      %v1505 = vsel %vm1493, %v1456, %v1413
      %v1507 = vsel %vm1493, %v1459, %v1415
      %v1509 = vsel %vm1493, %v1462, %v1417
      %v1511 = vsel %vm1493, %v1465, %v1419
      %v1513 = vsel %vm1493, %v1468, %v1421
      %v1515 = vsel %vm1493, %v1471, %v1423
      %v1517 = vsel %vm1493, %v1474, %v1425
      %v1519 = vsel %vm1493, %v1477, %v1427
      %v1521 = vsel %vm1493, %v1480, %v1429
      %v1523 = vsel %vm1493, %v1483, %v1431
      %v1525 = vsel %vm1493, %v1486, %v1433
      %v1527 = vsel %vm1493, %v1489, %v1435
      %v1529 = vsel %vm1493, %v1492, %v1437
      %v1530 = vld [vmem:[%s5] sm:$0xf]
      %v1531 = vld [vmem:[%s5 + $0x4] sm:$0xf]
      %v1532 = vld [vmem:[%s5 + $0x8] sm:$0xf]
      %v1533 = vld [vmem:[%s5 + $0xc] sm:$0xf]
      %v1534 = vld [vmem:[%s5 + $0x10] sm:$0xf]
      %v1535 = vld [vmem:[%s5 + $0x14] sm:$0xf]
      %s1536 = scalar_lea.vmem %s5, 24
      %v1537 = vld [vmem:[%s1536] sm:$0xf]
      %v1538 = vld [vmem:[%s1536 + $0x4] sm:$0xf]
      %v1539 = vld [vmem:[%s1536 + $0x8] sm:$0xf]
      %v1540 = vld [vmem:[%s1536 + $0xc] sm:$0xf]
      %v1541 = vld [vmem:[%s1536 + $0x10] sm:$0xf]
      %v1542 = vld [vmem:[%s1536 + $0x14] sm:$0xf]
      %v1549 = vunpack.c.l.b16 %v1537
      %v1550 = vunpack.c.l.b16 %v1538
      %v1551 = vunpack.c.l.b16 %v1539
      %v1552 = vunpack.c.l.b16 %v1540
      %v1553 = vunpack.c.l.b16 %v1541
      %v1554 = vunpack.c.l.b16 %v1542
      %v1555 = vpack.c.b16 %v1550, %v1549
      %v1556 = vpack.c.b16 %v1552, %v1551
      %v1557 = vpack.c.b16 %v1554, %v1553
      %vm1561 = vcmask 392192
      %v1562 = vsel %vm1561, %v1497, 0
      %v1564 = vsel %vm1561, %v1499, 0
      %v1566 = vsel %vm1561, %v1501, 0
      %v1568 = vsel %vm1561, %v1503, 0
      %v1570 = vsel %vm1561, %v1505, 0
      %v1572 = vsel %vm1561, %v1507, 0
      %v1574 = vsel %vm1561, %v1509, 0
      %v1576 = vsel %vm1561, %v1511, 0
      %v1578 = vsel %vm1561, %v1513, 0
      %v1580 = vsel %vm1561, %v1515, 0
      %v1582 = vsel %vm1561, %v1517, 0
      %v1584 = vsel %vm1561, %v1519, 0
      %v1586 = vsel %vm1561, %v1521, 0
      %v1588 = vsel %vm1561, %v1523, 0
      %v1590 = vsel %vm1561, %v1525, 0
      %v1592 = vsel %vm1561, %v1527, 0
      %1594 = vmatpush.bf16.msra.mxu0 0
      %1595 = vmatpush.bf16.msra.mxu0 0
      %1596 = vmatpush.bf16.msra.mxu0 0
      %1597 = vmatpush.bf16.msra.mxu0 0
      %1598 = vmatpush.bf16.msra.mxu0 0
      %1599 = vmatpush.bf16.msra.mxu0 %v1557
      %1600 = vmatpush.bf16.msra.mxu0 %v1556
      %1601 = vmatpush.bf16.msra.mxu0 %v1555
      %1602 = vmatmul.bf16.gmra.mxu0 %v1562
      %v1603 = vpop.f32.mrf.mxu0
      %v1604 = vadd.f32 0.0, %v1603
      %v1605 = vpop.f32.mrf.mxu0
      %v1606 = vadd.f32 0.0, %v1605
      %1607 = vmatmul.bf16.gmra.mxu0 %v1564
      %v1608 = vpop.f32.mrf.mxu0
      %v1609 = vadd.f32 0.0, %v1608
      %v1610 = vpop.f32.mrf.mxu0
      %v1611 = vadd.f32 0.0, %v1610
      %1612 = vmatmul.bf16.gmra.mxu0 %v1566
      %v1613 = vpop.f32.mrf.mxu0
      %v1614 = vadd.f32 0.0, %v1613
      %v1615 = vpop.f32.mrf.mxu0
      %v1616 = vadd.f32 0.0, %v1615
      %1617 = vmatmul.bf16.gmra.mxu0 %v1568
      %v1618 = vpop.f32.mrf.mxu0
      %v1619 = vadd.f32 0.0, %v1618
      %v1620 = vpop.f32.mrf.mxu0
      %v1621 = vadd.f32 0.0, %v1620
      %1622 = vmatmul.bf16.gmra.mxu0 %v1570
      %v1623 = vpop.f32.mrf.mxu0
      %v1624 = vadd.f32 0.0, %v1623
      %v1625 = vpop.f32.mrf.mxu0
      %v1626 = vadd.f32 0.0, %v1625
      %1627 = vmatmul.bf16.gmra.mxu0 %v1572
      %v1628 = vpop.f32.mrf.mxu0
      %v1629 = vadd.f32 0.0, %v1628
      %v1630 = vpop.f32.mrf.mxu0
      %v1631 = vadd.f32 0.0, %v1630
      %1632 = vmatmul.bf16.gmra.mxu0 %v1574
      %v1633 = vpop.f32.mrf.mxu0
      %v1634 = vadd.f32 0.0, %v1633
      %v1635 = vpop.f32.mrf.mxu0
      %v1636 = vadd.f32 0.0, %v1635
      %1637 = vmatmul.bf16.gmra.mxu0 %v1576
      %v1638 = vpop.f32.mrf.mxu0
      %v1639 = vadd.f32 0.0, %v1638
      %v1640 = vpop.f32.mrf.mxu0
      %v1641 = vadd.f32 0.0, %v1640
      %1642 = vmatmul.bf16.gmra.mxu0 %v1578
      %v1643 = vpop.f32.mrf.mxu0
      %v1644 = vadd.f32 0.0, %v1643
      %v1645 = vpop.f32.mrf.mxu0
      %v1646 = vadd.f32 0.0, %v1645
      %1647 = vmatmul.bf16.gmra.mxu0 %v1580
      %v1648 = vpop.f32.mrf.mxu0
      %v1649 = vadd.f32 0.0, %v1648
      %v1650 = vpop.f32.mrf.mxu0
      %v1651 = vadd.f32 0.0, %v1650
      %1652 = vmatmul.bf16.gmra.mxu0 %v1582
      %v1653 = vpop.f32.mrf.mxu0
      %v1654 = vadd.f32 0.0, %v1653
      %v1655 = vpop.f32.mrf.mxu0
      %v1656 = vadd.f32 0.0, %v1655
      %1657 = vmatmul.bf16.gmra.mxu0 %v1584
      %v1658 = vpop.f32.mrf.mxu0
      %v1659 = vadd.f32 0.0, %v1658
      %v1660 = vpop.f32.mrf.mxu0
      %v1661 = vadd.f32 0.0, %v1660
      %1662 = vmatmul.bf16.gmra.mxu0 %v1586
      %v1663 = vpop.f32.mrf.mxu0
      %v1664 = vadd.f32 0.0, %v1663
      %v1665 = vpop.f32.mrf.mxu0
      %v1666 = vadd.f32 0.0, %v1665
      %1667 = vmatmul.bf16.gmra.mxu0 %v1588
      %v1668 = vpop.f32.mrf.mxu0
      %v1669 = vadd.f32 0.0, %v1668
      %v1670 = vpop.f32.mrf.mxu0
      %v1671 = vadd.f32 0.0, %v1670
      %1672 = vmatmul.bf16.gmra.mxu0 %v1590
      %v1673 = vpop.f32.mrf.mxu0
      %v1674 = vadd.f32 0.0, %v1673
      %v1675 = vpop.f32.mrf.mxu0
      %v1676 = vadd.f32 0.0, %v1675
      %1677 = vmatmul.bf16.gmra.mxu0 %v1592
      %v1678 = vpop.f32.mrf.mxu0
      %v1679 = vadd.f32 0.0, %v1678
      %v1680 = vpop.f32.mrf.mxu0
      %v1681 = vadd.f32 0.0, %v1680
      %1682 = vdwg.mxu0
      %v1689 = vunpack.c.l.b16 %v1530
      %v1690 = vunpack.c.l.b16 %v1531
      %v1691 = vunpack.c.l.b16 %v1532
      %v1692 = vunpack.c.l.b16 %v1533
      %v1693 = vunpack.c.l.b16 %v1534
      %v1694 = vunpack.c.l.b16 %v1535
      %v1695 = vpack.c.b16 %v1690, %v1689
      %v1696 = vpack.c.b16 %v1692, %v1691
      %v1697 = vpack.c.b16 %v1694, %v1693
      %v1701 = vsel %vm1561, %v1495, 0
      %1703 = vmatpush.bf16.msra.mxu0 0
      %1704 = vmatpush.bf16.msra.mxu0 0
      %1705 = vmatpush.bf16.msra.mxu0 0
      %1706 = vmatpush.bf16.msra.mxu0 0
      %1707 = vmatpush.bf16.msra.mxu0 0
      %1708 = vmatpush.bf16.msra.mxu0 %v1697
      %1709 = vmatpush.bf16.msra.mxu0 %v1696
      %1710 = vmatpush.bf16.msra.mxu0 %v1695
      %1711 = vmatmul.bf16.gmra.mxu0 %v1701
      %v1712 = vpop.f32.mrf.mxu0
      %v1713 = vadd.f32 %v1604, %v1712
      %v1714 = vpop.f32.mrf.mxu0
      %v1715 = vadd.f32 %v1606, %v1714
      %1716 = vmatmul.bf16.gmra.mxu0 %v1562
      %v1717 = vpop.f32.mrf.mxu0
      %v1718 = vadd.f32 %v1609, %v1717
      %v1719 = vpop.f32.mrf.mxu0
      %v1720 = vadd.f32 %v1611, %v1719
      %1721 = vmatmul.bf16.gmra.mxu0 %v1564
      %v1722 = vpop.f32.mrf.mxu0
      %v1723 = vadd.f32 %v1614, %v1722
      %v1724 = vpop.f32.mrf.mxu0
      %v1725 = vadd.f32 %v1616, %v1724
      %1726 = vmatmul.bf16.gmra.mxu0 %v1566
      %v1727 = vpop.f32.mrf.mxu0
      %v1728 = vadd.f32 %v1619, %v1727
      %v1729 = vpop.f32.mrf.mxu0
      %v1730 = vadd.f32 %v1621, %v1729
      %1731 = vmatmul.bf16.gmra.mxu0 %v1568
      %v1732 = vpop.f32.mrf.mxu0
      %v1733 = vadd.f32 %v1624, %v1732
      %v1734 = vpop.f32.mrf.mxu0
      %v1735 = vadd.f32 %v1626, %v1734
      %1736 = vmatmul.bf16.gmra.mxu0 %v1570
      %v1737 = vpop.f32.mrf.mxu0
      %v1738 = vadd.f32 %v1629, %v1737
      %v1739 = vpop.f32.mrf.mxu0
      %v1740 = vadd.f32 %v1631, %v1739
      %1741 = vmatmul.bf16.gmra.mxu0 %v1572
      %v1742 = vpop.f32.mrf.mxu0
      %v1743 = vadd.f32 %v1634, %v1742
      %v1744 = vpop.f32.mrf.mxu0
      %v1745 = vadd.f32 %v1636, %v1744
      %1746 = vmatmul.bf16.gmra.mxu0 %v1574
      %v1747 = vpop.f32.mrf.mxu0
      %v1748 = vadd.f32 %v1639, %v1747
      %v1749 = vpop.f32.mrf.mxu0
      %v1750 = vadd.f32 %v1641, %v1749
      %1751 = vmatmul.bf16.gmra.mxu0 %v1576
      %v1752 = vpop.f32.mrf.mxu0
      %v1753 = vadd.f32 %v1644, %v1752
      %v1754 = vpop.f32.mrf.mxu0
      %v1755 = vadd.f32 %v1646, %v1754
      %1756 = vmatmul.bf16.gmra.mxu0 %v1578
      %v1757 = vpop.f32.mrf.mxu0
      %v1758 = vadd.f32 %v1649, %v1757
      %v1759 = vpop.f32.mrf.mxu0
      %v1760 = vadd.f32 %v1651, %v1759
      %1761 = vmatmul.bf16.gmra.mxu0 %v1580
      %v1762 = vpop.f32.mrf.mxu0
      %v1763 = vadd.f32 %v1654, %v1762
      %v1764 = vpop.f32.mrf.mxu0
      %v1765 = vadd.f32 %v1656, %v1764
      %1766 = vmatmul.bf16.gmra.mxu0 %v1582
      %v1767 = vpop.f32.mrf.mxu0
      %v1768 = vadd.f32 %v1659, %v1767
      %v1769 = vpop.f32.mrf.mxu0
      %v1770 = vadd.f32 %v1661, %v1769
      %1771 = vmatmul.bf16.gmra.mxu0 %v1584
      %v1772 = vpop.f32.mrf.mxu0
      %v1773 = vadd.f32 %v1664, %v1772
      %v1774 = vpop.f32.mrf.mxu0
      %v1775 = vadd.f32 %v1666, %v1774
      %1776 = vmatmul.bf16.gmra.mxu0 %v1586
      %v1777 = vpop.f32.mrf.mxu0
      %v1778 = vadd.f32 %v1669, %v1777
      %v1779 = vpop.f32.mrf.mxu0
      %v1780 = vadd.f32 %v1671, %v1779
      %1781 = vmatmul.bf16.gmra.mxu0 %v1588
      %v1782 = vpop.f32.mrf.mxu0
      %v1783 = vadd.f32 %v1674, %v1782
      %v1784 = vpop.f32.mrf.mxu0
      %v1785 = vadd.f32 %v1676, %v1784
      %1786 = vmatmul.bf16.gmra.mxu0 %v1590
      %v1787 = vpop.f32.mrf.mxu0
      %v1788 = vadd.f32 %v1679, %v1787
      %v1789 = vpop.f32.mrf.mxu0
      %v1790 = vadd.f32 %v1681, %v1789
      %1791 = vdwg.mxu0
      %s1792 = scalar_lea.vmem %s5, 48
      %v1793 = vld [vmem:[%s1792] sm:$0xf]
      %v1794 = vld [vmem:[%s1792 + $0x4] sm:$0xf]
      %v1795 = vld [vmem:[%s1792 + $0x8] sm:$0xf]
      %v1796 = vld [vmem:[%s1792 + $0xc] sm:$0xf]
      %v1797 = vld [vmem:[%s1792 + $0x10] sm:$0xf]
      %v1798 = vld [vmem:[%s1792 + $0x14] sm:$0xf]
      %v1805 = vunpack.c.l.b16 %v1793
      %v1806 = vunpack.c.l.b16 %v1794
      %v1807 = vunpack.c.l.b16 %v1795
      %v1808 = vunpack.c.l.b16 %v1796
      %v1809 = vunpack.c.l.b16 %v1797
      %v1810 = vunpack.c.l.b16 %v1798
      %v1811 = vpack.c.b16 %v1806, %v1805
      %v1812 = vpack.c.b16 %v1808, %v1807
      %v1813 = vpack.c.b16 %v1810, %v1809
      %v1817 = vsel %vm1561, %v1529, 0
      %1819 = vmatpush.bf16.msra.mxu0 0
      %1820 = vmatpush.bf16.msra.mxu0 0
      %1821 = vmatpush.bf16.msra.mxu0 0
      %1822 = vmatpush.bf16.msra.mxu0 0
      %1823 = vmatpush.bf16.msra.mxu0 0
      %1824 = vmatpush.bf16.msra.mxu0 %v1813
      %1825 = vmatpush.bf16.msra.mxu0 %v1812
      %1826 = vmatpush.bf16.msra.mxu0 %v1811
      %1827 = vmatmul.bf16.gmra.mxu0 %v1564
      %v1828 = vpop.f32.mrf.mxu0
      %v1829 = vadd.f32 0.0, %v1828
      %v1830 = vpop.f32.mrf.mxu0
      %v1831 = vadd.f32 0.0, %v1830
      %1832 = vmatmul.bf16.gmra.mxu0 %v1566
      %v1833 = vpop.f32.mrf.mxu0
      %v1834 = vadd.f32 0.0, %v1833
      %v1835 = vpop.f32.mrf.mxu0
      %v1836 = vadd.f32 0.0, %v1835
      %1837 = vmatmul.bf16.gmra.mxu0 %v1568
      %v1838 = vpop.f32.mrf.mxu0
      %v1839 = vadd.f32 0.0, %v1838
      %v1840 = vpop.f32.mrf.mxu0
      %v1841 = vadd.f32 0.0, %v1840
      %1842 = vmatmul.bf16.gmra.mxu0 %v1570
      %v1843 = vpop.f32.mrf.mxu0
      %v1844 = vadd.f32 0.0, %v1843
      %v1845 = vpop.f32.mrf.mxu0
      %v1846 = vadd.f32 0.0, %v1845
      %1847 = vmatmul.bf16.gmra.mxu0 %v1572
      %v1848 = vpop.f32.mrf.mxu0
      %v1849 = vadd.f32 0.0, %v1848
      %v1850 = vpop.f32.mrf.mxu0
      %v1851 = vadd.f32 0.0, %v1850
      %1852 = vmatmul.bf16.gmra.mxu0 %v1574
      %v1853 = vpop.f32.mrf.mxu0
      %v1854 = vadd.f32 0.0, %v1853
      %v1855 = vpop.f32.mrf.mxu0
      %v1856 = vadd.f32 0.0, %v1855
      %1857 = vmatmul.bf16.gmra.mxu0 %v1576
      %v1858 = vpop.f32.mrf.mxu0
      %v1859 = vadd.f32 0.0, %v1858
      %v1860 = vpop.f32.mrf.mxu0
      %v1861 = vadd.f32 0.0, %v1860
      %1862 = vmatmul.bf16.gmra.mxu0 %v1578
      %v1863 = vpop.f32.mrf.mxu0
      %v1864 = vadd.f32 0.0, %v1863
      %v1865 = vpop.f32.mrf.mxu0
      %v1866 = vadd.f32 0.0, %v1865
      %1867 = vmatmul.bf16.gmra.mxu0 %v1580
      %v1868 = vpop.f32.mrf.mxu0
      %v1869 = vadd.f32 0.0, %v1868
      %v1870 = vpop.f32.mrf.mxu0
      %v1871 = vadd.f32 0.0, %v1870
      %1872 = vmatmul.bf16.gmra.mxu0 %v1582
      %v1873 = vpop.f32.mrf.mxu0
      %v1874 = vadd.f32 0.0, %v1873
      %v1875 = vpop.f32.mrf.mxu0
      %v1876 = vadd.f32 0.0, %v1875
      %1877 = vmatmul.bf16.gmra.mxu0 %v1584
      %v1878 = vpop.f32.mrf.mxu0
      %v1879 = vadd.f32 0.0, %v1878
      %v1880 = vpop.f32.mrf.mxu0
      %v1881 = vadd.f32 0.0, %v1880
      %1882 = vmatmul.bf16.gmra.mxu0 %v1586
      %v1883 = vpop.f32.mrf.mxu0
      %v1884 = vadd.f32 0.0, %v1883
      %v1885 = vpop.f32.mrf.mxu0
      %v1886 = vadd.f32 0.0, %v1885
      %1887 = vmatmul.bf16.gmra.mxu0 %v1588
      %v1888 = vpop.f32.mrf.mxu0
      %v1889 = vadd.f32 0.0, %v1888
      %v1890 = vpop.f32.mrf.mxu0
      %v1891 = vadd.f32 0.0, %v1890
      %1892 = vmatmul.bf16.gmra.mxu0 %v1590
      %v1893 = vpop.f32.mrf.mxu0
      %v1894 = vadd.f32 0.0, %v1893
      %v1895 = vpop.f32.mrf.mxu0
      %v1896 = vadd.f32 0.0, %v1895
      %1897 = vmatmul.bf16.gmra.mxu0 %v1592
      %v1898 = vpop.f32.mrf.mxu0
      %v1899 = vadd.f32 0.0, %v1898
      %v1900 = vpop.f32.mrf.mxu0
      %v1901 = vadd.f32 0.0, %v1900
      %1902 = vmatmul.bf16.gmra.mxu0 %v1817
      %v1903 = vpop.f32.mrf.mxu0
      %v1904 = vadd.f32 0.0, %v1903
      %v1905 = vpop.f32.mrf.mxu0
      %v1906 = vadd.f32 0.0, %v1905
      %1907 = vdwg.mxu0
      %v1908 = vadd.f32 %v1713, %v1829
      %v1909 = vadd.f32 %v1715, %v1831
      %v1910 = vadd.f32 %v1718, %v1834
      %v1911 = vadd.f32 %v1720, %v1836
      %v1912 = vadd.f32 %v1723, %v1839
      %v1913 = vadd.f32 %v1725, %v1841
      %v1914 = vadd.f32 %v1728, %v1844
      %v1915 = vadd.f32 %v1730, %v1846
      %v1916 = vadd.f32 %v1733, %v1849
      %v1917 = vadd.f32 %v1735, %v1851
      %v1918 = vadd.f32 %v1738, %v1854
      %v1919 = vadd.f32 %v1740, %v1856
      %v1920 = vadd.f32 %v1743, %v1859
      %v1921 = vadd.f32 %v1745, %v1861
      %v1922 = vadd.f32 %v1748, %v1864
      %v1923 = vadd.f32 %v1750, %v1866
      %v1924 = vadd.f32 %v1753, %v1869
      %v1925 = vadd.f32 %v1755, %v1871
      %v1926 = vadd.f32 %v1758, %v1874
      %v1927 = vadd.f32 %v1760, %v1876
      %v1928 = vadd.f32 %v1763, %v1879
      %v1929 = vadd.f32 %v1765, %v1881
      %v1930 = vadd.f32 %v1768, %v1884
      %v1931 = vadd.f32 %v1770, %v1886
      %v1932 = vadd.f32 %v1773, %v1889
      %v1933 = vadd.f32 %v1775, %v1891
      %v1934 = vadd.f32 %v1778, %v1894
      %v1935 = vadd.f32 %v1780, %v1896
      %v1936 = vadd.f32 %v1783, %v1899
      %v1937 = vadd.f32 %v1785, %v1901
      %v1938 = vadd.f32 %v1788, %v1904
      %v1939 = vadd.f32 %v1790, %v1906
      %v1940 = vsel %vm1438, %v1908, 0.0
      %v1941 = vsel %vm1438, %v1909, 0.0
      %v1942 = vadd.f32 %v1940, %v1941
      %v1943 = vsel %vm1438, %v1910, 0.0
      %v1944 = vadd.f32 %v1942, %v1943
      %v1945 = vsel %vm1438, %v1911, 0.0
      %v1946 = vadd.f32 %v1944, %v1945
      %v1947 = vsel %vm1438, %v1912, 0.0
      %v1948 = vadd.f32 %v1946, %v1947
      %v1949 = vsel %vm1438, %v1913, 0.0
      %v1950 = vadd.f32 %v1948, %v1949
      %v1951 = vsel %vm1438, %v1914, 0.0
      %v1952 = vadd.f32 %v1950, %v1951
      %v1953 = vsel %vm1438, %v1915, 0.0
      %v1954 = vadd.f32 %v1952, %v1953
      %v1955 = vsel %vm1438, %v1916, 0.0
      %v1956 = vadd.f32 %v1954, %v1955
      %v1957 = vsel %vm1438, %v1917, 0.0
      %v1958 = vadd.f32 %v1956, %v1957
      %v1959 = vsel %vm1438, %v1918, 0.0
      %v1960 = vadd.f32 %v1958, %v1959
      %v1961 = vsel %vm1438, %v1919, 0.0
      %v1962 = vadd.f32 %v1960, %v1961
      %v1963 = vsel %vm1438, %v1920, 0.0
      %v1964 = vadd.f32 %v1962, %v1963
      %v1965 = vsel %vm1438, %v1921, 0.0
      %v1966 = vadd.f32 %v1964, %v1965
      %v1967 = vsel %vm1438, %v1922, 0.0
      %v1968 = vadd.f32 %v1966, %v1967
      %v1969 = vsel %vm1438, %v1923, 0.0
      %v1970 = vadd.f32 %v1968, %v1969
      %v1971 = vsel %vm1438, %v1924, 0.0
      %v1972 = vadd.f32 %v1970, %v1971
      %v1973 = vsel %vm1438, %v1925, 0.0
      %v1974 = vadd.f32 %v1972, %v1973
      %v1975 = vsel %vm1438, %v1926, 0.0
      %v1976 = vadd.f32 %v1974, %v1975
      %v1977 = vsel %vm1438, %v1927, 0.0
      %v1978 = vadd.f32 %v1976, %v1977
      %v1979 = vsel %vm1438, %v1928, 0.0
      %v1980 = vadd.f32 %v1978, %v1979
      %v1981 = vsel %vm1438, %v1929, 0.0
      %v1982 = vadd.f32 %v1980, %v1981
      %v1983 = vsel %vm1438, %v1930, 0.0
      %v1984 = vadd.f32 %v1982, %v1983
      %v1985 = vsel %vm1438, %v1931, 0.0
      %v1986 = vadd.f32 %v1984, %v1985
      %v1987 = vsel %vm1438, %v1932, 0.0
      %v1988 = vadd.f32 %v1986, %v1987
      %v1989 = vsel %vm1438, %v1933, 0.0
      %v1990 = vadd.f32 %v1988, %v1989
      %v1991 = vsel %vm1438, %v1934, 0.0
      %v1992 = vadd.f32 %v1990, %v1991
      %v1993 = vsel %vm1438, %v1935, 0.0
      %v1994 = vadd.f32 %v1992, %v1993
      %v1995 = vsel %vm1438, %v1936, 0.0
      %v1996 = vadd.f32 %v1994, %v1995
      %v1997 = vsel %vm1438, %v1937, 0.0
      %v1998 = vadd.f32 %v1996, %v1997
      %v1999 = vsel %vm1438, %v1938, 0.0
      %v2000 = vadd.f32 %v1998, %v1999
      %v2001 = vsel %vm1438, %v1939, 0.0
      %v2002 = vadd.f32 %v2000, %v2001
      %v2003 = vrot.slane %v2002, 4
      %v2004 = vadd.f32 %v2002, %v2003
      %v2005 = vrot.slane %v2004, 2
      %v2006 = vadd.f32 %v2004, %v2005
      %v2007 = vrot.slane %v2006, 1
      %v2008 = vadd.f32 %v2006, %v2007
      %v2009 = vmul.f32 %v1908, %v1908
      %v2010 = vmul.f32 %v1909, %v1909
      %v2011 = vmul.f32 %v1910, %v1910
      %v2012 = vmul.f32 %v1911, %v1911
      %v2013 = vmul.f32 %v1912, %v1912
      %v2014 = vmul.f32 %v1913, %v1913
      %v2015 = vmul.f32 %v1914, %v1914
      %v2016 = vmul.f32 %v1915, %v1915
      %v2017 = vmul.f32 %v1916, %v1916
      %v2018 = vmul.f32 %v1917, %v1917
      %v2019 = vmul.f32 %v1918, %v1918
      %v2020 = vmul.f32 %v1919, %v1919
      %v2021 = vmul.f32 %v1920, %v1920
      %v2022 = vmul.f32 %v1921, %v1921
      %v2023 = vmul.f32 %v1922, %v1922
      %v2024 = vmul.f32 %v1923, %v1923
      %v2025 = vmul.f32 %v1924, %v1924
      %v2026 = vmul.f32 %v1925, %v1925
      %v2027 = vmul.f32 %v1926, %v1926
      %v2028 = vmul.f32 %v1927, %v1927
      %v2029 = vmul.f32 %v1928, %v1928
      %v2030 = vmul.f32 %v1929, %v1929
      %v2031 = vmul.f32 %v1930, %v1930
      %v2032 = vmul.f32 %v1931, %v1931
      %v2033 = vmul.f32 %v1932, %v1932
      %v2034 = vmul.f32 %v1933, %v1933
      %v2035 = vmul.f32 %v1934, %v1934
      %v2036 = vmul.f32 %v1935, %v1935
      %v2037 = vmul.f32 %v1936, %v1936
      %v2038 = vmul.f32 %v1937, %v1937
      %v2039 = vmul.f32 %v1938, %v1938
      %v2040 = vmul.f32 %v1939, %v1939
      %v2041 = vsel %vm1438, %v2009, 0.0
      %v2042 = vsel %vm1438, %v2010, 0.0
      %v2043 = vadd.f32 %v2041, %v2042
      %v2044 = vsel %vm1438, %v2011, 0.0
      %v2045 = vadd.f32 %v2043, %v2044
      %v2046 = vsel %vm1438, %v2012, 0.0
      %v2047 = vadd.f32 %v2045, %v2046
      %v2048 = vsel %vm1438, %v2013, 0.0
      %v2049 = vadd.f32 %v2047, %v2048
      %v2050 = vsel %vm1438, %v2014, 0.0
      %v2051 = vadd.f32 %v2049, %v2050
      %v2052 = vsel %vm1438, %v2015, 0.0
      %v2053 = vadd.f32 %v2051, %v2052
      %v2054 = vsel %vm1438, %v2016, 0.0
      %v2055 = vadd.f32 %v2053, %v2054
      %v2056 = vsel %vm1438, %v2017, 0.0
      %v2057 = vadd.f32 %v2055, %v2056
      %v2058 = vsel %vm1438, %v2018, 0.0
      %v2059 = vadd.f32 %v2057, %v2058
      %v2060 = vsel %vm1438, %v2019, 0.0
      %v2061 = vadd.f32 %v2059, %v2060
      %v2062 = vsel %vm1438, %v2020, 0.0
      %v2063 = vadd.f32 %v2061, %v2062
      %v2064 = vsel %vm1438, %v2021, 0.0
      %v2065 = vadd.f32 %v2063, %v2064
      %v2066 = vsel %vm1438, %v2022, 0.0
      %v2067 = vadd.f32 %v2065, %v2066
      %v2068 = vsel %vm1438, %v2023, 0.0
      %v2069 = vadd.f32 %v2067, %v2068
      %v2070 = vsel %vm1438, %v2024, 0.0
      %v2071 = vadd.f32 %v2069, %v2070
      %v2072 = vsel %vm1438, %v2025, 0.0
      %v2073 = vadd.f32 %v2071, %v2072
      %v2074 = vsel %vm1438, %v2026, 0.0
      %v2075 = vadd.f32 %v2073, %v2074
      %v2076 = vsel %vm1438, %v2027, 0.0
      %v2077 = vadd.f32 %v2075, %v2076
      %v2078 = vsel %vm1438, %v2028, 0.0
      %v2079 = vadd.f32 %v2077, %v2078
      %v2080 = vsel %vm1438, %v2029, 0.0
      %v2081 = vadd.f32 %v2079, %v2080
      %v2082 = vsel %vm1438, %v2030, 0.0
      %v2083 = vadd.f32 %v2081, %v2082
      %v2084 = vsel %vm1438, %v2031, 0.0
      %v2085 = vadd.f32 %v2083, %v2084
      %v2086 = vsel %vm1438, %v2032, 0.0
      %v2087 = vadd.f32 %v2085, %v2086
      %v2088 = vsel %vm1438, %v2033, 0.0
      %v2089 = vadd.f32 %v2087, %v2088
      %v2090 = vsel %vm1438, %v2034, 0.0
      %v2091 = vadd.f32 %v2089, %v2090
      %v2092 = vsel %vm1438, %v2035, 0.0
      %v2093 = vadd.f32 %v2091, %v2092
      %v2094 = vsel %vm1438, %v2036, 0.0
      %v2095 = vadd.f32 %v2093, %v2094
      %v2096 = vsel %vm1438, %v2037, 0.0
      %v2097 = vadd.f32 %v2095, %v2096
      %v2098 = vsel %vm1438, %v2038, 0.0
      %v2099 = vadd.f32 %v2097, %v2098
      %v2100 = vsel %vm1438, %v2039, 0.0
      %v2101 = vadd.f32 %v2099, %v2100
      %v2102 = vsel %vm1438, %v2040, 0.0
      %v2103 = vadd.f32 %v2101, %v2102
      %v2104 = vrot.slane %v2103, 4
      %v2105 = vadd.f32 %v2103, %v2104
      %v2106 = vrot.slane %v2105, 2
      %v2107 = vadd.f32 %v2105, %v2106
      %v2108 = vrot.slane %v2107, 1
      %v2109 = vadd.f32 %v2107, %v2108
      %vm2110 = vcmask 1040384
      %v2111 = vsel %vm2110, %v2008, %v2109
      %vm2112 = vcmask 123904
      %2113 = vst.msk [vmem:[%s409] sm:$0x3] %vm2112, %v2111
      %s2114 = smul.u32 16, %s24
      %p2115 = scmp.lt.s32.totalorder %s23, 1
      %s2116 = scalar_select %p2115, %s23, 1
      %p2117 = scmp.lt.s32.totalorder %s2114, 15
      %s2118 = scalar_select %p2117, %s2114, 15
      %s2119 = smul.addr %s2118, 2
      %s2120 = smul.addr %s2116, 32
      %s2121 = sadd.s32 %s2119, %s2120
      %s2122 = smul.addr %s2121, 4
      %s2123 = scalar_lea.vmem %s6, %s2122
      %p2124 = scmp.lt.s32.totalorder %s23, 1
      %s2125 = scalar_select %p2124, %s23, 1
      %p2126 = scmp.lt.s32.totalorder %s24, 0
      %s2127 = scalar_select %p2126, %s24, 0
      %s2128 = sadd.s32 %s2127, %s2125
      %s2129 = smul.addr %s2128, 2
      %s2130 = scalar_lea.vmem %s7, %s2129
      // Predicated region
      $region45: #{erb_forward_nhwc.2} parent=43 // pred_check
        %p2131 = pneg %p198
      $region46: #{erb_forward_nhwc.2} parent=43 // pred_check_branch
        %2133 = sbr.rel (%p2131) target = $region48
      $region47: #{erb_forward_nhwc.2} parent=43 // pred_region
        %s2134 = smul.u32 16, %s24
      $region48: #{erb_forward_nhwc.2} parent=43 // pred_fallthru
        _
      // Predicated region
      $region49: #{erb_forward_nhwc.2} parent=43 // pred_check
        %p2135 = pneg %p226
      $region50: #{erb_forward_nhwc.2} parent=43 // pred_check_branch
        %2137 = sbr.rel (%p2135) target = $region52
      $region51: #{erb_forward_nhwc.2} parent=43 // pred_region
        _
      $region52: #{erb_forward_nhwc.2} parent=43 // pred_fallthru
        _
    $region44: #{erb_forward_nhwc.2} parent=5 // pred_fallthru
      _
    %p2138 = scmp.le.s32.totalorder 2, %s14
    // Predicated region
    $region53: #{erb_forward_nhwc.2} parent=5 // pred_check
      %p2139 = pneg %p2138
    $region54: #{erb_forward_nhwc.2} parent=5 // pred_check_branch
      %2141 = sbr.rel (%p2139) target = $region56
    $region55: #{erb_forward_nhwc.2} parent=5 // pred_region
      %s2142 = ssub.s32 %s14, 2
      // Predicated region
      $region57: #{erb_forward_nhwc.2} parent=55 // pred_check
        %p2143 = pneg %p204
      $region58: #{erb_forward_nhwc.2} parent=55 // pred_check_branch
        %2145 = sbr.rel (%p2143) target = $region60
      $region59: #{erb_forward_nhwc.2} parent=55 // pred_region
        %s2146 = smul.u32 16, %s26
        %p2147 = scmp.lt.s32.totalorder %s25, 1
        %s2148 = scalar_select %p2147, %s25, 1
        %p2149 = scmp.lt.s32.totalorder %s2146, 15
        %s2150 = scalar_select %p2149, %s2146, 15
        %s2151 = smul.addr %s2150, 2
        %s2152 = smul.addr %s2148, 32
        %s2153 = sadd.s32 %s2151, %s2152
        %s2154 = smul.addr %s2153, 4
        %s2155 = scalar_lea.vmem %s6, %s2154
      $region60: #{erb_forward_nhwc.2} parent=55 // pred_fallthru
        _
      // Predicated region
      $region61: #{erb_forward_nhwc.2} parent=55 // pred_check
        %p2156 = pneg %p232
      $region62: #{erb_forward_nhwc.2} parent=55 // pred_check_branch
        %2158 = sbr.rel (%p2156) target = $region64
      $region63: #{erb_forward_nhwc.2} parent=55 // pred_region
        %p2159 = scmp.lt.s32.totalorder %s25, 1
        %s2160 = scalar_select %p2159, %s25, 1
        %p2161 = scmp.lt.s32.totalorder %s26, 0
        %s2162 = scalar_select %p2161, %s26, 0
        %s2163 = sadd.s32 %s2162, %s2160
        %s2164 = smul.addr %s2163, 2
        %s2165 = scalar_lea.vmem %s7, %s2164
      $region64: #{erb_forward_nhwc.2} parent=55 // pred_fallthru
        _
    $region56: #{erb_forward_nhwc.2} parent=5 // pred_fallthru
      _
  $region6: #{erb_forward_nhwc.2} parent=0 // loop_footer
    %s18 = sadd.s32 1, %s14
  $region7: #{erb_forward_nhwc.2} parent=0 // loop_footer_branch
    %13 = sbr.rel target = $region3
  $region8: #{erb_forward_nhwc.2} parent=0 // loop_exit
    _

// kernel: erb_forward_nhwc.3
$region0: #{erb_forward_nhwc.3}
  #allocation0 [shape = 'u32[]', space=smem, size = 0x4, offset = 0x4, fixed_abs, tag = 'smem constant byte address 0x4 - core index']
  #allocation1 [shape = 'u32[72,128]{1,0:T(1,128)}', space=vmem, size = 0x9000, scoped, tag = 'internal scratch']
  %s0 = inlined_call_operand.vmem [shape: bf16[2,16,16,16], index: 0, kind: input, shape index: {}]
  %s1 = inlined_call_operand.vmem [shape: bf16[2,2,16,16], index: 1, kind: input, shape index: {}, may-alias: {1,2}]
  %s2 = inlined_call_operand.vmem [shape: bf16[2,2,16,16], index: 2, kind: input, shape index: {}, may-alias: {1,2}]
  %s3 = inlined_call_operand.vmem [shape: f32[1,16], index: 3, kind: input, shape index: {}]
  %s4 = inlined_call_operand.vmem [shape: f32[1,16], index: 4, kind: input, shape index: {}]
  %s5 = inlined_call_operand.vmem [shape: bf16[3,48,16], index: 5, kind: input, shape index: {}]
  %s6 = inlined_call_operand.vmem [shape: bf16[3,48,16], index: 6, kind: input, shape index: {}]
  %s7 = inlined_call_operand.vmem [shape: f32[1,16], index: 7, kind: input, shape index: {}]
  %s8 = inlined_call_operand.hbm [shape: f32[2,16,16,16], index: 8, kind: output, shape index: {}]
  %s9 = sld [smem:[#allocation0]]
  $region65: #{erb_forward_nhwc.3} parent=0
    _
  %s11 = ssub.s32 1, %s9
  %s12 = scalar_select 0, %s11, %s9
  $region1: #{erb_forward_nhwc.3} parent=0
    #allocation2 [shape = 'u8[262144]{0}', space=vmem, size = 0x40000, scoped, tag = 'output window, operand 0']
    #allocation3 [shape = 's32[2]{0}', space=sflag, size = 0x8, scoped, tag = 'scoped memory for erb_forward_nhwc.3']
    %13 = vsyncpa [#allocation3], 0
    %s14 = scalar_lea.sflag [#allocation3], 1
    %15 = vsyncpa %s14, 0
    loop: start=0, step=1, limit=4
    $region2: #{erb_forward_nhwc.3} parent=1 // loop_pre_header
      _
    $region3: #{erb_forward_nhwc.3} parent=1 // loop_header
      %s17 = sphi 0, %s21
      %p18 = scmp.ge.s32.totalorder %s17, 4
      %s24 = sphi 0, %s36
      %s25 = sphi 0, %s32
      %s26 = sphi 0, %s24
      %s27 = sphi 0, %s25
      %s28 = sphi 0, %s26
      %s29 = sphi 0, %s27
      %s41 = sphi 0, %s43
      %s44 = sphi 0, %s41
      %s45 = sphi 0, %s44
      %s61 = sphi 0, %s45
      %s69 = sphi 0, %s71
      %s72 = sphi 0, %s69
      %s73 = sphi 0, %s72
      %s89 = sphi 0, %s73
      %s97 = sphi 0, %s99
      %s100 = sphi 0, %s97
      %s101 = sphi 0, %s100
      %s117 = sphi 0, %s101
      %s121 = sphi 0, %s121
      %s123 = sphi 0, %s121
      %s124 = sphi 0, %s123
      %s138 = sphi 0, %s124
      %s142 = sphi 0, %s142
      %s144 = sphi 0, %s142
      %s145 = sphi 0, %s144
      %s159 = sphi 0, %s145
      %s163 = sphi 0, %s163
      %s165 = sphi 0, %s163
      %s166 = sphi 0, %s165
      %s180 = sphi 0, %s166
      %s184 = sphi 0, %s184
      %s186 = sphi 0, %s184
      %s187 = sphi 0, %s186
      %s201 = sphi 0, %s187
      %s205 = sphi 0, %s205
      %s207 = sphi 0, %s205
      %s208 = sphi 0, %s207
      %s222 = sphi 0, %s208
      %s230 = sphi 0, %s232
      %s233 = sphi 0, %s230
      %s234 = sphi 0, %s233
      %s250 = sphi 0, %s234
    $region4: #{erb_forward_nhwc.3} parent=1 // loop_header_branch
      %20 = sbr.rel (%p18) target = $region8
    $region5: #{erb_forward_nhwc.3} parent=1 // loop_body
      %s22 = ssub.s32 %s17, 1
      %s23 = ssub.s32 %s17, 2
      %s30 = sadd.s32 1, %s25
      %p31 = scmp.ge.s32.totalorder %s30, 1
      %s32 = scalar_select %p31, 0, %s30
      %s33 = sadd.s32 1, %s24
      %s34 = scalar_select %p31, %s33, %s24
      %p35 = scmp.ge.s32.totalorder %s34, 2
      %s36 = scalar_select %p35, 0, %s34
      %s37 = ssub.s32 %s24, %s36
      %s38 = ssub.s32 %s25, %s32
      %s39 = sor.u32 %s37, %s38
      %p40 = scmp.eq.s32.totalorder %s39, 0
      %s42 = sadd.s32 %s41, 1
      %s43 = scalar_select %p40, %s41, %s42
      %p46 = pneg %p40
      %p47 = scmp.eq.s32.totalorder %s17, 1
      %p48 = por %p46, %p47
      %p49 = scmp.ne.s32.totalorder %s41, %s44
      %p50 = scmp.eq.s32.totalorder %s17, 0
      %p51 = por %p49, %p50
      %p52 = scmp.ne.s32.totalorder %s41, %s44
      %p53 = scmp.eq.s32.totalorder %s22, 1
      %p54 = por %p52, %p53
      %p55 = scmp.ne.s32.totalorder %s44, %s45
      %p56 = scmp.eq.s32.totalorder %s22, 0
      %p57 = por %p55, %p56
      %p58 = scmp.ne.s32.totalorder %s44, %s45
      %p59 = scmp.eq.s32.totalorder %s23, 1
      %p60 = por %p58, %p59
      %p62 = scmp.ne.s32.totalorder %s45, %s61
      %p63 = scmp.eq.s32.totalorder %s23, 0
      %p64 = por %p62, %p63
      %s65 = ssub.s32 %s24, %s36
      %s66 = ssub.s32 %s25, %s32
      %s67 = sor.u32 %s65, %s66
      %p68 = scmp.eq.s32.totalorder %s67, 0
      %s70 = sadd.s32 %s69, 1
      %s71 = scalar_select %p68, %s69, %s70
      %p74 = pneg %p68
      %p75 = scmp.eq.s32.totalorder %s17, 1
      %p76 = por %p74, %p75
      %p77 = scmp.ne.s32.totalorder %s69, %s72
      %p78 = scmp.eq.s32.totalorder %s17, 0
      %p79 = por %p77, %p78
      %p80 = scmp.ne.s32.totalorder %s69, %s72
      %p81 = scmp.eq.s32.totalorder %s22, 1
      %p82 = por %p80, %p81
      %p83 = scmp.ne.s32.totalorder %s72, %s73
      %p84 = scmp.eq.s32.totalorder %s22, 0
      %p85 = por %p83, %p84
      %p86 = scmp.ne.s32.totalorder %s72, %s73
      %p87 = scmp.eq.s32.totalorder %s23, 1
      %p88 = por %p86, %p87
      %p90 = scmp.ne.s32.totalorder %s73, %s89
      %p91 = scmp.eq.s32.totalorder %s23, 0
      %p92 = por %p90, %p91
      %s93 = ssub.s32 %s24, %s36
      %s94 = ssub.s32 %s25, %s32
      %s95 = sor.u32 %s93, %s94
      %p96 = scmp.eq.s32.totalorder %s95, 0
      %s98 = sadd.s32 %s97, 1
      %s99 = scalar_select %p96, %s97, %s98
      %p102 = pneg %p96
      %p103 = scmp.eq.s32.totalorder %s17, 1
      %p104 = por %p102, %p103
      %p105 = scmp.ne.s32.totalorder %s97, %s100
      %p106 = scmp.eq.s32.totalorder %s17, 0
      %p107 = por %p105, %p106
      %p108 = scmp.ne.s32.totalorder %s97, %s100
      %p109 = scmp.eq.s32.totalorder %s22, 1
      %p110 = por %p108, %p109
      %p111 = scmp.ne.s32.totalorder %s100, %s101
      %p112 = scmp.eq.s32.totalorder %s22, 0
      %p113 = por %p111, %p112
      %p114 = scmp.ne.s32.totalorder %s100, %s101
      %p115 = scmp.eq.s32.totalorder %s23, 1
      %p116 = por %p114, %p115
      %p118 = scmp.ne.s32.totalorder %s101, %s117
      %p119 = scmp.eq.s32.totalorder %s23, 0
      %p120 = por %p118, %p119
      %s122 = sadd.s32 %s121, 1
      %p125 = scmp.eq.s32.totalorder %s17, 1
      %p126 = scmp.ne.s32.totalorder %s121, %s123
      %p127 = scmp.eq.s32.totalorder %s17, 0
      %p128 = por %p126, %p127
      %p129 = scmp.ne.s32.totalorder %s121, %s123
      %p130 = scmp.eq.s32.totalorder %s22, 1
      %p131 = por %p129, %p130
      %p132 = scmp.ne.s32.totalorder %s123, %s124
      %p133 = scmp.eq.s32.totalorder %s22, 0
      %p134 = por %p132, %p133
      %p135 = scmp.ne.s32.totalorder %s123, %s124
      %p136 = scmp.eq.s32.totalorder %s23, 1
      %p137 = por %p135, %p136
      %p139 = scmp.ne.s32.totalorder %s124, %s138
      %p140 = scmp.eq.s32.totalorder %s23, 0
      %p141 = por %p139, %p140
      %s143 = sadd.s32 %s142, 1
      %p146 = scmp.eq.s32.totalorder %s17, 1
      %p147 = scmp.ne.s32.totalorder %s142, %s144
      %p148 = scmp.eq.s32.totalorder %s17, 0
      %p149 = por %p147, %p148
      %p150 = scmp.ne.s32.totalorder %s142, %s144
      %p151 = scmp.eq.s32.totalorder %s22, 1
      %p152 = por %p150, %p151
      %p153 = scmp.ne.s32.totalorder %s144, %s145
      %p154 = scmp.eq.s32.totalorder %s22, 0
      %p155 = por %p153, %p154
      %p156 = scmp.ne.s32.totalorder %s144, %s145
      %p157 = scmp.eq.s32.totalorder %s23, 1
      %p158 = por %p156, %p157
      %p160 = scmp.ne.s32.totalorder %s145, %s159
      %p161 = scmp.eq.s32.totalorder %s23, 0
      %p162 = por %p160, %p161
      %s164 = sadd.s32 %s163, 1
      %p167 = scmp.eq.s32.totalorder %s17, 1
      %p168 = scmp.ne.s32.totalorder %s163, %s165
      %p169 = scmp.eq.s32.totalorder %s17, 0
      %p170 = por %p168, %p169
      %p171 = scmp.ne.s32.totalorder %s163, %s165
      %p172 = scmp.eq.s32.totalorder %s22, 1
      %p173 = por %p171, %p172
      %p174 = scmp.ne.s32.totalorder %s165, %s166
      %p175 = scmp.eq.s32.totalorder %s22, 0
      %p176 = por %p174, %p175
      %p177 = scmp.ne.s32.totalorder %s165, %s166
      %p178 = scmp.eq.s32.totalorder %s23, 1
      %p179 = por %p177, %p178
      %p181 = scmp.ne.s32.totalorder %s166, %s180
      %p182 = scmp.eq.s32.totalorder %s23, 0
      %p183 = por %p181, %p182
      %s185 = sadd.s32 %s184, 1
      %p188 = scmp.eq.s32.totalorder %s17, 1
      %p189 = scmp.ne.s32.totalorder %s184, %s186
      %p190 = scmp.eq.s32.totalorder %s17, 0
      %p191 = por %p189, %p190
      %p192 = scmp.ne.s32.totalorder %s184, %s186
      %p193 = scmp.eq.s32.totalorder %s22, 1
      %p194 = por %p192, %p193
      %p195 = scmp.ne.s32.totalorder %s186, %s187
      %p196 = scmp.eq.s32.totalorder %s22, 0
      %p197 = por %p195, %p196
      %p198 = scmp.ne.s32.totalorder %s186, %s187
      %p199 = scmp.eq.s32.totalorder %s23, 1
      %p200 = por %p198, %p199
      %p202 = scmp.ne.s32.totalorder %s187, %s201
      %p203 = scmp.eq.s32.totalorder %s23, 0
      %p204 = por %p202, %p203
      %s206 = sadd.s32 %s205, 1
      %p209 = scmp.eq.s32.totalorder %s17, 1
      %p210 = scmp.ne.s32.totalorder %s205, %s207
      %p211 = scmp.eq.s32.totalorder %s17, 0
      %p212 = por %p210, %p211
      %p213 = scmp.ne.s32.totalorder %s205, %s207
      %p214 = scmp.eq.s32.totalorder %s22, 1
      %p215 = por %p213, %p214
      %p216 = scmp.ne.s32.totalorder %s207, %s208
      %p217 = scmp.eq.s32.totalorder %s22, 0
      %p218 = por %p216, %p217
      %p219 = scmp.ne.s32.totalorder %s207, %s208
      %p220 = scmp.eq.s32.totalorder %s23, 1
      %p221 = por %p219, %p220
      %p223 = scmp.ne.s32.totalorder %s208, %s222
      %p224 = scmp.eq.s32.totalorder %s23, 0
      %p225 = por %p223, %p224
      %s226 = ssub.s32 %s24, %s36
      %s227 = ssub.s32 %s25, %s32
      %s228 = sor.u32 %s226, %s227
      %p229 = scmp.eq.s32.totalorder %s228, 0
      %s231 = sadd.s32 %s230, 1
      %s232 = scalar_select %p229, %s230, %s231
      %p235 = pneg %p229
      %p236 = scmp.eq.s32.totalorder %s17, 1
      %p237 = por %p235, %p236
      %p238 = scmp.ne.s32.totalorder %s230, %s233
      %p239 = scmp.eq.s32.totalorder %s17, 0
      %p240 = por %p238, %p239
      %p241 = scmp.ne.s32.totalorder %s230, %s233
      %p242 = scmp.eq.s32.totalorder %s22, 1
      %p243 = por %p241, %p242
      %p244 = scmp.ne.s32.totalorder %s233, %s234
      %p245 = scmp.eq.s32.totalorder %s22, 0
      %p246 = por %p244, %p245
      %p247 = scmp.ne.s32.totalorder %s233, %s234
      %p248 = scmp.eq.s32.totalorder %s23, 1
      %p249 = por %p247, %p248
      %p251 = scmp.ne.s32.totalorder %s234, %s250
      %p252 = scmp.eq.s32.totalorder %s23, 0
      %p253 = por %p251, %p252
      %p254 = scmp.le.s32.totalorder 1, %s17
      %p255 = scmp.lt.s32.totalorder %s17, 3
      %p256 = pnand %p254, %p255
      %p257 = pneg %p256
      // Predicated region
      $region9: #{erb_forward_nhwc.3} parent=5 // pred_check
        _
      $region10: #{erb_forward_nhwc.3} parent=5 // pred_check_branch
        %259 = sbr.rel (%p256) target = $region12
      $region11: #{erb_forward_nhwc.3} parent=5 // pred_region
        %s260 = ssub.s32 %s17, 1
        // Predicated region
        $region13: #{erb_forward_nhwc.3} parent=11 // pred_check
          %p261 = pneg %p134
        $region14: #{erb_forward_nhwc.3} parent=11 // pred_check_branch
          %263 = sbr.rel (%p261) target = $region16
        $region15: #{erb_forward_nhwc.3} parent=11 // pred_region
          _
        $region16: #{erb_forward_nhwc.3} parent=11 // pred_fallthru
          _
        // Predicated region
        $region17: #{erb_forward_nhwc.3} parent=11 // pred_check
          %p264 = pneg %p155
        $region18: #{erb_forward_nhwc.3} parent=11 // pred_check_branch
          %266 = sbr.rel (%p264) target = $region20
        $region19: #{erb_forward_nhwc.3} parent=11 // pred_region
          _
        $region20: #{erb_forward_nhwc.3} parent=11 // pred_fallthru
          _
        // Predicated region
        $region21: #{erb_forward_nhwc.3} parent=11 // pred_check
          %p267 = pneg %p176
        $region22: #{erb_forward_nhwc.3} parent=11 // pred_check_branch
          %269 = sbr.rel (%p267) target = $region24
        $region23: #{erb_forward_nhwc.3} parent=11 // pred_region
          _
        $region24: #{erb_forward_nhwc.3} parent=11 // pred_fallthru
          _
        // Predicated region
        $region25: #{erb_forward_nhwc.3} parent=11 // pred_check
          %p270 = pneg %p197
        $region26: #{erb_forward_nhwc.3} parent=11 // pred_check_branch
          %272 = sbr.rel (%p270) target = $region28
        $region27: #{erb_forward_nhwc.3} parent=11 // pred_region
          _
        $region28: #{erb_forward_nhwc.3} parent=11 // pred_fallthru
          _
        // Predicated region
        $region29: #{erb_forward_nhwc.3} parent=11 // pred_check
          %p273 = pneg %p218
        $region30: #{erb_forward_nhwc.3} parent=11 // pred_check_branch
          %275 = sbr.rel (%p273) target = $region32
        $region31: #{erb_forward_nhwc.3} parent=11 // pred_region
          _
        $region32: #{erb_forward_nhwc.3} parent=11 // pred_fallthru
          _
      $region12: #{erb_forward_nhwc.3} parent=5 // pred_fallthru
        _
      %p276 = scmp.lt.s32.totalorder %s17, 2
      // Predicated region
      $region33: #{erb_forward_nhwc.3} parent=5 // pred_check
        %p277 = pneg %p276
      $region34: #{erb_forward_nhwc.3} parent=5 // pred_check_branch
        %279 = sbr.rel (%p277) target = $region36
      $region35: #{erb_forward_nhwc.3} parent=5 // pred_region
        // Predicated region
        $region37: #{erb_forward_nhwc.3} parent=35 // pred_check
          %p280 = pneg %p51
        $region38: #{erb_forward_nhwc.3} parent=35 // pred_check_branch
          %282 = sbr.rel (%p280) target = $region40
        $region39: #{erb_forward_nhwc.3} parent=35 // pred_region
          %s283 = smul.u32 16, %s25
          %p284 = scmp.lt.s32.totalorder %s24, 1
          %s285 = scalar_select %p284, %s24, 1
          %p286 = scmp.lt.s32.totalorder %s283, 15
          %s287 = scalar_select %p286, %s283, 15
          %s288 = smul.addr %s287, 2
          %s289 = smul.addr %s285, 32
          %s290 = sadd.s32 %s288, %s289
          %s291 = smul.addr %s290, 4
          %s292 = scalar_lea.vmem %s0, %s291
          %s293 = smul.u32 16, %s25
        $region40: #{erb_forward_nhwc.3} parent=35 // pred_fallthru
          _
        // Predicated region
        $region41: #{erb_forward_nhwc.3} parent=35 // pred_check
          %p294 = pneg %p79
        $region42: #{erb_forward_nhwc.3} parent=35 // pred_check_branch
          %296 = sbr.rel (%p294) target = $region44
        $region43: #{erb_forward_nhwc.3} parent=35 // pred_region
          %s297 = smul.u32 2, %s25
          %p298 = scmp.lt.s32.totalorder %s24, 1
          %s299 = scalar_select %p298, %s24, 1
          %p300 = scmp.lt.s32.totalorder %s297, 1
          %s301 = scalar_select %p300, %s297, 1
          %s302 = smul.addr %s301, 2
          %s303 = smul.addr %s299, 4
          %s304 = sadd.s32 %s302, %s303
          %s305 = smul.addr %s304, 4
          %s306 = scalar_lea.vmem %s1, %s305
          %s307 = smul.u32 2, %s25
        $region44: #{erb_forward_nhwc.3} parent=35 // pred_fallthru
          _
        // Predicated region
        $region45: #{erb_forward_nhwc.3} parent=35 // pred_check
          %p308 = pneg %p107
        $region46: #{erb_forward_nhwc.3} parent=35 // pred_check_branch
          %310 = sbr.rel (%p308) target = $region48
        $region47: #{erb_forward_nhwc.3} parent=35 // pred_region
          %s311 = smul.u32 2, %s25
          %p312 = scmp.lt.s32.totalorder %s24, 1
          %s313 = scalar_select %p312, %s24, 1
          %p314 = scmp.lt.s32.totalorder %s311, 1
          %s315 = scalar_select %p314, %s311, 1
          %s316 = smul.addr %s315, 2
          %s317 = smul.addr %s313, 4
          %s318 = sadd.s32 %s316, %s317
          %s319 = smul.addr %s318, 4
          %s320 = scalar_lea.vmem %s2, %s319
          %s321 = smul.u32 2, %s25
        $region48: #{erb_forward_nhwc.3} parent=35 // pred_fallthru
          _
      $region36: #{erb_forward_nhwc.3} parent=5 // pred_fallthru
        _
      %p322 = scmp.le.s32.totalorder 1, %s17
      %p323 = scmp.lt.s32.totalorder %s17, 3
      %p324 = pnand %p322, %p323
      %p325 = pneg %p324
      // Predicated region
      $region49: #{erb_forward_nhwc.3} parent=5 // pred_check
        _
      $region50: #{erb_forward_nhwc.3} parent=5 // pred_check_branch
        %327 = sbr.rel (%p324) target = $region52
      $region51: #{erb_forward_nhwc.3} parent=5 // pred_region
        %s328 = ssub.s32 %s17, 1
        %s329 = smul.u32 16, %s27
        %p330 = scmp.lt.s32.totalorder %s26, 1
        %s331 = scalar_select %p330, %s26, 1
        %p332 = scmp.lt.s32.totalorder %s329, 15
        %s333 = scalar_select %p332, %s329, 15
        %s334 = smul.addr %s333, 2
        %s335 = smul.addr %s331, 32
        %s336 = sadd.s32 %s334, %s335
        %s337 = smul.addr %s336, 4
        %s338 = scalar_lea.vmem %s0, %s337
        %p339 = pneg %p57
        %p340 = pneg %p54
        %s341 = smul.u32 2, %s27
        %p342 = scmp.lt.s32.totalorder %s26, 1
        %s343 = scalar_select %p342, %s26, 1
        %p344 = scmp.lt.s32.totalorder %s341, 1
        %s345 = scalar_select %p344, %s341, 1
        %s346 = smul.addr %s345, 2
        %s347 = smul.addr %s343, 4
        %s348 = sadd.s32 %s346, %s347
        %s349 = smul.addr %s348, 4
        %s350 = scalar_lea.vmem %s1, %s349
        %p351 = pneg %p85
        %p352 = pneg %p82
        %s353 = smul.u32 2, %s27
        %p354 = scmp.lt.s32.totalorder %s26, 1
        %s355 = scalar_select %p354, %s26, 1
        %p356 = scmp.lt.s32.totalorder %s353, 1
        %s357 = scalar_select %p356, %s353, 1
        %s358 = smul.addr %s357, 2
        %s359 = smul.addr %s355, 4
        %s360 = sadd.s32 %s358, %s359
        %s361 = smul.addr %s360, 4
        %s362 = scalar_lea.vmem %s2, %s361
        %p363 = pneg %p113
        %p364 = pneg %p110
        %p365 = pneg %p134
        %p366 = pneg %p131
        %p367 = pneg %p155
        %p368 = pneg %p152
        %p369 = pneg %p176
        %p370 = pneg %p173
        %p371 = pneg %p197
        %p372 = pneg %p194
        %p373 = pneg %p218
        %p374 = pneg %p215
        %p375 = pneg %p246
        %p376 = pneg %p243
        %s377 = sand.u32 %s233, 1
        %s378 = scalar_lea.sflag [#allocation3], %s377
        %s379 = sand.u32 %s233, 1
        %s380 = smul.addr %s379, 256
        %s381 = scalar_lea.vmem [#allocation2], %s380
        %s382 = smul.u32 16, %s27
        %p383 = scmp.lt.s32.totalorder %s26, 1
        %s384 = scalar_select %p383, %s26, 1
        %p385 = scmp.lt.s32.totalorder %s382, 15
        %s386 = scalar_select %p385, %s382, 15
        %s387 = smul.addr %s386, 2
        %s388 = smul.addr %s384, 32
        %s389 = sadd.s32 %s387, %s388
        %s390 = smul.addr %s389, 4
        %s391 = scalar_lea.vmem %s0, %s390
        %s392 = smul.u32 16, %s27
        %s393 = smul.u32 2, %s27
        %p394 = scmp.lt.s32.totalorder %s26, 1
        %s395 = scalar_select %p394, %s26, 1
        %p396 = scmp.lt.s32.totalorder %s393, 1
        %s397 = scalar_select %p396, %s393, 1
        %s398 = smul.addr %s397, 2
        %s399 = smul.addr %s395, 4
        %s400 = sadd.s32 %s398, %s399
        %s401 = smul.addr %s400, 4
        %s402 = scalar_lea.vmem %s1, %s401
        %s403 = smul.u32 2, %s27
        %s404 = smul.u32 2, %s27
        %p405 = scmp.lt.s32.totalorder %s26, 1
        %s406 = scalar_select %p405, %s26, 1
        %p407 = scmp.lt.s32.totalorder %s404, 1
        %s408 = scalar_select %p407, %s404, 1
        %s409 = smul.addr %s408, 2
        %s410 = smul.addr %s406, 4
        %s411 = sadd.s32 %s409, %s410
        %s412 = smul.addr %s411, 4
        %s413 = scalar_lea.vmem %s2, %s412
        %s414 = smul.u32 2, %s27
        %s415 = smul.u32 16, %s27
        %p417 = scmp.gt.s32.totalorder %s27, 0
        %s418 = scalar_select %p417, 1, 0
        %s419 = scvt.s32.f32 %s418
        %p420 = scmp.lt.s32.totalorder %s27, 0
        %s421 = scalar_select %p420, 1, 0
        %s422 = scvt.s32.f32 %s421
        %v423 = vlaneseq
        %v424 = vshrl.u32 %v423, 7
        %v425 = vadd.s32 %v424, 8
        %vm426 = vcmp.ne.s32.totalorder %v424, 0
        %vm427 = vcmp.ne.s32.totalorder %v425, 0
        %vm428 = vcmp.ne.s32.totalorder %v424, 15
        %vm429 = vcmp.ne.s32.totalorder %v425, 15
        %v430 = vld [vmem:[%s391] sm:$0xf]
        %v431 = vld [vmem:[%s391 + $0x4] sm:$0xf]
        %v432 = vld [vmem:[%s391 + $0x8] sm:$0xf]
        %v433 = vld [vmem:[%s391 + $0xc] sm:$0xf]
        %v434 = vld [vmem:[%s391 + $0x10] sm:$0xf]
        %v435 = vld [vmem:[%s391 + $0x14] sm:$0xf]
        %v436 = vld [vmem:[%s391 + $0x18] sm:$0xf]
        %v437 = vld [vmem:[%s391 + $0x1c] sm:$0xf]
        %v438 = vld [vmem:[%s391 + $0x20] sm:$0xf]
        %v439 = vld [vmem:[%s391 + $0x24] sm:$0xf]
        %v440 = vld [vmem:[%s391 + $0x28] sm:$0xf]
        %v441 = vld [vmem:[%s391 + $0x2c] sm:$0xf]
        %v442 = vld [vmem:[%s391 + $0x30] sm:$0xf]
        %v443 = vld [vmem:[%s391 + $0x34] sm:$0xf]
        %v444 = vld [vmem:[%s391 + $0x38] sm:$0xf]
        %v445 = vld [vmem:[%s391 + $0x3c] sm:$0xf]
        %v446 = vld [vmem:[%s391 + $0x40] sm:$0xf]
        %v447 = vld [vmem:[%s391 + $0x44] sm:$0xf]
        %v448 = vld [vmem:[%s391 + $0x48] sm:$0xf]
        %v449 = vld [vmem:[%s391 + $0x4c] sm:$0xf]
        %v450 = vld [vmem:[%s391 + $0x50] sm:$0xf]
        %v451 = vld [vmem:[%s391 + $0x54] sm:$0xf]
        %v452 = vld [vmem:[%s391 + $0x58] sm:$0xf]
        %v453 = vld [vmem:[%s391 + $0x5c] sm:$0xf]
        %v454 = vld [vmem:[%s391 + $0x60] sm:$0xf]
        %v455 = vld [vmem:[%s391 + $0x64] sm:$0xf]
        %v456 = vld [vmem:[%s391 + $0x68] sm:$0xf]
        %v457 = vld [vmem:[%s391 + $0x6c] sm:$0xf]
        %v458 = vld [vmem:[%s391 + $0x70] sm:$0xf]
        %v459 = vld [vmem:[%s391 + $0x74] sm:$0xf]
        %v460 = vld [vmem:[%s391 + $0x78] sm:$0xf]
        %v461 = vld [vmem:[%s391 + $0x7c] sm:$0xf]
        %v462 = vunpack.c.l.bf16 %v430
        %v463 = vunpack.c.l.bf16 %v431
        %v464 = vunpack.c.l.bf16 %v432
        %v465 = vunpack.c.l.bf16 %v433
        %v466 = vunpack.c.l.bf16 %v434
        %v467 = vunpack.c.l.bf16 %v435
        %v468 = vunpack.c.l.bf16 %v436
        %v469 = vunpack.c.l.bf16 %v437
        %v470 = vunpack.c.l.bf16 %v438
        %v471 = vunpack.c.l.bf16 %v439
        %v472 = vunpack.c.l.bf16 %v440
        %v473 = vunpack.c.l.bf16 %v441
        %v474 = vunpack.c.l.bf16 %v442
        %v475 = vunpack.c.l.bf16 %v443
        %v476 = vunpack.c.l.bf16 %v444
        %v477 = vunpack.c.l.bf16 %v445
        %v478 = vunpack.c.l.bf16 %v446
        %v479 = vunpack.c.l.bf16 %v447
        %v480 = vunpack.c.l.bf16 %v448
        %v481 = vunpack.c.l.bf16 %v449
        %v482 = vunpack.c.l.bf16 %v450
        %v483 = vunpack.c.l.bf16 %v451
        %v484 = vunpack.c.l.bf16 %v452
        %v485 = vunpack.c.l.bf16 %v453
        %v486 = vunpack.c.l.bf16 %v454
        %v487 = vunpack.c.l.bf16 %v455
        %v488 = vunpack.c.l.bf16 %v456
        %v489 = vunpack.c.l.bf16 %v457
        %v490 = vunpack.c.l.bf16 %v458
        %v491 = vunpack.c.l.bf16 %v459
        %v492 = vunpack.c.l.bf16 %v460
        %v493 = vunpack.c.l.bf16 %v461
        %v494 = vld [vmem:[%s402] sm:$0xf]
        %v495 = vld [vmem:[%s402 + $0x4] sm:$0xf]
        %v496 = vld [vmem:[%s402 + $0x8] sm:$0xf]
        %v497 = vld [vmem:[%s402 + $0xc] sm:$0xf]
        %v498 = vunpack.c.l.bf16 %v494
        %v499 = vunpack.c.l.bf16 %v495
        %v500 = vunpack.c.l.bf16 %v496
        %v501 = vunpack.c.l.bf16 %v497
        %v502 = vld [vmem:[%s413] sm:$0xf]
        %v503 = vld [vmem:[%s413 + $0x4] sm:$0xf]
        %v504 = vld [vmem:[%s413 + $0x8] sm:$0xf]
        %v505 = vld [vmem:[%s413 + $0xc] sm:$0xf]
        %v506 = vunpack.c.l.bf16 %v502
        %v507 = vunpack.c.l.bf16 %v503
        %v508 = vunpack.c.l.bf16 %v504
        %v509 = vunpack.c.l.bf16 %v505
        %v510 = vrot.slane %v498, 7
        %v511 = vrot.slane %v499, 7
        %v512 = vrot.slane %v500, 7
        %v513 = vrot.slane %v501, 7
        %v514 = vrot.slane %v462, 7
        %v515 = vrot.slane %v463, 7
        %v516 = vrot.slane %v464, 7
        %v517 = vrot.slane %v465, 7
        %v518 = vrot.slane %v466, 7
        %v519 = vrot.slane %v467, 7
        %v520 = vrot.slane %v468, 7
        %v521 = vrot.slane %v469, 7
        %v522 = vrot.slane %v470, 7
        %v523 = vrot.slane %v471, 7
        %v524 = vrot.slane %v472, 7
        %v525 = vrot.slane %v473, 7
        %v526 = vrot.slane %v474, 7
        %v527 = vrot.slane %v475, 7
        %v528 = vrot.slane %v476, 7
        %v529 = vrot.slane %v477, 7
        %v530 = vrot.slane %v478, 7
        %v531 = vrot.slane %v479, 7
        %v532 = vrot.slane %v480, 7
        %v533 = vrot.slane %v481, 7
        %v534 = vrot.slane %v482, 7
        %v535 = vrot.slane %v483, 7
        %v536 = vrot.slane %v484, 7
        %v537 = vrot.slane %v485, 7
        %v538 = vrot.slane %v486, 7
        %v539 = vrot.slane %v487, 7
        %v540 = vrot.slane %v488, 7
        %v541 = vrot.slane %v489, 7
        %v542 = vrot.slane %v490, 7
        %v543 = vrot.slane %v491, 7
        %v544 = vrot.slane %v492, 7
        %v545 = vrot.slane %v493, 7
        %v546 = vrot.slane %v506, 7
        %v547 = vrot.slane %v507, 7
        %v548 = vrot.slane %v508, 7
        %v549 = vrot.slane %v509, 7
        %vm550 = vcmp.lt.s32.totalorder %v424, 1
        %v551 = vsel %vm550, %v548, %v549
        %v552 = vsel %vm550, %v547, %v548
        %v553 = vsel %vm550, %v546, %v547
        %v554 = vsel %vm550, %v545, %v546
        %v555 = vsel %vm550, %v544, %v545
        %v556 = vsel %vm550, %v543, %v544
        %v557 = vsel %vm550, %v542, %v543
        %v558 = vsel %vm550, %v541, %v542
        %v559 = vsel %vm550, %v540, %v541
        %v560 = vsel %vm550, %v539, %v540
        %v561 = vsel %vm550, %v538, %v539
        %v562 = vsel %vm550, %v537, %v538
        %v563 = vsel %vm550, %v536, %v537
        %v564 = vsel %vm550, %v535, %v536
        %v565 = vsel %vm550, %v534, %v535
        %v566 = vsel %vm550, %v533, %v534
        %v567 = vsel %vm550, %v532, %v533
        %v568 = vsel %vm550, %v531, %v532
        %v569 = vsel %vm550, %v530, %v531
        %v570 = vsel %vm550, %v529, %v530
        %v571 = vsel %vm550, %v528, %v529
        %v572 = vsel %vm550, %v527, %v528
        %v573 = vsel %vm550, %v526, %v527
        %v574 = vsel %vm550, %v525, %v526
        %v575 = vsel %vm550, %v524, %v525
        %v576 = vsel %vm550, %v523, %v524
        %v577 = vsel %vm550, %v522, %v523
        %v578 = vsel %vm550, %v521, %v522
        %v579 = vsel %vm550, %v520, %v521
        %v580 = vsel %vm550, %v519, %v520
        %v581 = vsel %vm550, %v518, %v519
        %v582 = vsel %vm550, %v517, %v518
        %v583 = vsel %vm550, %v516, %v517
        %v584 = vsel %vm550, %v515, %v516
        %v585 = vsel %vm550, %v514, %v515
        %v586 = vsel %vm550, %v513, %v514
        %v587 = vsel %vm550, %v512, %v513
        %v588 = vsel %vm550, %v511, %v512
        %v589 = vsel %vm550, %v510, %v511
        %v590 = vsel %vm550, %v549, %v510
        %v591 = vsel %vm426, %v590, 0.0
        %v592 = vsel %vm427, %v589, 0.0
        %v593 = vsel %vm426, %v588, 0.0
        %v594 = vsel %vm427, %v587, 0.0
        %v595 = vsel %vm426, %v586, 0.0
        %v596 = vsel %vm427, %v585, 0.0
        %v597 = vsel %vm426, %v584, 0.0
        %v598 = vsel %vm427, %v583, 0.0
        %v599 = vsel %vm426, %v582, 0.0
        %v600 = vsel %vm427, %v581, 0.0
        %v601 = vsel %vm426, %v580, 0.0
        %v602 = vsel %vm427, %v579, 0.0
        %v603 = vsel %vm426, %v578, 0.0
        %v604 = vsel %vm427, %v577, 0.0
        %v605 = vsel %vm426, %v576, 0.0
        %v606 = vsel %vm427, %v575, 0.0
        %v607 = vsel %vm426, %v574, 0.0
        %v608 = vsel %vm427, %v573, 0.0
        %v609 = vsel %vm426, %v572, 0.0
        %v610 = vsel %vm427, %v571, 0.0
        %v611 = vsel %vm426, %v570, 0.0
        %v612 = vsel %vm427, %v569, 0.0
        %v613 = vsel %vm426, %v568, 0.0
        %v614 = vsel %vm427, %v567, 0.0
        %v615 = vsel %vm426, %v566, 0.0
        %v616 = vsel %vm427, %v565, 0.0
        %v617 = vsel %vm426, %v564, 0.0
        %v618 = vsel %vm427, %v563, 0.0
        %v619 = vsel %vm426, %v562, 0.0
        %v620 = vsel %vm427, %v561, 0.0
        %v621 = vsel %vm426, %v560, 0.0
        %v622 = vsel %vm427, %v559, 0.0
        %v623 = vsel %vm426, %v558, 0.0
        %v624 = vsel %vm427, %v557, 0.0
        %v625 = vsel %vm426, %v556, 0.0
        %v626 = vsel %vm427, %v555, 0.0
        %v627 = vsel %vm426, %v554, 0.0
        %v628 = vsel %vm427, %v553, 0.0
        %v629 = vsel %vm426, %v552, 0.0
        %v630 = vsel %vm427, %v551, 0.0
        %v631 = vrot.slane %v498, 1
        %v632 = vrot.slane %v499, 1
        %v633 = vrot.slane %v500, 1
        %v634 = vrot.slane %v501, 1
        %v635 = vrot.slane %v462, 1
        %v636 = vrot.slane %v463, 1
        %v637 = vrot.slane %v464, 1
        %v638 = vrot.slane %v465, 1
        %v639 = vrot.slane %v466, 1
        %v640 = vrot.slane %v467, 1
        %v641 = vrot.slane %v468, 1
        %v642 = vrot.slane %v469, 1
        %v643 = vrot.slane %v470, 1
        %v644 = vrot.slane %v471, 1
        %v645 = vrot.slane %v472, 1
        %v646 = vrot.slane %v473, 1
        %v647 = vrot.slane %v474, 1
        %v648 = vrot.slane %v475, 1
        %v649 = vrot.slane %v476, 1
        %v650 = vrot.slane %v477, 1
        %v651 = vrot.slane %v478, 1
        %v652 = vrot.slane %v479, 1
        %v653 = vrot.slane %v480, 1
        %v654 = vrot.slane %v481, 1
        %v655 = vrot.slane %v482, 1
        %v656 = vrot.slane %v483, 1
        %v657 = vrot.slane %v484, 1
        %v658 = vrot.slane %v485, 1
        %v659 = vrot.slane %v486, 1
        %v660 = vrot.slane %v487, 1
        %v661 = vrot.slane %v488, 1
        %v662 = vrot.slane %v489, 1
        %v663 = vrot.slane %v490, 1
        %v664 = vrot.slane %v491, 1
        %v665 = vrot.slane %v492, 1
        %v666 = vrot.slane %v493, 1
        %v667 = vrot.slane %v506, 1
        %v668 = vrot.slane %v507, 1
        %v669 = vrot.slane %v508, 1
        %v670 = vrot.slane %v509, 1
        %vm671 = vcmp.lt.s32.totalorder %v424, 7
        %v672 = vsel %vm671, %v669, %v670
        %v673 = vsel %vm671, %v668, %v669
        %v674 = vsel %vm671, %v667, %v668
        %v675 = vsel %vm671, %v666, %v667
        %v676 = vsel %vm671, %v665, %v666
        %v677 = vsel %vm671, %v664, %v665
        %v678 = vsel %vm671, %v663, %v664
        %v679 = vsel %vm671, %v662, %v663
        %v680 = vsel %vm671, %v661, %v662
        %v681 = vsel %vm671, %v660, %v661
        %v682 = vsel %vm671, %v659, %v660
        %v683 = vsel %vm671, %v658, %v659
        %v684 = vsel %vm671, %v657, %v658
        %v685 = vsel %vm671, %v656, %v657
        %v686 = vsel %vm671, %v655, %v656
        %v687 = vsel %vm671, %v654, %v655
        %v688 = vsel %vm671, %v653, %v654
        %v689 = vsel %vm671, %v652, %v653
        %v690 = vsel %vm671, %v651, %v652
        %v691 = vsel %vm671, %v650, %v651
        %v692 = vsel %vm671, %v649, %v650
        %v693 = vsel %vm671, %v648, %v649
        %v694 = vsel %vm671, %v647, %v648
        %v695 = vsel %vm671, %v646, %v647
        %v696 = vsel %vm671, %v645, %v646
        %v697 = vsel %vm671, %v644, %v645
        %v698 = vsel %vm671, %v643, %v644
        %v699 = vsel %vm671, %v642, %v643
        %v700 = vsel %vm671, %v641, %v642
        %v701 = vsel %vm671, %v640, %v641
        %v702 = vsel %vm671, %v639, %v640
        %v703 = vsel %vm671, %v638, %v639
        %v704 = vsel %vm671, %v637, %v638
        %v705 = vsel %vm671, %v636, %v637
        %v706 = vsel %vm671, %v635, %v636
        %v707 = vsel %vm671, %v634, %v635
        %v708 = vsel %vm671, %v633, %v634
        %v709 = vsel %vm671, %v632, %v633
        %v710 = vsel %vm671, %v631, %v632
        %v711 = vsel %vm671, %v670, %v631
        %v712 = vsel %vm428, %v710, 0.0
        %v713 = vsel %vm429, %v709, 0.0
        %v714 = vsel %vm428, %v708, 0.0
        %v715 = vsel %vm429, %v707, 0.0
        %v716 = vsel %vm428, %v706, 0.0
        %v717 = vsel %vm429, %v705, 0.0
        %v718 = vsel %vm428, %v704, 0.0
        %v719 = vsel %vm429, %v703, 0.0
        %v720 = vsel %vm428, %v702, 0.0
        %v721 = vsel %vm429, %v701, 0.0
        %v722 = vsel %vm428, %v700, 0.0
        %v723 = vsel %vm429, %v699, 0.0
        %v724 = vsel %vm428, %v698, 0.0
        %v725 = vsel %vm429, %v697, 0.0
        %v726 = vsel %vm428, %v696, 0.0
        %v727 = vsel %vm429, %v695, 0.0
        %v728 = vsel %vm428, %v694, 0.0
        %v729 = vsel %vm429, %v693, 0.0
        %v730 = vsel %vm428, %v692, 0.0
        %v731 = vsel %vm429, %v691, 0.0
        %v732 = vsel %vm428, %v690, 0.0
        %v733 = vsel %vm429, %v689, 0.0
        %v734 = vsel %vm428, %v688, 0.0
        %v735 = vsel %vm429, %v687, 0.0
        %v736 = vsel %vm428, %v686, 0.0
        %v737 = vsel %vm429, %v685, 0.0
        %v738 = vsel %vm428, %v684, 0.0
        %v739 = vsel %vm429, %v683, 0.0
        %v740 = vsel %vm428, %v682, 0.0
        %v741 = vsel %vm429, %v681, 0.0
        %v742 = vsel %vm428, %v680, 0.0
        %v743 = vsel %vm429, %v679, 0.0
        %v744 = vsel %vm428, %v678, 0.0
        %v745 = vsel %vm429, %v677, 0.0
        %v746 = vsel %vm428, %v676, 0.0
        %v747 = vsel %vm429, %v675, 0.0
        %v748 = vsel %vm428, %v674, 0.0
        %v749 = vsel %vm429, %v673, 0.0
        %v750 = vsel %vm428, %v672, 0.0
        %v751 = vsel %vm429, %v711, 0.0
        %v752 = vpack.c.bf16 %v591, %v591
        %v753 = vpack.c.bf16 %v592, %v592
        %v754 = vpack.c.bf16 %v593, %v593
        %v755 = vpack.c.bf16 %v594, %v594
        %v756 = vpack.c.bf16 %v595, %v595
        %v757 = vpack.c.bf16 %v596, %v596
        %v758 = vpack.c.bf16 %v597, %v597
        %v759 = vpack.c.bf16 %v598, %v598
        %v760 = vpack.c.bf16 %v599, %v599
        %v761 = vpack.c.bf16 %v600, %v600
        %v762 = vpack.c.bf16 %v601, %v601
        %v763 = vpack.c.bf16 %v602, %v602
        %v764 = vpack.c.bf16 %v603, %v603
        %v765 = vpack.c.bf16 %v604, %v604
        %v766 = vpack.c.bf16 %v605, %v605
        %v767 = vpack.c.bf16 %v606, %v606
        %v768 = vpack.c.bf16 %v607, %v607
        %v769 = vpack.c.bf16 %v608, %v608
        %v770 = vpack.c.bf16 %v609, %v609
        %v771 = vpack.c.bf16 %v610, %v610
        %v772 = vpack.c.bf16 %v611, %v611
        %v773 = vpack.c.bf16 %v612, %v612
        %v774 = vpack.c.bf16 %v613, %v613
        %v775 = vpack.c.bf16 %v614, %v614
        %v776 = vpack.c.bf16 %v615, %v615
        %v777 = vpack.c.bf16 %v616, %v616
        %v778 = vpack.c.bf16 %v617, %v617
        %v779 = vpack.c.bf16 %v618, %v618
        %v780 = vpack.c.bf16 %v619, %v619
        %v781 = vpack.c.bf16 %v620, %v620
        %v782 = vpack.c.bf16 %v621, %v621
        %v783 = vpack.c.bf16 %v622, %v622
        %v784 = vpack.c.bf16 %v623, %v623
        %v785 = vpack.c.bf16 %v624, %v624
        %v786 = vpack.c.bf16 %v625, %v625
        %v787 = vpack.c.bf16 %v626, %v626
        %v788 = vpack.c.bf16 %v627, %v627
        %v789 = vpack.c.bf16 %v628, %v628
        %v790 = vpack.c.bf16 %v629, %v629
        %v791 = vpack.c.bf16 %v630, %v630
        %v792 = vpack.c.bf16 %v498, %v498
        %v793 = vpack.c.bf16 %v499, %v499
        %v794 = vpack.c.bf16 %v500, %v500
        %v795 = vpack.c.bf16 %v501, %v501
        %v796 = vpack.c.bf16 %v462, %v462
        %v797 = vpack.c.bf16 %v463, %v463
        %v798 = vpack.c.bf16 %v464, %v464
        %v799 = vpack.c.bf16 %v465, %v465
        %v800 = vpack.c.bf16 %v466, %v466
        %v801 = vpack.c.bf16 %v467, %v467
        %v802 = vpack.c.bf16 %v468, %v468
        %v803 = vpack.c.bf16 %v469, %v469
        %v804 = vpack.c.bf16 %v470, %v470
        %v805 = vpack.c.bf16 %v471, %v471
        %v806 = vpack.c.bf16 %v472, %v472
        %v807 = vpack.c.bf16 %v473, %v473
        %v808 = vpack.c.bf16 %v474, %v474
        %v809 = vpack.c.bf16 %v475, %v475
        %v810 = vpack.c.bf16 %v476, %v476
        %v811 = vpack.c.bf16 %v477, %v477
        %v812 = vpack.c.bf16 %v478, %v478
        %v813 = vpack.c.bf16 %v479, %v479
        %v814 = vpack.c.bf16 %v480, %v480
        %v815 = vpack.c.bf16 %v481, %v481
        %v816 = vpack.c.bf16 %v482, %v482
        %v817 = vpack.c.bf16 %v483, %v483
        %v818 = vpack.c.bf16 %v484, %v484
        %v819 = vpack.c.bf16 %v485, %v485
        %v820 = vpack.c.bf16 %v486, %v486
        %v821 = vpack.c.bf16 %v487, %v487
        %v822 = vpack.c.bf16 %v488, %v488
        %v823 = vpack.c.bf16 %v489, %v489
        %v824 = vpack.c.bf16 %v490, %v490
        %v825 = vpack.c.bf16 %v491, %v491
        %v826 = vpack.c.bf16 %v492, %v492
        %v827 = vpack.c.bf16 %v493, %v493
        %v828 = vpack.c.bf16 %v506, %v506
        %v829 = vpack.c.bf16 %v507, %v507
        %v830 = vpack.c.bf16 %v508, %v508
        %v831 = vpack.c.bf16 %v509, %v509
        %v832 = vpack.c.bf16 %v712, %v712
        %v833 = vpack.c.bf16 %v713, %v713
        %v834 = vpack.c.bf16 %v714, %v714
        %v835 = vpack.c.bf16 %v715, %v715
        %v836 = vpack.c.bf16 %v716, %v716
        %v837 = vpack.c.bf16 %v717, %v717
        %v838 = vpack.c.bf16 %v718, %v718
        %v839 = vpack.c.bf16 %v719, %v719
        %v840 = vpack.c.bf16 %v720, %v720
        %v841 = vpack.c.bf16 %v721, %v721
        %v842 = vpack.c.bf16 %v722, %v722
        %v843 = vpack.c.bf16 %v723, %v723
        %v844 = vpack.c.bf16 %v724, %v724
        %v845 = vpack.c.bf16 %v725, %v725
        %v846 = vpack.c.bf16 %v726, %v726
        %v847 = vpack.c.bf16 %v727, %v727
        %v848 = vpack.c.bf16 %v728, %v728
        %v849 = vpack.c.bf16 %v729, %v729
        %v850 = vpack.c.bf16 %v730, %v730
        %v851 = vpack.c.bf16 %v731, %v731
        %v852 = vpack.c.bf16 %v732, %v732
        %v853 = vpack.c.bf16 %v733, %v733
        %v854 = vpack.c.bf16 %v734, %v734
        %v855 = vpack.c.bf16 %v735, %v735
        %v856 = vpack.c.bf16 %v736, %v736
        %v857 = vpack.c.bf16 %v737, %v737
        %v858 = vpack.c.bf16 %v738, %v738
        %v859 = vpack.c.bf16 %v739, %v739
        %v860 = vpack.c.bf16 %v740, %v740
        %v861 = vpack.c.bf16 %v741, %v741
        %v862 = vpack.c.bf16 %v742, %v742
        %v863 = vpack.c.bf16 %v743, %v743
        %v864 = vpack.c.bf16 %v744, %v744
        %v865 = vpack.c.bf16 %v745, %v745
        %v866 = vpack.c.bf16 %v746, %v746
        %v867 = vpack.c.bf16 %v747, %v747
        %v868 = vpack.c.bf16 %v748, %v748
        %v869 = vpack.c.bf16 %v749, %v749
        %v870 = vpack.c.bf16 %v750, %v750
        %v871 = vpack.c.bf16 %v751, %v751
        %v912 = vunpack.c.l.b16 %v752
        %v913 = vunpack.c.l.b16 %v753
        %v914 = vunpack.c.l.b16 %v754
        %v915 = vunpack.c.l.b16 %v755
        %v916 = vunpack.c.l.b16 %v756
        %v917 = vunpack.c.l.b16 %v757
        %v918 = vunpack.c.l.b16 %v758
        %v919 = vunpack.c.l.b16 %v759
        %v920 = vunpack.c.l.b16 %v760
        %v921 = vunpack.c.l.b16 %v761
        %v922 = vunpack.c.l.b16 %v762
        %v923 = vunpack.c.l.b16 %v763
        %v924 = vunpack.c.l.b16 %v764
        %v925 = vunpack.c.l.b16 %v765
        %v926 = vunpack.c.l.b16 %v766
        %v927 = vunpack.c.l.b16 %v767
        %v928 = vunpack.c.l.b16 %v768
        %v929 = vunpack.c.l.b16 %v769
        %v930 = vunpack.c.l.b16 %v770
        %v931 = vunpack.c.l.b16 %v771
        %v932 = vunpack.c.l.b16 %v772
        %v933 = vunpack.c.l.b16 %v773
        %v934 = vunpack.c.l.b16 %v774
        %v935 = vunpack.c.l.b16 %v775
        %v936 = vunpack.c.l.b16 %v776
        %v937 = vunpack.c.l.b16 %v777
        %v938 = vunpack.c.l.b16 %v778
        %v939 = vunpack.c.l.b16 %v779
        %v940 = vunpack.c.l.b16 %v780
        %v941 = vunpack.c.l.b16 %v781
        %v942 = vunpack.c.l.b16 %v782
        %v943 = vunpack.c.l.b16 %v783
        %v944 = vunpack.c.l.b16 %v784
        %v945 = vunpack.c.l.b16 %v785
        %v946 = vunpack.c.l.b16 %v786
        %v947 = vunpack.c.l.b16 %v787
        %v948 = vunpack.c.l.b16 %v788
        %v949 = vunpack.c.l.b16 %v789
        %v950 = vunpack.c.l.b16 %v790
        %v951 = vunpack.c.l.b16 %v791
        %v952 = vpack.c.b16 %v913, %v912
        %v953 = vpack.c.b16 %v915, %v914
        %v954 = vpack.c.b16 %v917, %v916
        %v955 = vpack.c.b16 %v919, %v918
        %v956 = vpack.c.b16 %v921, %v920
        %v957 = vpack.c.b16 %v923, %v922
        %v958 = vpack.c.b16 %v925, %v924
        %v959 = vpack.c.b16 %v927, %v926
        %v960 = vpack.c.b16 %v929, %v928
        %v961 = vpack.c.b16 %v931, %v930
        %v962 = vpack.c.b16 %v933, %v932
        %v963 = vpack.c.b16 %v935, %v934
        %v964 = vpack.c.b16 %v937, %v936
        %v965 = vpack.c.b16 %v939, %v938
        %v966 = vpack.c.b16 %v941, %v940
        %v967 = vpack.c.b16 %v943, %v942
        %v968 = vpack.c.b16 %v945, %v944
        %v969 = vpack.c.b16 %v947, %v946
        %v970 = vpack.c.b16 %v949, %v948
        %v971 = vpack.c.b16 %v951, %v950
        %v1012 = vunpack.c.l.b16 %v792
        %v1013 = vunpack.c.l.b16 %v793
        %v1014 = vunpack.c.l.b16 %v794
        %v1015 = vunpack.c.l.b16 %v795
        %v1016 = vunpack.c.l.b16 %v796
        %v1017 = vunpack.c.l.b16 %v797
        %v1018 = vunpack.c.l.b16 %v798
        %v1019 = vunpack.c.l.b16 %v799
        %v1020 = vunpack.c.l.b16 %v800
        %v1021 = vunpack.c.l.b16 %v801
        %v1022 = vunpack.c.l.b16 %v802
        %v1023 = vunpack.c.l.b16 %v803
        %v1024 = vunpack.c.l.b16 %v804
        %v1025 = vunpack.c.l.b16 %v805
        %v1026 = vunpack.c.l.b16 %v806
        %v1027 = vunpack.c.l.b16 %v807
        %v1028 = vunpack.c.l.b16 %v808
        %v1029 = vunpack.c.l.b16 %v809
        %v1030 = vunpack.c.l.b16 %v810
        %v1031 = vunpack.c.l.b16 %v811
        %v1032 = vunpack.c.l.b16 %v812
        %v1033 = vunpack.c.l.b16 %v813
        %v1034 = vunpack.c.l.b16 %v814
        %v1035 = vunpack.c.l.b16 %v815
        %v1036 = vunpack.c.l.b16 %v816
        %v1037 = vunpack.c.l.b16 %v817
        %v1038 = vunpack.c.l.b16 %v818
        %v1039 = vunpack.c.l.b16 %v819
        %v1040 = vunpack.c.l.b16 %v820
        %v1041 = vunpack.c.l.b16 %v821
        %v1042 = vunpack.c.l.b16 %v822
        %v1043 = vunpack.c.l.b16 %v823
        %v1044 = vunpack.c.l.b16 %v824
        %v1045 = vunpack.c.l.b16 %v825
        %v1046 = vunpack.c.l.b16 %v826
        %v1047 = vunpack.c.l.b16 %v827
        %v1048 = vunpack.c.l.b16 %v828
        %v1049 = vunpack.c.l.b16 %v829
        %v1050 = vunpack.c.l.b16 %v830
        %v1051 = vunpack.c.l.b16 %v831
        %v1052 = vpack.c.b16 %v1013, %v1012
        %v1053 = vpack.c.b16 %v1015, %v1014
        %v1054 = vpack.c.b16 %v1017, %v1016
        %v1055 = vpack.c.b16 %v1019, %v1018
        %v1056 = vpack.c.b16 %v1021, %v1020
        %v1057 = vpack.c.b16 %v1023, %v1022
        %v1058 = vpack.c.b16 %v1025, %v1024
        %v1059 = vpack.c.b16 %v1027, %v1026
        %v1060 = vpack.c.b16 %v1029, %v1028
        %v1061 = vpack.c.b16 %v1031, %v1030
        %v1062 = vpack.c.b16 %v1033, %v1032
        %v1063 = vpack.c.b16 %v1035, %v1034
        %v1064 = vpack.c.b16 %v1037, %v1036
        %v1065 = vpack.c.b16 %v1039, %v1038
        %v1066 = vpack.c.b16 %v1041, %v1040
        %v1067 = vpack.c.b16 %v1043, %v1042
        %v1068 = vpack.c.b16 %v1045, %v1044
        %v1069 = vpack.c.b16 %v1047, %v1046
        %v1070 = vpack.c.b16 %v1049, %v1048
        %v1071 = vpack.c.b16 %v1051, %v1050
        %1072 = vrot.lane.b32.xlu0 %v1052, 16
        %v1073 = vpop.permute.xlu0 %1072
        %1074 = vrot.lane.b32.xlu0 %v1053, 16
        %v1075 = vpop.permute.xlu0 %1074
        %1076 = vrot.lane.b32.xlu0 %v1054, 16
        %v1077 = vpop.permute.xlu0 %1076
        %1078 = vrot.lane.b32.xlu0 %v1055, 16
        %v1079 = vpop.permute.xlu0 %1078
        %1080 = vrot.lane.b32.xlu0 %v1056, 16
        %v1081 = vpop.permute.xlu0 %1080
        %1082 = vrot.lane.b32.xlu0 %v1057, 16
        %v1083 = vpop.permute.xlu0 %1082
        %1084 = vrot.lane.b32.xlu0 %v1058, 16
        %v1085 = vpop.permute.xlu0 %1084
        %1086 = vrot.lane.b32.xlu0 %v1059, 16
        %v1087 = vpop.permute.xlu0 %1086
        %1088 = vrot.lane.b32.xlu0 %v1060, 16
        %v1089 = vpop.permute.xlu0 %1088
        %1090 = vrot.lane.b32.xlu0 %v1061, 16
        %v1091 = vpop.permute.xlu0 %1090
        %1092 = vrot.lane.b32.xlu0 %v1062, 16
        %v1093 = vpop.permute.xlu0 %1092
        %1094 = vrot.lane.b32.xlu0 %v1063, 16
        %v1095 = vpop.permute.xlu0 %1094
        %1096 = vrot.lane.b32.xlu0 %v1064, 16
        %v1097 = vpop.permute.xlu0 %1096
        %1098 = vrot.lane.b32.xlu0 %v1065, 16
        %v1099 = vpop.permute.xlu0 %1098
        %1100 = vrot.lane.b32.xlu0 %v1066, 16
        %v1101 = vpop.permute.xlu0 %1100
        %1102 = vrot.lane.b32.xlu0 %v1067, 16
        %v1103 = vpop.permute.xlu0 %1102
        %1104 = vrot.lane.b32.xlu0 %v1068, 16
        %v1105 = vpop.permute.xlu0 %1104
        %1106 = vrot.lane.b32.xlu0 %v1069, 16
        %v1107 = vpop.permute.xlu0 %1106
        %1108 = vrot.lane.b32.xlu0 %v1070, 16
        %v1109 = vpop.permute.xlu0 %1108
        %1110 = vrot.lane.b32.xlu0 %v1071, 16
        %v1111 = vpop.permute.xlu0 %1110
        %v1152 = vunpack.c.l.b16 %v832
        %v1153 = vunpack.c.l.b16 %v833
        %v1154 = vunpack.c.l.b16 %v834
        %v1155 = vunpack.c.l.b16 %v835
        %v1156 = vunpack.c.l.b16 %v836
        %v1157 = vunpack.c.l.b16 %v837
        %v1158 = vunpack.c.l.b16 %v838
        %v1159 = vunpack.c.l.b16 %v839
        %v1160 = vunpack.c.l.b16 %v840
        %v1161 = vunpack.c.l.b16 %v841
        %v1162 = vunpack.c.l.b16 %v842
        %v1163 = vunpack.c.l.b16 %v843
        %v1164 = vunpack.c.l.b16 %v844
        %v1165 = vunpack.c.l.b16 %v845
        %v1166 = vunpack.c.l.b16 %v846
        %v1167 = vunpack.c.l.b16 %v847
        %v1168 = vunpack.c.l.b16 %v848
        %v1169 = vunpack.c.l.b16 %v849
        %v1170 = vunpack.c.l.b16 %v850
        %v1171 = vunpack.c.l.b16 %v851
        %v1172 = vunpack.c.l.b16 %v852
        %v1173 = vunpack.c.l.b16 %v853
        %v1174 = vunpack.c.l.b16 %v854
        %v1175 = vunpack.c.l.b16 %v855
        %v1176 = vunpack.c.l.b16 %v856
        %v1177 = vunpack.c.l.b16 %v857
        %v1178 = vunpack.c.l.b16 %v858
        %v1179 = vunpack.c.l.b16 %v859
        %v1180 = vunpack.c.l.b16 %v860
        %v1181 = vunpack.c.l.b16 %v861
        %v1182 = vunpack.c.l.b16 %v862
        %v1183 = vunpack.c.l.b16 %v863
        %v1184 = vunpack.c.l.b16 %v864
        %v1185 = vunpack.c.l.b16 %v865
        %v1186 = vunpack.c.l.b16 %v866
        %v1187 = vunpack.c.l.b16 %v867
        %v1188 = vunpack.c.l.b16 %v868
        %v1189 = vunpack.c.l.b16 %v869
        %v1190 = vunpack.c.l.b16 %v870
        %v1191 = vunpack.c.l.b16 %v871
        %v1192 = vpack.c.b16 %v1153, %v1152
        %v1193 = vpack.c.b16 %v1155, %v1154
        %v1194 = vpack.c.b16 %v1157, %v1156
        %v1195 = vpack.c.b16 %v1159, %v1158
        %v1196 = vpack.c.b16 %v1161, %v1160
        %v1197 = vpack.c.b16 %v1163, %v1162
        %v1198 = vpack.c.b16 %v1165, %v1164
        %v1199 = vpack.c.b16 %v1167, %v1166
        %v1200 = vpack.c.b16 %v1169, %v1168
        %v1201 = vpack.c.b16 %v1171, %v1170
        %v1202 = vpack.c.b16 %v1173, %v1172
        %v1203 = vpack.c.b16 %v1175, %v1174
        %v1204 = vpack.c.b16 %v1177, %v1176
        %v1205 = vpack.c.b16 %v1179, %v1178
        %v1206 = vpack.c.b16 %v1181, %v1180
        %v1207 = vpack.c.b16 %v1183, %v1182
        %v1208 = vpack.c.b16 %v1185, %v1184
        %v1209 = vpack.c.b16 %v1187, %v1186
        %v1210 = vpack.c.b16 %v1189, %v1188
        %v1211 = vpack.c.b16 %v1191, %v1190
        %1212 = vrot.lane.b32.xlu0 %v1192, 32
        %v1213 = vpop.permute.xlu0 %1212
        %1214 = vrot.lane.b32.xlu0 %v1193, 32
        %v1215 = vpop.permute.xlu0 %1214
        %1216 = vrot.lane.b32.xlu0 %v1194, 32
        %v1217 = vpop.permute.xlu0 %1216
        %1218 = vrot.lane.b32.xlu0 %v1195, 32
        %v1219 = vpop.permute.xlu0 %1218
        %1220 = vrot.lane.b32.xlu0 %v1196, 32
        %v1221 = vpop.permute.xlu0 %1220
        %1222 = vrot.lane.b32.xlu0 %v1197, 32
        %v1223 = vpop.permute.xlu0 %1222
        %1224 = vrot.lane.b32.xlu0 %v1198, 32
        %v1225 = vpop.permute.xlu0 %1224
        %1226 = vrot.lane.b32.xlu0 %v1199, 32
        %v1227 = vpop.permute.xlu0 %1226
        %1228 = vrot.lane.b32.xlu0 %v1200, 32
        %v1229 = vpop.permute.xlu0 %1228
        %1230 = vrot.lane.b32.xlu0 %v1201, 32
        %v1231 = vpop.permute.xlu0 %1230
        %1232 = vrot.lane.b32.xlu0 %v1202, 32
        %v1233 = vpop.permute.xlu0 %1232
        %1234 = vrot.lane.b32.xlu0 %v1203, 32
        %v1235 = vpop.permute.xlu0 %1234
        %1236 = vrot.lane.b32.xlu0 %v1204, 32
        %v1237 = vpop.permute.xlu0 %1236
        %1238 = vrot.lane.b32.xlu0 %v1205, 32
        %v1239 = vpop.permute.xlu0 %1238
        %1240 = vrot.lane.b32.xlu0 %v1206, 32
        %v1241 = vpop.permute.xlu0 %1240
        %1242 = vrot.lane.b32.xlu0 %v1207, 32
        %v1243 = vpop.permute.xlu0 %1242
        %1244 = vrot.lane.b32.xlu0 %v1208, 32
        %v1245 = vpop.permute.xlu0 %1244
        %1246 = vrot.lane.b32.xlu0 %v1209, 32
        %v1247 = vpop.permute.xlu0 %1246
        %1248 = vrot.lane.b32.xlu0 %v1210, 32
        %v1249 = vpop.permute.xlu0 %1248
        %1250 = vrot.lane.b32.xlu0 %v1211, 32
        %v1251 = vpop.permute.xlu0 %1250
        %vm1252 = vcmask 130048
        %v1255 = vsel %vm1252, %v952, %v1073
        %v1258 = vsel %vm1252, %v953, %v1075
        %v1261 = vsel %vm1252, %v954, %v1077
        %v1264 = vsel %vm1252, %v955, %v1079
        %v1267 = vsel %vm1252, %v956, %v1081
        %v1270 = vsel %vm1252, %v957, %v1083
        %v1273 = vsel %vm1252, %v958, %v1085
        %v1276 = vsel %vm1252, %v959, %v1087
        %v1279 = vsel %vm1252, %v960, %v1089
        %v1282 = vsel %vm1252, %v961, %v1091
        %v1285 = vsel %vm1252, %v962, %v1093
        %v1288 = vsel %vm1252, %v963, %v1095
        %v1291 = vsel %vm1252, %v964, %v1097
        %v1294 = vsel %vm1252, %v965, %v1099
        %v1297 = vsel %vm1252, %v966, %v1101
        %v1300 = vsel %vm1252, %v967, %v1103
        %v1303 = vsel %vm1252, %v968, %v1105
        %v1306 = vsel %vm1252, %v969, %v1107
        %v1309 = vsel %vm1252, %v970, %v1109
        %v1312 = vsel %vm1252, %v971, %v1111
        %vm1313 = vcmask 261120
        %v1315 = vsel %vm1313, %v1255, %v1213
        %v1317 = vsel %vm1313, %v1258, %v1215
        %v1319 = vsel %vm1313, %v1261, %v1217
        %v1321 = vsel %vm1313, %v1264, %v1219
        %v1323 = vsel %vm1313, %v1267, %v1221
        %v1325 = vsel %vm1313, %v1270, %v1223
        %v1327 = vsel %vm1313, %v1273, %v1225
        %v1329 = vsel %vm1313, %v1276, %v1227
        %v1331 = vsel %vm1313, %v1279, %v1229
        %v1333 = vsel %vm1313, %v1282, %v1231
        %v1335 = vsel %vm1313, %v1285, %v1233
        %v1337 = vsel %vm1313, %v1288, %v1235
        %v1339 = vsel %vm1313, %v1291, %v1237
        %v1341 = vsel %vm1313, %v1294, %v1239
        %v1343 = vsel %vm1313, %v1297, %v1241
        %v1345 = vsel %vm1313, %v1300, %v1243
        %v1347 = vsel %vm1313, %v1303, %v1245
        %v1349 = vsel %vm1313, %v1306, %v1247
        %v1351 = vsel %vm1313, %v1309, %v1249
        %v1353 = vsel %vm1313, %v1312, %v1251
        %v1354 = vld [vmem:[%s5] sm:$0xf]
        %v1355 = vld [vmem:[%s5 + $0x4] sm:$0xf]
        %v1356 = vld [vmem:[%s5 + $0x8] sm:$0xf]
        %v1357 = vld [vmem:[%s5 + $0xc] sm:$0xf]
        %v1358 = vld [vmem:[%s5 + $0x10] sm:$0xf]
        %v1359 = vld [vmem:[%s5 + $0x14] sm:$0xf]
        %s1360 = scalar_lea.vmem %s5, 24
        %v1361 = vld [vmem:[%s1360] sm:$0xf]
        %v1362 = vld [vmem:[%s1360 + $0x4] sm:$0xf]
        %v1363 = vld [vmem:[%s1360 + $0x8] sm:$0xf]
        %v1364 = vld [vmem:[%s1360 + $0xc] sm:$0xf]
        %v1365 = vld [vmem:[%s1360 + $0x10] sm:$0xf]
        %v1366 = vld [vmem:[%s1360 + $0x14] sm:$0xf]
        %v1373 = vunpack.c.l.b16 %v1361
        %v1374 = vunpack.c.l.b16 %v1362
        %v1375 = vunpack.c.l.b16 %v1363
        %v1376 = vunpack.c.l.b16 %v1364
        %v1377 = vunpack.c.l.b16 %v1365
        %v1378 = vunpack.c.l.b16 %v1366
        %v1379 = vpack.c.b16 %v1374, %v1373
        %v1380 = vpack.c.b16 %v1376, %v1375
        %v1381 = vpack.c.b16 %v1378, %v1377
        %vm1385 = vcmask 392192
        %v1386 = vsel %vm1385, %v1317, 0
        %v1388 = vsel %vm1385, %v1319, 0
        %v1390 = vsel %vm1385, %v1321, 0
        %v1392 = vsel %vm1385, %v1323, 0
        %v1394 = vsel %vm1385, %v1325, 0
        %v1396 = vsel %vm1385, %v1327, 0
        %v1398 = vsel %vm1385, %v1329, 0
        %v1400 = vsel %vm1385, %v1331, 0
        %v1402 = vsel %vm1385, %v1333, 0
        %v1404 = vsel %vm1385, %v1335, 0
        %v1406 = vsel %vm1385, %v1337, 0
        %v1408 = vsel %vm1385, %v1339, 0
        %v1410 = vsel %vm1385, %v1341, 0
        %v1412 = vsel %vm1385, %v1343, 0
        %v1414 = vsel %vm1385, %v1345, 0
        %v1416 = vsel %vm1385, %v1347, 0
        %v1418 = vsel %vm1385, %v1349, 0
        %v1420 = vsel %vm1385, %v1351, 0
        %1422 = vmatpush.bf16.msra.mxu0 0
        %1423 = vmatpush.bf16.msra.mxu0 0
        %1424 = vmatpush.bf16.msra.mxu0 0
        %1425 = vmatpush.bf16.msra.mxu0 0
        %1426 = vmatpush.bf16.msra.mxu0 0
        %1427 = vmatpush.bf16.msra.mxu0 %v1381
        %1428 = vmatpush.bf16.msra.mxu0 %v1380
        %1429 = vmatpush.bf16.msra.mxu0 %v1379
        %1430 = vmatmul.bf16.gmra.mxu0 %v1386
        %v1431 = vpop.f32.mrf.mxu0
        %v1432 = vadd.f32 0.0, %v1431
        %v1433 = vpop.f32.mrf.mxu0
        %v1434 = vadd.f32 0.0, %v1433
        %1435 = vmatmul.bf16.gmra.mxu0 %v1388
        %v1436 = vpop.f32.mrf.mxu0
        %v1437 = vadd.f32 0.0, %v1436
        %v1438 = vpop.f32.mrf.mxu0
        %v1439 = vadd.f32 0.0, %v1438
        %1440 = vmatmul.bf16.gmra.mxu0 %v1390
        %v1441 = vpop.f32.mrf.mxu0
        %v1442 = vadd.f32 0.0, %v1441
        %v1443 = vpop.f32.mrf.mxu0
        %v1444 = vadd.f32 0.0, %v1443
        %1445 = vmatmul.bf16.gmra.mxu0 %v1392
        %v1446 = vpop.f32.mrf.mxu0
        %v1447 = vadd.f32 0.0, %v1446
        %v1448 = vpop.f32.mrf.mxu0
        %v1449 = vadd.f32 0.0, %v1448
        %1450 = vmatmul.bf16.gmra.mxu0 %v1394
        %v1451 = vpop.f32.mrf.mxu0
        %v1452 = vadd.f32 0.0, %v1451
        %v1453 = vpop.f32.mrf.mxu0
        %v1454 = vadd.f32 0.0, %v1453
        %1455 = vmatmul.bf16.gmra.mxu0 %v1396
        %v1456 = vpop.f32.mrf.mxu0
        %v1457 = vadd.f32 0.0, %v1456
        %v1458 = vpop.f32.mrf.mxu0
        %v1459 = vadd.f32 0.0, %v1458
        %1460 = vmatmul.bf16.gmra.mxu0 %v1398
        %v1461 = vpop.f32.mrf.mxu0
        %v1462 = vadd.f32 0.0, %v1461
        %v1463 = vpop.f32.mrf.mxu0
        %v1464 = vadd.f32 0.0, %v1463
        %1465 = vmatmul.bf16.gmra.mxu0 %v1400
        %v1466 = vpop.f32.mrf.mxu0
        %v1467 = vadd.f32 0.0, %v1466
        %v1468 = vpop.f32.mrf.mxu0
        %v1469 = vadd.f32 0.0, %v1468
        %1470 = vmatmul.bf16.gmra.mxu0 %v1402
        %v1471 = vpop.f32.mrf.mxu0
        %v1472 = vadd.f32 0.0, %v1471
        %v1473 = vpop.f32.mrf.mxu0
        %v1474 = vadd.f32 0.0, %v1473
        %1475 = vmatmul.bf16.gmra.mxu0 %v1404
        %v1476 = vpop.f32.mrf.mxu0
        %v1477 = vadd.f32 0.0, %v1476
        %v1478 = vpop.f32.mrf.mxu0
        %v1479 = vadd.f32 0.0, %v1478
        %1480 = vmatmul.bf16.gmra.mxu0 %v1406
        %v1481 = vpop.f32.mrf.mxu0
        %v1482 = vadd.f32 0.0, %v1481
        %v1483 = vpop.f32.mrf.mxu0
        %v1484 = vadd.f32 0.0, %v1483
        %1485 = vmatmul.bf16.gmra.mxu0 %v1408
        %v1486 = vpop.f32.mrf.mxu0
        %v1487 = vadd.f32 0.0, %v1486
        %v1488 = vpop.f32.mrf.mxu0
        %v1489 = vadd.f32 0.0, %v1488
        %1490 = vmatmul.bf16.gmra.mxu0 %v1410
        %v1491 = vpop.f32.mrf.mxu0
        %v1492 = vadd.f32 0.0, %v1491
        %v1493 = vpop.f32.mrf.mxu0
        %v1494 = vadd.f32 0.0, %v1493
        %1495 = vmatmul.bf16.gmra.mxu0 %v1412
        %v1496 = vpop.f32.mrf.mxu0
        %v1497 = vadd.f32 0.0, %v1496
        %v1498 = vpop.f32.mrf.mxu0
        %v1499 = vadd.f32 0.0, %v1498
        %1500 = vmatmul.bf16.gmra.mxu0 %v1414
        %v1501 = vpop.f32.mrf.mxu0
        %v1502 = vadd.f32 0.0, %v1501
        %v1503 = vpop.f32.mrf.mxu0
        %v1504 = vadd.f32 0.0, %v1503
        %1505 = vmatmul.bf16.gmra.mxu0 %v1416
        %v1506 = vpop.f32.mrf.mxu0
        %v1507 = vadd.f32 0.0, %v1506
        %v1508 = vpop.f32.mrf.mxu0
        %v1509 = vadd.f32 0.0, %v1508
        %1510 = vmatmul.bf16.gmra.mxu0 %v1418
        %v1511 = vpop.f32.mrf.mxu0
        %v1512 = vadd.f32 0.0, %v1511
        %v1513 = vpop.f32.mrf.mxu0
        %v1514 = vadd.f32 0.0, %v1513
        %1515 = vmatmul.bf16.gmra.mxu0 %v1420
        %v1516 = vpop.f32.mrf.mxu0
        %v1517 = vadd.f32 0.0, %v1516
        %v1518 = vpop.f32.mrf.mxu0
        %v1519 = vadd.f32 0.0, %v1518
        %1520 = vdwg.mxu0
        %v1527 = vunpack.c.l.b16 %v1354
        %v1528 = vunpack.c.l.b16 %v1355
        %v1529 = vunpack.c.l.b16 %v1356
        %v1530 = vunpack.c.l.b16 %v1357
        %v1531 = vunpack.c.l.b16 %v1358
        %v1532 = vunpack.c.l.b16 %v1359
        %v1533 = vpack.c.b16 %v1528, %v1527
        %v1534 = vpack.c.b16 %v1530, %v1529
        %v1535 = vpack.c.b16 %v1532, %v1531
        %v1539 = vsel %vm1385, %v1315, 0
        %1541 = vmatpush.bf16.msra.mxu0 0
        %1542 = vmatpush.bf16.msra.mxu0 0
        %1543 = vmatpush.bf16.msra.mxu0 0
        %1544 = vmatpush.bf16.msra.mxu0 0
        %1545 = vmatpush.bf16.msra.mxu0 0
        %1546 = vmatpush.bf16.msra.mxu0 %v1535
        %1547 = vmatpush.bf16.msra.mxu0 %v1534
        %1548 = vmatpush.bf16.msra.mxu0 %v1533
        %1549 = vmatmul.bf16.gmra.mxu0 %v1539
        %v1550 = vpop.f32.mrf.mxu0
        %v1551 = vadd.f32 %v1432, %v1550
        %v1552 = vpop.f32.mrf.mxu0
        %v1553 = vadd.f32 %v1434, %v1552
        %1554 = vmatmul.bf16.gmra.mxu0 %v1386
        %v1555 = vpop.f32.mrf.mxu0
        %v1556 = vadd.f32 %v1437, %v1555
        %v1557 = vpop.f32.mrf.mxu0
        %v1558 = vadd.f32 %v1439, %v1557
        %1559 = vmatmul.bf16.gmra.mxu0 %v1388
        %v1560 = vpop.f32.mrf.mxu0
        %v1561 = vadd.f32 %v1442, %v1560
        %v1562 = vpop.f32.mrf.mxu0
        %v1563 = vadd.f32 %v1444, %v1562
        %1564 = vmatmul.bf16.gmra.mxu0 %v1390
        %v1565 = vpop.f32.mrf.mxu0
        %v1566 = vadd.f32 %v1447, %v1565
        %v1567 = vpop.f32.mrf.mxu0
        %v1568 = vadd.f32 %v1449, %v1567
        %1569 = vmatmul.bf16.gmra.mxu0 %v1392
        %v1570 = vpop.f32.mrf.mxu0
        %v1571 = vadd.f32 %v1452, %v1570
        %v1572 = vpop.f32.mrf.mxu0
        %v1573 = vadd.f32 %v1454, %v1572
        %1574 = vmatmul.bf16.gmra.mxu0 %v1394
        %v1575 = vpop.f32.mrf.mxu0
        %v1576 = vadd.f32 %v1457, %v1575
        %v1577 = vpop.f32.mrf.mxu0
        %v1578 = vadd.f32 %v1459, %v1577
        %1579 = vmatmul.bf16.gmra.mxu0 %v1396
        %v1580 = vpop.f32.mrf.mxu0
        %v1581 = vadd.f32 %v1462, %v1580
        %v1582 = vpop.f32.mrf.mxu0
        %v1583 = vadd.f32 %v1464, %v1582
        %1584 = vmatmul.bf16.gmra.mxu0 %v1398
        %v1585 = vpop.f32.mrf.mxu0
        %v1586 = vadd.f32 %v1467, %v1585
        %v1587 = vpop.f32.mrf.mxu0
        %v1588 = vadd.f32 %v1469, %v1587
        %1589 = vmatmul.bf16.gmra.mxu0 %v1400
        %v1590 = vpop.f32.mrf.mxu0
        %v1591 = vadd.f32 %v1472, %v1590
        %v1592 = vpop.f32.mrf.mxu0
        %v1593 = vadd.f32 %v1474, %v1592
        %1594 = vmatmul.bf16.gmra.mxu0 %v1402
        %v1595 = vpop.f32.mrf.mxu0
        %v1596 = vadd.f32 %v1477, %v1595
        %v1597 = vpop.f32.mrf.mxu0
        %v1598 = vadd.f32 %v1479, %v1597
        %1599 = vmatmul.bf16.gmra.mxu0 %v1404
        %v1600 = vpop.f32.mrf.mxu0
        %v1601 = vadd.f32 %v1482, %v1600
        %v1602 = vpop.f32.mrf.mxu0
        %v1603 = vadd.f32 %v1484, %v1602
        %1604 = vmatmul.bf16.gmra.mxu0 %v1406
        %v1605 = vpop.f32.mrf.mxu0
        %v1606 = vadd.f32 %v1487, %v1605
        %v1607 = vpop.f32.mrf.mxu0
        %v1608 = vadd.f32 %v1489, %v1607
        %1609 = vmatmul.bf16.gmra.mxu0 %v1408
        %v1610 = vpop.f32.mrf.mxu0
        %v1611 = vadd.f32 %v1492, %v1610
        %v1612 = vpop.f32.mrf.mxu0
        %v1613 = vadd.f32 %v1494, %v1612
        %1614 = vmatmul.bf16.gmra.mxu0 %v1410
        %v1615 = vpop.f32.mrf.mxu0
        %v1616 = vadd.f32 %v1497, %v1615
        %v1617 = vpop.f32.mrf.mxu0
        %v1618 = vadd.f32 %v1499, %v1617
        %1619 = vmatmul.bf16.gmra.mxu0 %v1412
        %v1620 = vpop.f32.mrf.mxu0
        %v1621 = vadd.f32 %v1502, %v1620
        %v1622 = vpop.f32.mrf.mxu0
        %v1623 = vadd.f32 %v1504, %v1622
        %1624 = vmatmul.bf16.gmra.mxu0 %v1414
        %v1625 = vpop.f32.mrf.mxu0
        %v1626 = vadd.f32 %v1507, %v1625
        %v1627 = vpop.f32.mrf.mxu0
        %v1628 = vadd.f32 %v1509, %v1627
        %1629 = vmatmul.bf16.gmra.mxu0 %v1416
        %v1630 = vpop.f32.mrf.mxu0
        %v1631 = vadd.f32 %v1512, %v1630
        %v1632 = vpop.f32.mrf.mxu0
        %v1633 = vadd.f32 %v1514, %v1632
        %1634 = vmatmul.bf16.gmra.mxu0 %v1418
        %v1635 = vpop.f32.mrf.mxu0
        %v1636 = vadd.f32 %v1517, %v1635
        %v1637 = vpop.f32.mrf.mxu0
        %v1638 = vadd.f32 %v1519, %v1637
        %1639 = vdwg.mxu0
        %s1640 = scalar_lea.vmem %s5, 48
        %v1641 = vld [vmem:[%s1640] sm:$0xf]
        %v1642 = vld [vmem:[%s1640 + $0x4] sm:$0xf]
        %v1643 = vld [vmem:[%s1640 + $0x8] sm:$0xf]
        %v1644 = vld [vmem:[%s1640 + $0xc] sm:$0xf]
        %v1645 = vld [vmem:[%s1640 + $0x10] sm:$0xf]
        %v1646 = vld [vmem:[%s1640 + $0x14] sm:$0xf]
        %v1653 = vunpack.c.l.b16 %v1641
        %v1654 = vunpack.c.l.b16 %v1642
        %v1655 = vunpack.c.l.b16 %v1643
        %v1656 = vunpack.c.l.b16 %v1644
        %v1657 = vunpack.c.l.b16 %v1645
        %v1658 = vunpack.c.l.b16 %v1646
        %v1659 = vpack.c.b16 %v1654, %v1653
        %v1660 = vpack.c.b16 %v1656, %v1655
        %v1661 = vpack.c.b16 %v1658, %v1657
        %v1665 = vsel %vm1385, %v1353, 0
        %1667 = vmatpush.bf16.msra.mxu0 0
        %1668 = vmatpush.bf16.msra.mxu0 0
        %1669 = vmatpush.bf16.msra.mxu0 0
        %1670 = vmatpush.bf16.msra.mxu0 0
        %1671 = vmatpush.bf16.msra.mxu0 0
        %1672 = vmatpush.bf16.msra.mxu0 %v1661
        %1673 = vmatpush.bf16.msra.mxu0 %v1660
        %1674 = vmatpush.bf16.msra.mxu0 %v1659
        %1675 = vmatmul.bf16.gmra.mxu0 %v1388
        %v1676 = vpop.f32.mrf.mxu0
        %v1677 = vadd.f32 0.0, %v1676
        %v1678 = vpop.f32.mrf.mxu0
        %v1679 = vadd.f32 0.0, %v1678
        %1680 = vmatmul.bf16.gmra.mxu0 %v1390
        %v1681 = vpop.f32.mrf.mxu0
        %v1682 = vadd.f32 0.0, %v1681
        %v1683 = vpop.f32.mrf.mxu0
        %v1684 = vadd.f32 0.0, %v1683
        %1685 = vmatmul.bf16.gmra.mxu0 %v1392
        %v1686 = vpop.f32.mrf.mxu0
        %v1687 = vadd.f32 0.0, %v1686
        %v1688 = vpop.f32.mrf.mxu0
        %v1689 = vadd.f32 0.0, %v1688
        %1690 = vmatmul.bf16.gmra.mxu0 %v1394
        %v1691 = vpop.f32.mrf.mxu0
        %v1692 = vadd.f32 0.0, %v1691
        %v1693 = vpop.f32.mrf.mxu0
        %v1694 = vadd.f32 0.0, %v1693
        %1695 = vmatmul.bf16.gmra.mxu0 %v1396
        %v1696 = vpop.f32.mrf.mxu0
        %v1697 = vadd.f32 0.0, %v1696
        %v1698 = vpop.f32.mrf.mxu0
        %v1699 = vadd.f32 0.0, %v1698
        %1700 = vmatmul.bf16.gmra.mxu0 %v1398
        %v1701 = vpop.f32.mrf.mxu0
        %v1702 = vadd.f32 0.0, %v1701
        %v1703 = vpop.f32.mrf.mxu0
        %v1704 = vadd.f32 0.0, %v1703
        %1705 = vmatmul.bf16.gmra.mxu0 %v1400
        %v1706 = vpop.f32.mrf.mxu0
        %v1707 = vadd.f32 0.0, %v1706
        %v1708 = vpop.f32.mrf.mxu0
        %v1709 = vadd.f32 0.0, %v1708
        %1710 = vmatmul.bf16.gmra.mxu0 %v1402
        %v1711 = vpop.f32.mrf.mxu0
        %v1712 = vadd.f32 0.0, %v1711
        %v1713 = vpop.f32.mrf.mxu0
        %v1714 = vadd.f32 0.0, %v1713
        %1715 = vmatmul.bf16.gmra.mxu0 %v1404
        %v1716 = vpop.f32.mrf.mxu0
        %v1717 = vadd.f32 0.0, %v1716
        %v1718 = vpop.f32.mrf.mxu0
        %v1719 = vadd.f32 0.0, %v1718
        %1720 = vmatmul.bf16.gmra.mxu0 %v1406
        %v1721 = vpop.f32.mrf.mxu0
        %v1722 = vadd.f32 0.0, %v1721
        %v1723 = vpop.f32.mrf.mxu0
        %v1724 = vadd.f32 0.0, %v1723
        %1725 = vmatmul.bf16.gmra.mxu0 %v1408
        %v1726 = vpop.f32.mrf.mxu0
        %v1727 = vadd.f32 0.0, %v1726
        %v1728 = vpop.f32.mrf.mxu0
        %v1729 = vadd.f32 0.0, %v1728
        %1730 = vmatmul.bf16.gmra.mxu0 %v1410
        %v1731 = vpop.f32.mrf.mxu0
        %v1732 = vadd.f32 0.0, %v1731
        %v1733 = vpop.f32.mrf.mxu0
        %v1734 = vadd.f32 0.0, %v1733
        %1735 = vmatmul.bf16.gmra.mxu0 %v1412
        %v1736 = vpop.f32.mrf.mxu0
        %v1737 = vadd.f32 0.0, %v1736
        %v1738 = vpop.f32.mrf.mxu0
        %v1739 = vadd.f32 0.0, %v1738
        %1740 = vmatmul.bf16.gmra.mxu0 %v1414
        %v1741 = vpop.f32.mrf.mxu0
        %v1742 = vadd.f32 0.0, %v1741
        %v1743 = vpop.f32.mrf.mxu0
        %v1744 = vadd.f32 0.0, %v1743
        %1745 = vmatmul.bf16.gmra.mxu0 %v1416
        %v1746 = vpop.f32.mrf.mxu0
        %v1747 = vadd.f32 0.0, %v1746
        %v1748 = vpop.f32.mrf.mxu0
        %v1749 = vadd.f32 0.0, %v1748
        %1750 = vmatmul.bf16.gmra.mxu0 %v1418
        %v1751 = vpop.f32.mrf.mxu0
        %v1752 = vadd.f32 0.0, %v1751
        %v1753 = vpop.f32.mrf.mxu0
        %v1754 = vadd.f32 0.0, %v1753
        %1755 = vmatmul.bf16.gmra.mxu0 %v1420
        %v1756 = vpop.f32.mrf.mxu0
        %v1757 = vadd.f32 0.0, %v1756
        %v1758 = vpop.f32.mrf.mxu0
        %v1759 = vadd.f32 0.0, %v1758
        %1760 = vmatmul.bf16.gmra.mxu0 %v1665
        %v1761 = vpop.f32.mrf.mxu0
        %v1762 = vadd.f32 0.0, %v1761
        %v1763 = vpop.f32.mrf.mxu0
        %v1764 = vadd.f32 0.0, %v1763
        %1765 = vdwg.mxu0
        %v1766 = vadd.f32 %v1551, %v1677
        %v1767 = vadd.f32 %v1553, %v1679
        %v1768 = vadd.f32 %v1556, %v1682
        %v1769 = vadd.f32 %v1558, %v1684
        %v1770 = vadd.f32 %v1561, %v1687
        %v1771 = vadd.f32 %v1563, %v1689
        %v1772 = vadd.f32 %v1566, %v1692
        %v1773 = vadd.f32 %v1568, %v1694
        %v1774 = vadd.f32 %v1571, %v1697
        %v1775 = vadd.f32 %v1573, %v1699
        %v1776 = vadd.f32 %v1576, %v1702
        %v1777 = vadd.f32 %v1578, %v1704
        %v1778 = vadd.f32 %v1581, %v1707
        %v1779 = vadd.f32 %v1583, %v1709
        %v1780 = vadd.f32 %v1586, %v1712
        %v1781 = vadd.f32 %v1588, %v1714
        %v1782 = vadd.f32 %v1591, %v1717
        %v1783 = vadd.f32 %v1593, %v1719
        %v1784 = vadd.f32 %v1596, %v1722
        %v1785 = vadd.f32 %v1598, %v1724
        %v1786 = vadd.f32 %v1601, %v1727
        %v1787 = vadd.f32 %v1603, %v1729
        %v1788 = vadd.f32 %v1606, %v1732
        %v1789 = vadd.f32 %v1608, %v1734
        %v1790 = vadd.f32 %v1611, %v1737
        %v1791 = vadd.f32 %v1613, %v1739
        %v1792 = vadd.f32 %v1616, %v1742
        %v1793 = vadd.f32 %v1618, %v1744
        %v1794 = vadd.f32 %v1621, %v1747
        %v1795 = vadd.f32 %v1623, %v1749
        %v1796 = vadd.f32 %v1626, %v1752
        %v1797 = vadd.f32 %v1628, %v1754
        %v1798 = vadd.f32 %v1631, %v1757
        %v1799 = vadd.f32 %v1633, %v1759
        %v1800 = vadd.f32 %v1636, %v1762
        %v1801 = vadd.f32 %v1638, %v1764
        %v1802 = vld [vmem:[%s3] sm:$0x1]
        %v1804 = vperm.slane %v1802, 0
        %v1806 = vmul.f32 %v1766, %v1804
        %v1807 = vmul.f32 %v1767, %v1804
        %v1808 = vmul.f32 %v1768, %v1804
        %v1809 = vmul.f32 %v1769, %v1804
        %v1810 = vmul.f32 %v1770, %v1804
        %v1811 = vmul.f32 %v1771, %v1804
        %v1812 = vmul.f32 %v1772, %v1804
        %v1813 = vmul.f32 %v1773, %v1804
        %v1814 = vmul.f32 %v1774, %v1804
        %v1815 = vmul.f32 %v1775, %v1804
        %v1816 = vmul.f32 %v1776, %v1804
        %v1817 = vmul.f32 %v1777, %v1804
        %v1818 = vmul.f32 %v1778, %v1804
        %v1819 = vmul.f32 %v1779, %v1804
        %v1820 = vmul.f32 %v1780, %v1804
        %v1821 = vmul.f32 %v1781, %v1804
        %v1822 = vmul.f32 %v1782, %v1804
        %v1823 = vmul.f32 %v1783, %v1804
        %v1824 = vmul.f32 %v1784, %v1804
        %v1825 = vmul.f32 %v1785, %v1804
        %v1826 = vmul.f32 %v1786, %v1804
        %v1827 = vmul.f32 %v1787, %v1804
        %v1828 = vmul.f32 %v1788, %v1804
        %v1829 = vmul.f32 %v1789, %v1804
        %v1830 = vmul.f32 %v1790, %v1804
        %v1831 = vmul.f32 %v1791, %v1804
        %v1832 = vmul.f32 %v1792, %v1804
        %v1833 = vmul.f32 %v1793, %v1804
        %v1834 = vmul.f32 %v1794, %v1804
        %v1835 = vmul.f32 %v1795, %v1804
        %v1836 = vmul.f32 %v1796, %v1804
        %v1837 = vmul.f32 %v1797, %v1804
        %v1838 = vmul.f32 %v1798, %v1804
        %v1839 = vmul.f32 %v1799, %v1804
        %v1840 = vmul.f32 %v1800, %v1804
        %v1841 = vmul.f32 %v1801, %v1804
        %v1842 = vld [vmem:[%s4] sm:$0x1]
        %v1844 = vperm.slane %v1842, 0
        %v1846 = vadd.f32 %v1806, %v1844
        %v1847 = vadd.f32 %v1807, %v1844
        %v1848 = vadd.f32 %v1808, %v1844
        %v1849 = vadd.f32 %v1809, %v1844
        %v1850 = vadd.f32 %v1810, %v1844
        %v1851 = vadd.f32 %v1811, %v1844
        %v1852 = vadd.f32 %v1812, %v1844
        %v1853 = vadd.f32 %v1813, %v1844
        %v1854 = vadd.f32 %v1814, %v1844
        %v1855 = vadd.f32 %v1815, %v1844
        %v1856 = vadd.f32 %v1816, %v1844
        %v1857 = vadd.f32 %v1817, %v1844
        %v1858 = vadd.f32 %v1818, %v1844
        %v1859 = vadd.f32 %v1819, %v1844
        %v1860 = vadd.f32 %v1820, %v1844
        %v1861 = vadd.f32 %v1821, %v1844
        %v1862 = vadd.f32 %v1822, %v1844
        %v1863 = vadd.f32 %v1823, %v1844
        %v1864 = vadd.f32 %v1824, %v1844
        %v1865 = vadd.f32 %v1825, %v1844
        %v1866 = vadd.f32 %v1826, %v1844
        %v1867 = vadd.f32 %v1827, %v1844
        %v1868 = vadd.f32 %v1828, %v1844
        %v1869 = vadd.f32 %v1829, %v1844
        %v1870 = vadd.f32 %v1830, %v1844
        %v1871 = vadd.f32 %v1831, %v1844
        %v1872 = vadd.f32 %v1832, %v1844
        %v1873 = vadd.f32 %v1833, %v1844
        %v1874 = vadd.f32 %v1834, %v1844
        %v1875 = vadd.f32 %v1835, %v1844
        %v1876 = vadd.f32 %v1836, %v1844
        %v1877 = vadd.f32 %v1837, %v1844
        %v1878 = vadd.f32 %v1838, %v1844
        %v1879 = vadd.f32 %v1839, %v1844
        %v1880 = vadd.f32 %v1840, %v1844
        %v1881 = vadd.f32 %v1841, %v1844
        %v1882 = vmax.f32 %v1846, 0.0
        %v1883 = vmax.f32 %v1847, 0.0
        %v1884 = vmax.f32 %v1848, 0.0
        %v1885 = vmax.f32 %v1849, 0.0
        %v1886 = vmax.f32 %v1850, 0.0
        %v1887 = vmax.f32 %v1851, 0.0
        %v1888 = vmax.f32 %v1852, 0.0
        %v1889 = vmax.f32 %v1853, 0.0
        %v1890 = vmax.f32 %v1854, 0.0
        %v1891 = vmax.f32 %v1855, 0.0
        %v1892 = vmax.f32 %v1856, 0.0
        %v1893 = vmax.f32 %v1857, 0.0
        %v1894 = vmax.f32 %v1858, 0.0
        %v1895 = vmax.f32 %v1859, 0.0
        %v1896 = vmax.f32 %v1860, 0.0
        %v1897 = vmax.f32 %v1861, 0.0
        %v1898 = vmax.f32 %v1862, 0.0
        %v1899 = vmax.f32 %v1863, 0.0
        %v1900 = vmax.f32 %v1864, 0.0
        %v1901 = vmax.f32 %v1865, 0.0
        %v1902 = vmax.f32 %v1866, 0.0
        %v1903 = vmax.f32 %v1867, 0.0
        %v1904 = vmax.f32 %v1868, 0.0
        %v1905 = vmax.f32 %v1869, 0.0
        %v1906 = vmax.f32 %v1870, 0.0
        %v1907 = vmax.f32 %v1871, 0.0
        %v1908 = vmax.f32 %v1872, 0.0
        %v1909 = vmax.f32 %v1873, 0.0
        %v1910 = vmax.f32 %v1874, 0.0
        %v1911 = vmax.f32 %v1875, 0.0
        %v1912 = vmax.f32 %v1876, 0.0
        %v1913 = vmax.f32 %v1877, 0.0
        %v1914 = vmax.f32 %v1878, 0.0
        %v1915 = vmax.f32 %v1879, 0.0
        %v1916 = vmax.f32 %v1880, 0.0
        %v1917 = vmax.f32 %v1881, 0.0
        %v1918 = vstv %s419
        %v1919 = vstv %s422
        %v1920 = vmul.f32 %v1882, %v1918
        %v1921 = vmul.f32 %v1883, %v1918
        %v1922 = vmul.f32 %v1916, %v1919
        %v1923 = vmul.f32 %v1917, %v1919
        %v1924 = vrot.slane %v1920, 7
        %v1925 = vrot.slane %v1921, 7
        %v1926 = vrot.slane %v1884, 7
        %v1927 = vrot.slane %v1885, 7
        %v1928 = vrot.slane %v1886, 7
        %v1929 = vrot.slane %v1887, 7
        %v1930 = vrot.slane %v1888, 7
        %v1931 = vrot.slane %v1889, 7
        %v1932 = vrot.slane %v1890, 7
        %v1933 = vrot.slane %v1891, 7
        %v1934 = vrot.slane %v1892, 7
        %v1935 = vrot.slane %v1893, 7
        %v1936 = vrot.slane %v1894, 7
        %v1937 = vrot.slane %v1895, 7
        %v1938 = vrot.slane %v1896, 7
        %v1939 = vrot.slane %v1897, 7
        %v1940 = vrot.slane %v1898, 7
        %v1941 = vrot.slane %v1899, 7
        %v1942 = vrot.slane %v1900, 7
        %v1943 = vrot.slane %v1901, 7
        %v1944 = vrot.slane %v1902, 7
        %v1945 = vrot.slane %v1903, 7
        %v1946 = vrot.slane %v1904, 7
        %v1947 = vrot.slane %v1905, 7
        %v1948 = vrot.slane %v1906, 7
        %v1949 = vrot.slane %v1907, 7
        %v1950 = vrot.slane %v1908, 7
        %v1951 = vrot.slane %v1909, 7
        %v1952 = vrot.slane %v1910, 7
        %v1953 = vrot.slane %v1911, 7
        %v1954 = vrot.slane %v1912, 7
        %v1955 = vrot.slane %v1913, 7
        %v1956 = vrot.slane %v1914, 7
        %v1957 = vrot.slane %v1915, 7
        %v1958 = vrot.slane %v1922, 7
        %v1959 = vrot.slane %v1923, 7
        %v1960 = vsel %vm550, %v1958, %v1959
        %v1961 = vsel %vm550, %v1957, %v1958
        %v1962 = vsel %vm550, %v1956, %v1957
        %v1963 = vsel %vm550, %v1955, %v1956
        %v1964 = vsel %vm550, %v1954, %v1955
        %v1965 = vsel %vm550, %v1953, %v1954
        %v1966 = vsel %vm550, %v1952, %v1953
        %v1967 = vsel %vm550, %v1951, %v1952
        %v1968 = vsel %vm550, %v1950, %v1951
        %v1969 = vsel %vm550, %v1949, %v1950
        %v1970 = vsel %vm550, %v1948, %v1949
        %v1971 = vsel %vm550, %v1947, %v1948
        %v1972 = vsel %vm550, %v1946, %v1947
        %v1973 = vsel %vm550, %v1945, %v1946
        %v1974 = vsel %vm550, %v1944, %v1945
        %v1975 = vsel %vm550, %v1943, %v1944
        %v1976 = vsel %vm550, %v1942, %v1943
        %v1977 = vsel %vm550, %v1941, %v1942
        %v1978 = vsel %vm550, %v1940, %v1941
        %v1979 = vsel %vm550, %v1939, %v1940
        %v1980 = vsel %vm550, %v1938, %v1939
        %v1981 = vsel %vm550, %v1937, %v1938
        %v1982 = vsel %vm550, %v1936, %v1937
        %v1983 = vsel %vm550, %v1935, %v1936
        %v1984 = vsel %vm550, %v1934, %v1935
        %v1985 = vsel %vm550, %v1933, %v1934
        %v1986 = vsel %vm550, %v1932, %v1933
        %v1987 = vsel %vm550, %v1931, %v1932
        %v1988 = vsel %vm550, %v1930, %v1931
        %v1989 = vsel %vm550, %v1929, %v1930
        %v1990 = vsel %vm550, %v1928, %v1929
        %v1991 = vsel %vm550, %v1927, %v1928
        %v1992 = vsel %vm550, %v1926, %v1927
        %v1993 = vsel %vm550, %v1925, %v1926
        %v1994 = vsel %vm550, %v1924, %v1925
        %v1995 = vsel %vm550, %v1959, %v1924
        %v1996 = vsel %vm426, %v1995, 0.0
        %v1997 = vsel %vm427, %v1994, 0.0
        %v1998 = vsel %vm426, %v1993, 0.0
        %v1999 = vsel %vm427, %v1992, 0.0
        %v2000 = vsel %vm426, %v1991, 0.0
        %v2001 = vsel %vm427, %v1990, 0.0
        %v2002 = vsel %vm426, %v1989, 0.0
        %v2003 = vsel %vm427, %v1988, 0.0
        %v2004 = vsel %vm426, %v1987, 0.0
        %v2005 = vsel %vm427, %v1986, 0.0
        %v2006 = vsel %vm426, %v1985, 0.0
        %v2007 = vsel %vm427, %v1984, 0.0
        %v2008 = vsel %vm426, %v1983, 0.0
        %v2009 = vsel %vm427, %v1982, 0.0
        %v2010 = vsel %vm426, %v1981, 0.0
        %v2011 = vsel %vm427, %v1980, 0.0
        %v2012 = vsel %vm426, %v1979, 0.0
        %v2013 = vsel %vm427, %v1978, 0.0
        %v2014 = vsel %vm426, %v1977, 0.0
        %v2015 = vsel %vm427, %v1976, 0.0
        %v2016 = vsel %vm426, %v1975, 0.0
        %v2017 = vsel %vm427, %v1974, 0.0
        %v2018 = vsel %vm426, %v1973, 0.0
        %v2019 = vsel %vm427, %v1972, 0.0
        %v2020 = vsel %vm426, %v1971, 0.0
        %v2021 = vsel %vm427, %v1970, 0.0
        %v2022 = vsel %vm426, %v1969, 0.0
        %v2023 = vsel %vm427, %v1968, 0.0
        %v2024 = vsel %vm426, %v1967, 0.0
        %v2025 = vsel %vm427, %v1966, 0.0
        %v2026 = vsel %vm426, %v1965, 0.0
        %v2027 = vsel %vm427, %v1964, 0.0
        %v2028 = vsel %vm426, %v1963, 0.0
        %v2029 = vsel %vm427, %v1962, 0.0
        %v2030 = vsel %vm426, %v1961, 0.0
        %v2031 = vsel %vm427, %v1960, 0.0
        %v2032 = vrot.slane %v1920, 1
        %v2033 = vrot.slane %v1921, 1
        %v2034 = vrot.slane %v1884, 1
        %v2035 = vrot.slane %v1885, 1
        %v2036 = vrot.slane %v1886, 1
        %v2037 = vrot.slane %v1887, 1
        %v2038 = vrot.slane %v1888, 1
        %v2039 = vrot.slane %v1889, 1
        %v2040 = vrot.slane %v1890, 1
        %v2041 = vrot.slane %v1891, 1
        %v2042 = vrot.slane %v1892, 1
        %v2043 = vrot.slane %v1893, 1
        %v2044 = vrot.slane %v1894, 1
        %v2045 = vrot.slane %v1895, 1
        %v2046 = vrot.slane %v1896, 1
        %v2047 = vrot.slane %v1897, 1
        %v2048 = vrot.slane %v1898, 1
        %v2049 = vrot.slane %v1899, 1
        %v2050 = vrot.slane %v1900, 1
        %v2051 = vrot.slane %v1901, 1
        %v2052 = vrot.slane %v1902, 1
        %v2053 = vrot.slane %v1903, 1
        %v2054 = vrot.slane %v1904, 1
        %v2055 = vrot.slane %v1905, 1
        %v2056 = vrot.slane %v1906, 1
        %v2057 = vrot.slane %v1907, 1
        %v2058 = vrot.slane %v1908, 1
        %v2059 = vrot.slane %v1909, 1
        %v2060 = vrot.slane %v1910, 1
        %v2061 = vrot.slane %v1911, 1
        %v2062 = vrot.slane %v1912, 1
        %v2063 = vrot.slane %v1913, 1
        %v2064 = vrot.slane %v1914, 1
        %v2065 = vrot.slane %v1915, 1
        %v2066 = vrot.slane %v1922, 1
        %v2067 = vrot.slane %v1923, 1
        %v2068 = vsel %vm671, %v2066, %v2067
        %v2069 = vsel %vm671, %v2065, %v2066
        %v2070 = vsel %vm671, %v2064, %v2065
        %v2071 = vsel %vm671, %v2063, %v2064
        %v2072 = vsel %vm671, %v2062, %v2063
        %v2073 = vsel %vm671, %v2061, %v2062
        %v2074 = vsel %vm671, %v2060, %v2061
        %v2075 = vsel %vm671, %v2059, %v2060
        %v2076 = vsel %vm671, %v2058, %v2059
        %v2077 = vsel %vm671, %v2057, %v2058
        %v2078 = vsel %vm671, %v2056, %v2057
        %v2079 = vsel %vm671, %v2055, %v2056
        %v2080 = vsel %vm671, %v2054, %v2055
        %v2081 = vsel %vm671, %v2053, %v2054
        %v2082 = vsel %vm671, %v2052, %v2053
        %v2083 = vsel %vm671, %v2051, %v2052
        %v2084 = vsel %vm671, %v2050, %v2051
        %v2085 = vsel %vm671, %v2049, %v2050
        %v2086 = vsel %vm671, %v2048, %v2049
        %v2087 = vsel %vm671, %v2047, %v2048
        %v2088 = vsel %vm671, %v2046, %v2047
        %v2089 = vsel %vm671, %v2045, %v2046
        %v2090 = vsel %vm671, %v2044, %v2045
        %v2091 = vsel %vm671, %v2043, %v2044
        %v2092 = vsel %vm671, %v2042, %v2043
        %v2093 = vsel %vm671, %v2041, %v2042
        %v2094 = vsel %vm671, %v2040, %v2041
        %v2095 = vsel %vm671, %v2039, %v2040
        %v2096 = vsel %vm671, %v2038, %v2039
        %v2097 = vsel %vm671, %v2037, %v2038
        %v2098 = vsel %vm671, %v2036, %v2037
        %v2099 = vsel %vm671, %v2035, %v2036
        %v2100 = vsel %vm671, %v2034, %v2035
        %v2101 = vsel %vm671, %v2033, %v2034
        %v2102 = vsel %vm671, %v2032, %v2033
        %v2103 = vsel %vm671, %v2067, %v2032
        %v2104 = vsel %vm428, %v2102, 0.0
        %v2105 = vsel %vm429, %v2101, 0.0
        %v2106 = vsel %vm428, %v2100, 0.0
        %v2107 = vsel %vm429, %v2099, 0.0
        %v2108 = vsel %vm428, %v2098, 0.0
        %v2109 = vsel %vm429, %v2097, 0.0
        %v2110 = vsel %vm428, %v2096, 0.0
        %v2111 = vsel %vm429, %v2095, 0.0
        %v2112 = vsel %vm428, %v2094, 0.0
        %v2113 = vsel %vm429, %v2093, 0.0
        %v2114 = vsel %vm428, %v2092, 0.0
        %v2115 = vsel %vm429, %v2091, 0.0
        %v2116 = vsel %vm428, %v2090, 0.0
        %v2117 = vsel %vm429, %v2089, 0.0
        %v2118 = vsel %vm428, %v2088, 0.0
        %v2119 = vsel %vm429, %v2087, 0.0
        %v2120 = vsel %vm428, %v2086, 0.0
        %v2121 = vsel %vm429, %v2085, 0.0
        %v2122 = vsel %vm428, %v2084, 0.0
        %v2123 = vsel %vm429, %v2083, 0.0
        %v2124 = vsel %vm428, %v2082, 0.0
        %v2125 = vsel %vm429, %v2081, 0.0
        %v2126 = vsel %vm428, %v2080, 0.0
        %v2127 = vsel %vm429, %v2079, 0.0
        %v2128 = vsel %vm428, %v2078, 0.0
        %v2129 = vsel %vm429, %v2077, 0.0
        %v2130 = vsel %vm428, %v2076, 0.0
        %v2131 = vsel %vm429, %v2075, 0.0
        %v2132 = vsel %vm428, %v2074, 0.0
        %v2133 = vsel %vm429, %v2073, 0.0
        %v2134 = vsel %vm428, %v2072, 0.0
        %v2135 = vsel %vm429, %v2071, 0.0
        %v2136 = vsel %vm428, %v2070, 0.0
        %v2137 = vsel %vm429, %v2069, 0.0
        %v2138 = vsel %vm428, %v2068, 0.0
        %v2139 = vsel %vm429, %v2103, 0.0
        %v2140 = vpack.c.bf16 %v1996, %v1996
        %v2141 = vpack.c.bf16 %v1997, %v1997
        %v2142 = vpack.c.bf16 %v1998, %v1998
        %v2143 = vpack.c.bf16 %v1999, %v1999
        %v2144 = vpack.c.bf16 %v2000, %v2000
        %v2145 = vpack.c.bf16 %v2001, %v2001
        %v2146 = vpack.c.bf16 %v2002, %v2002
        %v2147 = vpack.c.bf16 %v2003, %v2003
        %v2148 = vpack.c.bf16 %v2004, %v2004
        %v2149 = vpack.c.bf16 %v2005, %v2005
        %v2150 = vpack.c.bf16 %v2006, %v2006
        %v2151 = vpack.c.bf16 %v2007, %v2007
        %v2152 = vpack.c.bf16 %v2008, %v2008
        %v2153 = vpack.c.bf16 %v2009, %v2009
        %v2154 = vpack.c.bf16 %v2010, %v2010
        %v2155 = vpack.c.bf16 %v2011, %v2011
        %v2156 = vpack.c.bf16 %v2012, %v2012
        %v2157 = vpack.c.bf16 %v2013, %v2013
        %v2158 = vpack.c.bf16 %v2014, %v2014
        %v2159 = vpack.c.bf16 %v2015, %v2015
        %v2160 = vpack.c.bf16 %v2016, %v2016
        %v2161 = vpack.c.bf16 %v2017, %v2017
        %v2162 = vpack.c.bf16 %v2018, %v2018
        %v2163 = vpack.c.bf16 %v2019, %v2019
        %v2164 = vpack.c.bf16 %v2020, %v2020
        %v2165 = vpack.c.bf16 %v2021, %v2021
        %v2166 = vpack.c.bf16 %v2022, %v2022
        %v2167 = vpack.c.bf16 %v2023, %v2023
        %v2168 = vpack.c.bf16 %v2024, %v2024
        %v2169 = vpack.c.bf16 %v2025, %v2025
        %v2170 = vpack.c.bf16 %v2026, %v2026
        %v2171 = vpack.c.bf16 %v2027, %v2027
        %v2172 = vpack.c.bf16 %v2028, %v2028
        %v2173 = vpack.c.bf16 %v2029, %v2029
        %v2174 = vpack.c.bf16 %v2030, %v2030
        %v2175 = vpack.c.bf16 %v2031, %v2031
        %v2176 = vpack.c.bf16 %v1920, %v1920
        %v2177 = vpack.c.bf16 %v1921, %v1921
        %v2178 = vpack.c.bf16 %v1884, %v1884
        %v2179 = vpack.c.bf16 %v1885, %v1885
        %v2180 = vpack.c.bf16 %v1886, %v1886
        %v2181 = vpack.c.bf16 %v1887, %v1887
        %v2182 = vpack.c.bf16 %v1888, %v1888
        %v2183 = vpack.c.bf16 %v1889, %v1889
        %v2184 = vpack.c.bf16 %v1890, %v1890
        %v2185 = vpack.c.bf16 %v1891, %v1891
        %v2186 = vpack.c.bf16 %v1892, %v1892
        %v2187 = vpack.c.bf16 %v1893, %v1893
        %v2188 = vpack.c.bf16 %v1894, %v1894
        %v2189 = vpack.c.bf16 %v1895, %v1895
        %v2190 = vpack.c.bf16 %v1896, %v1896
        %v2191 = vpack.c.bf16 %v1897, %v1897
        %v2192 = vpack.c.bf16 %v1898, %v1898
        %v2193 = vpack.c.bf16 %v1899, %v1899
        %v2194 = vpack.c.bf16 %v1900, %v1900
        %v2195 = vpack.c.bf16 %v1901, %v1901
        %v2196 = vpack.c.bf16 %v1902, %v1902
        %v2197 = vpack.c.bf16 %v1903, %v1903
        %v2198 = vpack.c.bf16 %v1904, %v1904
        %v2199 = vpack.c.bf16 %v1905, %v1905
        %v2200 = vpack.c.bf16 %v1906, %v1906
        %v2201 = vpack.c.bf16 %v1907, %v1907
        %v2202 = vpack.c.bf16 %v1908, %v1908
        %v2203 = vpack.c.bf16 %v1909, %v1909
        %v2204 = vpack.c.bf16 %v1910, %v1910
        %v2205 = vpack.c.bf16 %v1911, %v1911
        %v2206 = vpack.c.bf16 %v1912, %v1912
        %v2207 = vpack.c.bf16 %v1913, %v1913
        %v2208 = vpack.c.bf16 %v1914, %v1914
        %v2209 = vpack.c.bf16 %v1915, %v1915
        %v2210 = vpack.c.bf16 %v1922, %v1922
        %v2211 = vpack.c.bf16 %v1923, %v1923
        %v2212 = vpack.c.bf16 %v2104, %v2104
        %v2213 = vpack.c.bf16 %v2105, %v2105
        %v2214 = vpack.c.bf16 %v2106, %v2106
        %v2215 = vpack.c.bf16 %v2107, %v2107
        %v2216 = vpack.c.bf16 %v2108, %v2108
        %v2217 = vpack.c.bf16 %v2109, %v2109
        %v2218 = vpack.c.bf16 %v2110, %v2110
        %v2219 = vpack.c.bf16 %v2111, %v2111
        %v2220 = vpack.c.bf16 %v2112, %v2112
        %v2221 = vpack.c.bf16 %v2113, %v2113
        %v2222 = vpack.c.bf16 %v2114, %v2114
        %v2223 = vpack.c.bf16 %v2115, %v2115
        %v2224 = vpack.c.bf16 %v2116, %v2116
        %v2225 = vpack.c.bf16 %v2117, %v2117
        %v2226 = vpack.c.bf16 %v2118, %v2118
        %v2227 = vpack.c.bf16 %v2119, %v2119
        %v2228 = vpack.c.bf16 %v2120, %v2120
        %v2229 = vpack.c.bf16 %v2121, %v2121
        %v2230 = vpack.c.bf16 %v2122, %v2122
        %v2231 = vpack.c.bf16 %v2123, %v2123
        %v2232 = vpack.c.bf16 %v2124, %v2124
        %v2233 = vpack.c.bf16 %v2125, %v2125
        %v2234 = vpack.c.bf16 %v2126, %v2126
        %v2235 = vpack.c.bf16 %v2127, %v2127
        %v2236 = vpack.c.bf16 %v2128, %v2128
        %v2237 = vpack.c.bf16 %v2129, %v2129
        %v2238 = vpack.c.bf16 %v2130, %v2130
        %v2239 = vpack.c.bf16 %v2131, %v2131
        %v2240 = vpack.c.bf16 %v2132, %v2132
        %v2241 = vpack.c.bf16 %v2133, %v2133
        %v2242 = vpack.c.bf16 %v2134, %v2134
        %v2243 = vpack.c.bf16 %v2135, %v2135
        %v2244 = vpack.c.bf16 %v2136, %v2136
        %v2245 = vpack.c.bf16 %v2137, %v2137
        %v2246 = vpack.c.bf16 %v2138, %v2138
        %v2247 = vpack.c.bf16 %v2139, %v2139
        %v2284 = vunpack.c.l.b16 %v2140
        %v2285 = vunpack.c.l.b16 %v2141
        %v2286 = vunpack.c.l.b16 %v2142
        %v2287 = vunpack.c.l.b16 %v2143
        %v2288 = vunpack.c.l.b16 %v2144
        %v2289 = vunpack.c.l.b16 %v2145
        %v2290 = vunpack.c.l.b16 %v2146
        %v2291 = vunpack.c.l.b16 %v2147
        %v2292 = vunpack.c.l.b16 %v2148
        %v2293 = vunpack.c.l.b16 %v2149
        %v2294 = vunpack.c.l.b16 %v2150
        %v2295 = vunpack.c.l.b16 %v2151
        %v2296 = vunpack.c.l.b16 %v2152
        %v2297 = vunpack.c.l.b16 %v2153
        %v2298 = vunpack.c.l.b16 %v2154
        %v2299 = vunpack.c.l.b16 %v2155
        %v2300 = vunpack.c.l.b16 %v2156
        %v2301 = vunpack.c.l.b16 %v2157
        %v2302 = vunpack.c.l.b16 %v2158
        %v2303 = vunpack.c.l.b16 %v2159
        %v2304 = vunpack.c.l.b16 %v2160
        %v2305 = vunpack.c.l.b16 %v2161
        %v2306 = vunpack.c.l.b16 %v2162
        %v2307 = vunpack.c.l.b16 %v2163
        %v2308 = vunpack.c.l.b16 %v2164
        %v2309 = vunpack.c.l.b16 %v2165
        %v2310 = vunpack.c.l.b16 %v2166
        %v2311 = vunpack.c.l.b16 %v2167
        %v2312 = vunpack.c.l.b16 %v2168
        %v2313 = vunpack.c.l.b16 %v2169
        %v2314 = vunpack.c.l.b16 %v2170
        %v2315 = vunpack.c.l.b16 %v2171
        %v2316 = vunpack.c.l.b16 %v2172
        %v2317 = vunpack.c.l.b16 %v2173
        %v2318 = vunpack.c.l.b16 %v2174
        %v2319 = vunpack.c.l.b16 %v2175
        %v2320 = vpack.c.b16 %v2285, %v2284
        %v2321 = vpack.c.b16 %v2287, %v2286
        %v2322 = vpack.c.b16 %v2289, %v2288
        %v2323 = vpack.c.b16 %v2291, %v2290
        %v2324 = vpack.c.b16 %v2293, %v2292
        %v2325 = vpack.c.b16 %v2295, %v2294
        %v2326 = vpack.c.b16 %v2297, %v2296
        %v2327 = vpack.c.b16 %v2299, %v2298
        %v2328 = vpack.c.b16 %v2301, %v2300
        %v2329 = vpack.c.b16 %v2303, %v2302
        %v2330 = vpack.c.b16 %v2305, %v2304
        %v2331 = vpack.c.b16 %v2307, %v2306
        %v2332 = vpack.c.b16 %v2309, %v2308
        %v2333 = vpack.c.b16 %v2311, %v2310
        %v2334 = vpack.c.b16 %v2313, %v2312
        %v2335 = vpack.c.b16 %v2315, %v2314
        %v2336 = vpack.c.b16 %v2317, %v2316
        %v2337 = vpack.c.b16 %v2319, %v2318
        %v2374 = vunpack.c.l.b16 %v2176
        %v2375 = vunpack.c.l.b16 %v2177
        %v2376 = vunpack.c.l.b16 %v2178
        %v2377 = vunpack.c.l.b16 %v2179
        %v2378 = vunpack.c.l.b16 %v2180
        %v2379 = vunpack.c.l.b16 %v2181
        %v2380 = vunpack.c.l.b16 %v2182
        %v2381 = vunpack.c.l.b16 %v2183
        %v2382 = vunpack.c.l.b16 %v2184
        %v2383 = vunpack.c.l.b16 %v2185
        %v2384 = vunpack.c.l.b16 %v2186
        %v2385 = vunpack.c.l.b16 %v2187
        %v2386 = vunpack.c.l.b16 %v2188
        %v2387 = vunpack.c.l.b16 %v2189
        %v2388 = vunpack.c.l.b16 %v2190
        %v2389 = vunpack.c.l.b16 %v2191
        %v2390 = vunpack.c.l.b16 %v2192
        %v2391 = vunpack.c.l.b16 %v2193
        %v2392 = vunpack.c.l.b16 %v2194
        %v2393 = vunpack.c.l.b16 %v2195
        %v2394 = vunpack.c.l.b16 %v2196
        %v2395 = vunpack.c.l.b16 %v2197
        %v2396 = vunpack.c.l.b16 %v2198
        %v2397 = vunpack.c.l.b16 %v2199
        %v2398 = vunpack.c.l.b16 %v2200
        %v2399 = vunpack.c.l.b16 %v2201
        %v2400 = vunpack.c.l.b16 %v2202
        %v2401 = vunpack.c.l.b16 %v2203
        %v2402 = vunpack.c.l.b16 %v2204
        %v2403 = vunpack.c.l.b16 %v2205
        %v2404 = vunpack.c.l.b16 %v2206
        %v2405 = vunpack.c.l.b16 %v2207
        %v2406 = vunpack.c.l.b16 %v2208
        %v2407 = vunpack.c.l.b16 %v2209
        %v2408 = vunpack.c.l.b16 %v2210
        %v2409 = vunpack.c.l.b16 %v2211
        %v2410 = vpack.c.b16 %v2375, %v2374
        %v2411 = vpack.c.b16 %v2377, %v2376
        %v2412 = vpack.c.b16 %v2379, %v2378
        %v2413 = vpack.c.b16 %v2381, %v2380
        %v2414 = vpack.c.b16 %v2383, %v2382
        %v2415 = vpack.c.b16 %v2385, %v2384
        %v2416 = vpack.c.b16 %v2387, %v2386
        %v2417 = vpack.c.b16 %v2389, %v2388
        %v2418 = vpack.c.b16 %v2391, %v2390
        %v2419 = vpack.c.b16 %v2393, %v2392
        %v2420 = vpack.c.b16 %v2395, %v2394
        %v2421 = vpack.c.b16 %v2397, %v2396
        %v2422 = vpack.c.b16 %v2399, %v2398
        %v2423 = vpack.c.b16 %v2401, %v2400
        %v2424 = vpack.c.b16 %v2403, %v2402
        %v2425 = vpack.c.b16 %v2405, %v2404
        %v2426 = vpack.c.b16 %v2407, %v2406
        %v2427 = vpack.c.b16 %v2409, %v2408
        %2428 = vrot.lane.b32.xlu0 %v2410, 16
        %v2429 = vpop.permute.xlu0 %2428
        %2430 = vrot.lane.b32.xlu0 %v2411, 16
        %v2431 = vpop.permute.xlu0 %2430
        %2432 = vrot.lane.b32.xlu0 %v2412, 16
        %v2433 = vpop.permute.xlu0 %2432
        %2434 = vrot.lane.b32.xlu0 %v2413, 16
        %v2435 = vpop.permute.xlu0 %2434
        %2436 = vrot.lane.b32.xlu0 %v2414, 16
        %v2437 = vpop.permute.xlu0 %2436
        %2438 = vrot.lane.b32.xlu0 %v2415, 16
        %v2439 = vpop.permute.xlu0 %2438
        %2440 = vrot.lane.b32.xlu0 %v2416, 16
        %v2441 = vpop.permute.xlu0 %2440
        %2442 = vrot.lane.b32.xlu0 %v2417, 16
        %v2443 = vpop.permute.xlu0 %2442
        %2444 = vrot.lane.b32.xlu0 %v2418, 16
        %v2445 = vpop.permute.xlu0 %2444
        %2446 = vrot.lane.b32.xlu0 %v2419, 16
        %v2447 = vpop.permute.xlu0 %2446
        %2448 = vrot.lane.b32.xlu0 %v2420, 16
        %v2449 = vpop.permute.xlu0 %2448
        %2450 = vrot.lane.b32.xlu0 %v2421, 16
        %v2451 = vpop.permute.xlu0 %2450
        %2452 = vrot.lane.b32.xlu0 %v2422, 16
        %v2453 = vpop.permute.xlu0 %2452
        %2454 = vrot.lane.b32.xlu0 %v2423, 16
        %v2455 = vpop.permute.xlu0 %2454
        %2456 = vrot.lane.b32.xlu0 %v2424, 16
        %v2457 = vpop.permute.xlu0 %2456
        %2458 = vrot.lane.b32.xlu0 %v2425, 16
        %v2459 = vpop.permute.xlu0 %2458
        %2460 = vrot.lane.b32.xlu0 %v2426, 16
        %v2461 = vpop.permute.xlu0 %2460
        %2462 = vrot.lane.b32.xlu0 %v2427, 16
        %v2463 = vpop.permute.xlu0 %2462
        %v2500 = vunpack.c.l.b16 %v2212
        %v2501 = vunpack.c.l.b16 %v2213
        %v2502 = vunpack.c.l.b16 %v2214
        %v2503 = vunpack.c.l.b16 %v2215
        %v2504 = vunpack.c.l.b16 %v2216
        %v2505 = vunpack.c.l.b16 %v2217
        %v2506 = vunpack.c.l.b16 %v2218
        %v2507 = vunpack.c.l.b16 %v2219
        %v2508 = vunpack.c.l.b16 %v2220
        %v2509 = vunpack.c.l.b16 %v2221
        %v2510 = vunpack.c.l.b16 %v2222
        %v2511 = vunpack.c.l.b16 %v2223
        %v2512 = vunpack.c.l.b16 %v2224
        %v2513 = vunpack.c.l.b16 %v2225
        %v2514 = vunpack.c.l.b16 %v2226
        %v2515 = vunpack.c.l.b16 %v2227
        %v2516 = vunpack.c.l.b16 %v2228
        %v2517 = vunpack.c.l.b16 %v2229
        %v2518 = vunpack.c.l.b16 %v2230
        %v2519 = vunpack.c.l.b16 %v2231
        %v2520 = vunpack.c.l.b16 %v2232
        %v2521 = vunpack.c.l.b16 %v2233
        %v2522 = vunpack.c.l.b16 %v2234
        %v2523 = vunpack.c.l.b16 %v2235
        %v2524 = vunpack.c.l.b16 %v2236
        %v2525 = vunpack.c.l.b16 %v2237
        %v2526 = vunpack.c.l.b16 %v2238
        %v2527 = vunpack.c.l.b16 %v2239
        %v2528 = vunpack.c.l.b16 %v2240
        %v2529 = vunpack.c.l.b16 %v2241
        %v2530 = vunpack.c.l.b16 %v2242
        %v2531 = vunpack.c.l.b16 %v2243
        %v2532 = vunpack.c.l.b16 %v2244
        %v2533 = vunpack.c.l.b16 %v2245
        %v2534 = vunpack.c.l.b16 %v2246
        %v2535 = vunpack.c.l.b16 %v2247
        %v2536 = vpack.c.b16 %v2501, %v2500
        %v2537 = vpack.c.b16 %v2503, %v2502
        %v2538 = vpack.c.b16 %v2505, %v2504
        %v2539 = vpack.c.b16 %v2507, %v2506
        %v2540 = vpack.c.b16 %v2509, %v2508
        %v2541 = vpack.c.b16 %v2511, %v2510
        %v2542 = vpack.c.b16 %v2513, %v2512
        %v2543 = vpack.c.b16 %v2515, %v2514
        %v2544 = vpack.c.b16 %v2517, %v2516
        %v2545 = vpack.c.b16 %v2519, %v2518
        %v2546 = vpack.c.b16 %v2521, %v2520
        %v2547 = vpack.c.b16 %v2523, %v2522
        %v2548 = vpack.c.b16 %v2525, %v2524
        %v2549 = vpack.c.b16 %v2527, %v2526
        %v2550 = vpack.c.b16 %v2529, %v2528
        %v2551 = vpack.c.b16 %v2531, %v2530
        %v2552 = vpack.c.b16 %v2533, %v2532
        %v2553 = vpack.c.b16 %v2535, %v2534
        %2554 = vrot.lane.b32.xlu0 %v2536, 32
        %v2555 = vpop.permute.xlu0 %2554
        %2556 = vrot.lane.b32.xlu0 %v2537, 32
        %v2557 = vpop.permute.xlu0 %2556
        %2558 = vrot.lane.b32.xlu0 %v2538, 32
        %v2559 = vpop.permute.xlu0 %2558
        %2560 = vrot.lane.b32.xlu0 %v2539, 32
        %v2561 = vpop.permute.xlu0 %2560
        %2562 = vrot.lane.b32.xlu0 %v2540, 32
        %v2563 = vpop.permute.xlu0 %2562
        %2564 = vrot.lane.b32.xlu0 %v2541, 32
        %v2565 = vpop.permute.xlu0 %2564
        %2566 = vrot.lane.b32.xlu0 %v2542, 32
        %v2567 = vpop.permute.xlu0 %2566
        %2568 = vrot.lane.b32.xlu0 %v2543, 32
        %v2569 = vpop.permute.xlu0 %2568
        %2570 = vrot.lane.b32.xlu0 %v2544, 32
        %v2571 = vpop.permute.xlu0 %2570
        %2572 = vrot.lane.b32.xlu0 %v2545, 32
        %v2573 = vpop.permute.xlu0 %2572
        %2574 = vrot.lane.b32.xlu0 %v2546, 32
        %v2575 = vpop.permute.xlu0 %2574
        %2576 = vrot.lane.b32.xlu0 %v2547, 32
        %v2577 = vpop.permute.xlu0 %2576
        %2578 = vrot.lane.b32.xlu0 %v2548, 32
        %v2579 = vpop.permute.xlu0 %2578
        %2580 = vrot.lane.b32.xlu0 %v2549, 32
        %v2581 = vpop.permute.xlu0 %2580
        %2582 = vrot.lane.b32.xlu0 %v2550, 32
        %v2583 = vpop.permute.xlu0 %2582
        %2584 = vrot.lane.b32.xlu0 %v2551, 32
        %v2585 = vpop.permute.xlu0 %2584
        %2586 = vrot.lane.b32.xlu0 %v2552, 32
        %v2587 = vpop.permute.xlu0 %2586
        %2588 = vrot.lane.b32.xlu0 %v2553, 32
        %v2589 = vpop.permute.xlu0 %2588
        %v2592 = vsel %vm1252, %v2320, %v2429
        %v2595 = vsel %vm1252, %v2321, %v2431
        %v2598 = vsel %vm1252, %v2322, %v2433
        %v2601 = vsel %vm1252, %v2323, %v2435
        %v2604 = vsel %vm1252, %v2324, %v2437
        %v2607 = vsel %vm1252, %v2325, %v2439
        %v2610 = vsel %vm1252, %v2326, %v2441
        %v2613 = vsel %vm1252, %v2327, %v2443
        %v2616 = vsel %vm1252, %v2328, %v2445
        %v2619 = vsel %vm1252, %v2329, %v2447
        %v2622 = vsel %vm1252, %v2330, %v2449
        %v2625 = vsel %vm1252, %v2331, %v2451
        %v2628 = vsel %vm1252, %v2332, %v2453
        %v2631 = vsel %vm1252, %v2333, %v2455
        %v2634 = vsel %vm1252, %v2334, %v2457
        %v2637 = vsel %vm1252, %v2335, %v2459
        %v2640 = vsel %vm1252, %v2336, %v2461
        %v2643 = vsel %vm1252, %v2337, %v2463
        %v2645 = vsel %vm1313, %v2592, %v2555
        %v2647 = vsel %vm1313, %v2595, %v2557
        %v2649 = vsel %vm1313, %v2598, %v2559
        %v2651 = vsel %vm1313, %v2601, %v2561
        %v2653 = vsel %vm1313, %v2604, %v2563
        %v2655 = vsel %vm1313, %v2607, %v2565
        %v2657 = vsel %vm1313, %v2610, %v2567
        %v2659 = vsel %vm1313, %v2613, %v2569
        %v2661 = vsel %vm1313, %v2616, %v2571
        %v2663 = vsel %vm1313, %v2619, %v2573
        %v2665 = vsel %vm1313, %v2622, %v2575
        %v2667 = vsel %vm1313, %v2625, %v2577
        %v2669 = vsel %vm1313, %v2628, %v2579
        %v2671 = vsel %vm1313, %v2631, %v2581
        %v2673 = vsel %vm1313, %v2634, %v2583
        %v2675 = vsel %vm1313, %v2637, %v2585
        %v2677 = vsel %vm1313, %v2640, %v2587
        %v2679 = vsel %vm1313, %v2643, %v2589
        %v2680 = vld [vmem:[%s6] sm:$0xf]
        %v2681 = vld [vmem:[%s6 + $0x4] sm:$0xf]
        %v2682 = vld [vmem:[%s6 + $0x8] sm:$0xf]
        %v2683 = vld [vmem:[%s6 + $0xc] sm:$0xf]
        %v2684 = vld [vmem:[%s6 + $0x10] sm:$0xf]
        %v2685 = vld [vmem:[%s6 + $0x14] sm:$0xf]
        %s2686 = scalar_lea.vmem %s6, 24
        %v2687 = vld [vmem:[%s2686] sm:$0xf]
        %v2688 = vld [vmem:[%s2686 + $0x4] sm:$0xf]
        %v2689 = vld [vmem:[%s2686 + $0x8] sm:$0xf]
        %v2690 = vld [vmem:[%s2686 + $0xc] sm:$0xf]
        %v2691 = vld [vmem:[%s2686 + $0x10] sm:$0xf]
        %v2692 = vld [vmem:[%s2686 + $0x14] sm:$0xf]
        %v2699 = vunpack.c.l.b16 %v2687
        %v2700 = vunpack.c.l.b16 %v2688
        %v2701 = vunpack.c.l.b16 %v2689
        %v2702 = vunpack.c.l.b16 %v2690
        %v2703 = vunpack.c.l.b16 %v2691
        %v2704 = vunpack.c.l.b16 %v2692
        %v2705 = vpack.c.b16 %v2700, %v2699
        %v2706 = vpack.c.b16 %v2702, %v2701
        %v2707 = vpack.c.b16 %v2704, %v2703
        %v2711 = vsel %vm1385, %v2647, 0
        %v2713 = vsel %vm1385, %v2649, 0
        %v2715 = vsel %vm1385, %v2651, 0
        %v2717 = vsel %vm1385, %v2653, 0
        %v2719 = vsel %vm1385, %v2655, 0
        %v2721 = vsel %vm1385, %v2657, 0
        %v2723 = vsel %vm1385, %v2659, 0
        %v2725 = vsel %vm1385, %v2661, 0
        %v2727 = vsel %vm1385, %v2663, 0
        %v2729 = vsel %vm1385, %v2665, 0
        %v2731 = vsel %vm1385, %v2667, 0
        %v2733 = vsel %vm1385, %v2669, 0
        %v2735 = vsel %vm1385, %v2671, 0
        %v2737 = vsel %vm1385, %v2673, 0
        %v2739 = vsel %vm1385, %v2675, 0
        %v2741 = vsel %vm1385, %v2677, 0
        %2743 = vmatpush.bf16.msra.mxu0 0
        %2744 = vmatpush.bf16.msra.mxu0 0
        %2745 = vmatpush.bf16.msra.mxu0 0
        %2746 = vmatpush.bf16.msra.mxu0 0
        %2747 = vmatpush.bf16.msra.mxu0 0
        %2748 = vmatpush.bf16.msra.mxu0 %v2707
        %2749 = vmatpush.bf16.msra.mxu0 %v2706
        %2750 = vmatpush.bf16.msra.mxu0 %v2705
        %2751 = vmatmul.bf16.gmra.mxu0 %v2711
        %v2752 = vpop.f32.mrf.mxu0
        %v2753 = vadd.f32 0.0, %v2752
        %v2754 = vpop.f32.mrf.mxu0
        %v2755 = vadd.f32 0.0, %v2754
        %2756 = vmatmul.bf16.gmra.mxu0 %v2713
        %v2757 = vpop.f32.mrf.mxu0
        %v2758 = vadd.f32 0.0, %v2757
        %v2759 = vpop.f32.mrf.mxu0
        %v2760 = vadd.f32 0.0, %v2759
        %2761 = vmatmul.bf16.gmra.mxu0 %v2715
        %v2762 = vpop.f32.mrf.mxu0
        %v2763 = vadd.f32 0.0, %v2762
        %v2764 = vpop.f32.mrf.mxu0
        %v2765 = vadd.f32 0.0, %v2764
        %2766 = vmatmul.bf16.gmra.mxu0 %v2717
        %v2767 = vpop.f32.mrf.mxu0
        %v2768 = vadd.f32 0.0, %v2767
        %v2769 = vpop.f32.mrf.mxu0
        %v2770 = vadd.f32 0.0, %v2769
        %2771 = vmatmul.bf16.gmra.mxu0 %v2719
        %v2772 = vpop.f32.mrf.mxu0
        %v2773 = vadd.f32 0.0, %v2772
        %v2774 = vpop.f32.mrf.mxu0
        %v2775 = vadd.f32 0.0, %v2774
        %2776 = vmatmul.bf16.gmra.mxu0 %v2721
        %v2777 = vpop.f32.mrf.mxu0
        %v2778 = vadd.f32 0.0, %v2777
        %v2779 = vpop.f32.mrf.mxu0
        %v2780 = vadd.f32 0.0, %v2779
        %2781 = vmatmul.bf16.gmra.mxu0 %v2723
        %v2782 = vpop.f32.mrf.mxu0
        %v2783 = vadd.f32 0.0, %v2782
        %v2784 = vpop.f32.mrf.mxu0
        %v2785 = vadd.f32 0.0, %v2784
        %2786 = vmatmul.bf16.gmra.mxu0 %v2725
        %v2787 = vpop.f32.mrf.mxu0
        %v2788 = vadd.f32 0.0, %v2787
        %v2789 = vpop.f32.mrf.mxu0
        %v2790 = vadd.f32 0.0, %v2789
        %2791 = vmatmul.bf16.gmra.mxu0 %v2727
        %v2792 = vpop.f32.mrf.mxu0
        %v2793 = vadd.f32 0.0, %v2792
        %v2794 = vpop.f32.mrf.mxu0
        %v2795 = vadd.f32 0.0, %v2794
        %2796 = vmatmul.bf16.gmra.mxu0 %v2729
        %v2797 = vpop.f32.mrf.mxu0
        %v2798 = vadd.f32 0.0, %v2797
        %v2799 = vpop.f32.mrf.mxu0
        %v2800 = vadd.f32 0.0, %v2799
        %2801 = vmatmul.bf16.gmra.mxu0 %v2731
        %v2802 = vpop.f32.mrf.mxu0
        %v2803 = vadd.f32 0.0, %v2802
        %v2804 = vpop.f32.mrf.mxu0
        %v2805 = vadd.f32 0.0, %v2804
        %2806 = vmatmul.bf16.gmra.mxu0 %v2733
        %v2807 = vpop.f32.mrf.mxu0
        %v2808 = vadd.f32 0.0, %v2807
        %v2809 = vpop.f32.mrf.mxu0
        %v2810 = vadd.f32 0.0, %v2809
        %2811 = vmatmul.bf16.gmra.mxu0 %v2735
        %v2812 = vpop.f32.mrf.mxu0
        %v2813 = vadd.f32 0.0, %v2812
        %v2814 = vpop.f32.mrf.mxu0
        %v2815 = vadd.f32 0.0, %v2814
        %2816 = vmatmul.bf16.gmra.mxu0 %v2737
        %v2817 = vpop.f32.mrf.mxu0
        %v2818 = vadd.f32 0.0, %v2817
        %v2819 = vpop.f32.mrf.mxu0
        %v2820 = vadd.f32 0.0, %v2819
        %2821 = vmatmul.bf16.gmra.mxu0 %v2739
        %v2822 = vpop.f32.mrf.mxu0
        %v2823 = vadd.f32 0.0, %v2822
        %v2824 = vpop.f32.mrf.mxu0
        %v2825 = vadd.f32 0.0, %v2824
        %2826 = vmatmul.bf16.gmra.mxu0 %v2741
        %v2827 = vpop.f32.mrf.mxu0
        %v2828 = vadd.f32 0.0, %v2827
        %v2829 = vpop.f32.mrf.mxu0
        %v2830 = vadd.f32 0.0, %v2829
        %2831 = vdwg.mxu0
        %v2838 = vunpack.c.l.b16 %v2680
        %v2839 = vunpack.c.l.b16 %v2681
        %v2840 = vunpack.c.l.b16 %v2682
        %v2841 = vunpack.c.l.b16 %v2683
        %v2842 = vunpack.c.l.b16 %v2684
        %v2843 = vunpack.c.l.b16 %v2685
        %v2844 = vpack.c.b16 %v2839, %v2838
        %v2845 = vpack.c.b16 %v2841, %v2840
        %v2846 = vpack.c.b16 %v2843, %v2842
        %v2850 = vsel %vm1385, %v2645, 0
        %2852 = vmatpush.bf16.msra.mxu0 0
        %2853 = vmatpush.bf16.msra.mxu0 0
        %2854 = vmatpush.bf16.msra.mxu0 0
        %2855 = vmatpush.bf16.msra.mxu0 0
        %2856 = vmatpush.bf16.msra.mxu0 0
        %2857 = vmatpush.bf16.msra.mxu0 %v2846
        %2858 = vmatpush.bf16.msra.mxu0 %v2845
        %2859 = vmatpush.bf16.msra.mxu0 %v2844
        %2860 = vmatmul.bf16.gmra.mxu0 %v2850
        %v2861 = vpop.f32.mrf.mxu0
        %v2862 = vadd.f32 %v2753, %v2861
        %v2863 = vpop.f32.mrf.mxu0
        %v2864 = vadd.f32 %v2755, %v2863
        %2865 = vmatmul.bf16.gmra.mxu0 %v2711
        %v2866 = vpop.f32.mrf.mxu0
        %v2867 = vadd.f32 %v2758, %v2866
        %v2868 = vpop.f32.mrf.mxu0
        %v2869 = vadd.f32 %v2760, %v2868
        %2870 = vmatmul.bf16.gmra.mxu0 %v2713
        %v2871 = vpop.f32.mrf.mxu0
        %v2872 = vadd.f32 %v2763, %v2871
        %v2873 = vpop.f32.mrf.mxu0
        %v2874 = vadd.f32 %v2765, %v2873
        %2875 = vmatmul.bf16.gmra.mxu0 %v2715
        %v2876 = vpop.f32.mrf.mxu0
        %v2877 = vadd.f32 %v2768, %v2876
        %v2878 = vpop.f32.mrf.mxu0
        %v2879 = vadd.f32 %v2770, %v2878
        %2880 = vmatmul.bf16.gmra.mxu0 %v2717
        %v2881 = vpop.f32.mrf.mxu0
        %v2882 = vadd.f32 %v2773, %v2881
        %v2883 = vpop.f32.mrf.mxu0
        %v2884 = vadd.f32 %v2775, %v2883
        %2885 = vmatmul.bf16.gmra.mxu0 %v2719
        %v2886 = vpop.f32.mrf.mxu0
        %v2887 = vadd.f32 %v2778, %v2886
        %v2888 = vpop.f32.mrf.mxu0
        %v2889 = vadd.f32 %v2780, %v2888
        %2890 = vmatmul.bf16.gmra.mxu0 %v2721
        %v2891 = vpop.f32.mrf.mxu0
        %v2892 = vadd.f32 %v2783, %v2891
        %v2893 = vpop.f32.mrf.mxu0
        %v2894 = vadd.f32 %v2785, %v2893
        %2895 = vmatmul.bf16.gmra.mxu0 %v2723
        %v2896 = vpop.f32.mrf.mxu0
        %v2897 = vadd.f32 %v2788, %v2896
        %v2898 = vpop.f32.mrf.mxu0
        %v2899 = vadd.f32 %v2790, %v2898
        %2900 = vmatmul.bf16.gmra.mxu0 %v2725
        %v2901 = vpop.f32.mrf.mxu0
        %v2902 = vadd.f32 %v2793, %v2901
        %v2903 = vpop.f32.mrf.mxu0
        %v2904 = vadd.f32 %v2795, %v2903
        %2905 = vmatmul.bf16.gmra.mxu0 %v2727
        %v2906 = vpop.f32.mrf.mxu0
        %v2907 = vadd.f32 %v2798, %v2906
        %v2908 = vpop.f32.mrf.mxu0
        %v2909 = vadd.f32 %v2800, %v2908
        %2910 = vmatmul.bf16.gmra.mxu0 %v2729
        %v2911 = vpop.f32.mrf.mxu0
        %v2912 = vadd.f32 %v2803, %v2911
        %v2913 = vpop.f32.mrf.mxu0
        %v2914 = vadd.f32 %v2805, %v2913
        %2915 = vmatmul.bf16.gmra.mxu0 %v2731
        %v2916 = vpop.f32.mrf.mxu0
        %v2917 = vadd.f32 %v2808, %v2916
        %v2918 = vpop.f32.mrf.mxu0
        %v2919 = vadd.f32 %v2810, %v2918
        %2920 = vmatmul.bf16.gmra.mxu0 %v2733
        %v2921 = vpop.f32.mrf.mxu0
        %v2922 = vadd.f32 %v2813, %v2921
        %v2923 = vpop.f32.mrf.mxu0
        %v2924 = vadd.f32 %v2815, %v2923
        %2925 = vmatmul.bf16.gmra.mxu0 %v2735
        %v2926 = vpop.f32.mrf.mxu0
        %v2927 = vadd.f32 %v2818, %v2926
        %v2928 = vpop.f32.mrf.mxu0
        %v2929 = vadd.f32 %v2820, %v2928
        %2930 = vmatmul.bf16.gmra.mxu0 %v2737
        %v2931 = vpop.f32.mrf.mxu0
        %v2932 = vadd.f32 %v2823, %v2931
        %v2933 = vpop.f32.mrf.mxu0
        %v2934 = vadd.f32 %v2825, %v2933
        %2935 = vmatmul.bf16.gmra.mxu0 %v2739
        %v2936 = vpop.f32.mrf.mxu0
        %v2937 = vadd.f32 %v2828, %v2936
        %v2938 = vpop.f32.mrf.mxu0
        %v2939 = vadd.f32 %v2830, %v2938
        %2940 = vdwg.mxu0
        %s2941 = scalar_lea.vmem %s6, 48
        %v2942 = vld [vmem:[%s2941] sm:$0xf]
        %v2943 = vld [vmem:[%s2941 + $0x4] sm:$0xf]
        %v2944 = vld [vmem:[%s2941 + $0x8] sm:$0xf]
        %v2945 = vld [vmem:[%s2941 + $0xc] sm:$0xf]
        %v2946 = vld [vmem:[%s2941 + $0x10] sm:$0xf]
        %v2947 = vld [vmem:[%s2941 + $0x14] sm:$0xf]
        %v2954 = vunpack.c.l.b16 %v2942
        %v2955 = vunpack.c.l.b16 %v2943
        %v2956 = vunpack.c.l.b16 %v2944
        %v2957 = vunpack.c.l.b16 %v2945
        %v2958 = vunpack.c.l.b16 %v2946
        %v2959 = vunpack.c.l.b16 %v2947
        %v2960 = vpack.c.b16 %v2955, %v2954
        %v2961 = vpack.c.b16 %v2957, %v2956
        %v2962 = vpack.c.b16 %v2959, %v2958
        %v2966 = vsel %vm1385, %v2679, 0
        %2968 = vmatpush.bf16.msra.mxu0 0
        %2969 = vmatpush.bf16.msra.mxu0 0
        %2970 = vmatpush.bf16.msra.mxu0 0
        %2971 = vmatpush.bf16.msra.mxu0 0
        %2972 = vmatpush.bf16.msra.mxu0 0
        %2973 = vmatpush.bf16.msra.mxu0 %v2962
        %2974 = vmatpush.bf16.msra.mxu0 %v2961
        %2975 = vmatpush.bf16.msra.mxu0 %v2960
        %2976 = vmatmul.bf16.gmra.mxu0 %v2713
        %v2977 = vpop.f32.mrf.mxu0
        %v2978 = vadd.f32 0.0, %v2977
        %v2979 = vpop.f32.mrf.mxu0
        %v2980 = vadd.f32 0.0, %v2979
        %2981 = vmatmul.bf16.gmra.mxu0 %v2715
        %v2982 = vpop.f32.mrf.mxu0
        %v2983 = vadd.f32 0.0, %v2982
        %v2984 = vpop.f32.mrf.mxu0
        %v2985 = vadd.f32 0.0, %v2984
        %2986 = vmatmul.bf16.gmra.mxu0 %v2717
        %v2987 = vpop.f32.mrf.mxu0
        %v2988 = vadd.f32 0.0, %v2987
        %v2989 = vpop.f32.mrf.mxu0
        %v2990 = vadd.f32 0.0, %v2989
        %2991 = vmatmul.bf16.gmra.mxu0 %v2719
        %v2992 = vpop.f32.mrf.mxu0
        %v2993 = vadd.f32 0.0, %v2992
        %v2994 = vpop.f32.mrf.mxu0
        %v2995 = vadd.f32 0.0, %v2994
        %2996 = vmatmul.bf16.gmra.mxu0 %v2721
        %v2997 = vpop.f32.mrf.mxu0
        %v2998 = vadd.f32 0.0, %v2997
        %v2999 = vpop.f32.mrf.mxu0
        %v3000 = vadd.f32 0.0, %v2999
        %3001 = vmatmul.bf16.gmra.mxu0 %v2723
        %v3002 = vpop.f32.mrf.mxu0
        %v3003 = vadd.f32 0.0, %v3002
        %v3004 = vpop.f32.mrf.mxu0
        %v3005 = vadd.f32 0.0, %v3004
        %3006 = vmatmul.bf16.gmra.mxu0 %v2725
        %v3007 = vpop.f32.mrf.mxu0
        %v3008 = vadd.f32 0.0, %v3007
        %v3009 = vpop.f32.mrf.mxu0
        %v3010 = vadd.f32 0.0, %v3009
        %3011 = vmatmul.bf16.gmra.mxu0 %v2727
        %v3012 = vpop.f32.mrf.mxu0
        %v3013 = vadd.f32 0.0, %v3012
        %v3014 = vpop.f32.mrf.mxu0
        %v3015 = vadd.f32 0.0, %v3014
        %3016 = vmatmul.bf16.gmra.mxu0 %v2729
        %v3017 = vpop.f32.mrf.mxu0
        %v3018 = vadd.f32 0.0, %v3017
        %v3019 = vpop.f32.mrf.mxu0
        %v3020 = vadd.f32 0.0, %v3019
        %3021 = vmatmul.bf16.gmra.mxu0 %v2731
        %v3022 = vpop.f32.mrf.mxu0
        %v3023 = vadd.f32 0.0, %v3022
        %v3024 = vpop.f32.mrf.mxu0
        %v3025 = vadd.f32 0.0, %v3024
        %3026 = vmatmul.bf16.gmra.mxu0 %v2733
        %v3027 = vpop.f32.mrf.mxu0
        %v3028 = vadd.f32 0.0, %v3027
        %v3029 = vpop.f32.mrf.mxu0
        %v3030 = vadd.f32 0.0, %v3029
        %3031 = vmatmul.bf16.gmra.mxu0 %v2735
        %v3032 = vpop.f32.mrf.mxu0
        %v3033 = vadd.f32 0.0, %v3032
        %v3034 = vpop.f32.mrf.mxu0
        %v3035 = vadd.f32 0.0, %v3034
        %3036 = vmatmul.bf16.gmra.mxu0 %v2737
        %v3037 = vpop.f32.mrf.mxu0
        %v3038 = vadd.f32 0.0, %v3037
        %v3039 = vpop.f32.mrf.mxu0
        %v3040 = vadd.f32 0.0, %v3039
        %3041 = vmatmul.bf16.gmra.mxu0 %v2739
        %v3042 = vpop.f32.mrf.mxu0
        %v3043 = vadd.f32 0.0, %v3042
        %v3044 = vpop.f32.mrf.mxu0
        %v3045 = vadd.f32 0.0, %v3044
        %3046 = vmatmul.bf16.gmra.mxu0 %v2741
        %v3047 = vpop.f32.mrf.mxu0
        %v3048 = vadd.f32 0.0, %v3047
        %v3049 = vpop.f32.mrf.mxu0
        %v3050 = vadd.f32 0.0, %v3049
        %3051 = vmatmul.bf16.gmra.mxu0 %v2966
        %v3052 = vpop.f32.mrf.mxu0
        %v3053 = vadd.f32 0.0, %v3052
        %v3054 = vpop.f32.mrf.mxu0
        %v3055 = vadd.f32 0.0, %v3054
        %3056 = vdwg.mxu0
        %v3057 = vadd.f32 %v2862, %v2978
        %v3058 = vadd.f32 %v2864, %v2980
        %v3059 = vadd.f32 %v2867, %v2983
        %v3060 = vadd.f32 %v2869, %v2985
        %v3061 = vadd.f32 %v2872, %v2988
        %v3062 = vadd.f32 %v2874, %v2990
        %v3063 = vadd.f32 %v2877, %v2993
        %v3064 = vadd.f32 %v2879, %v2995
        %v3065 = vadd.f32 %v2882, %v2998
        %v3066 = vadd.f32 %v2884, %v3000
        %v3067 = vadd.f32 %v2887, %v3003
        %v3068 = vadd.f32 %v2889, %v3005
        %v3069 = vadd.f32 %v2892, %v3008
        %v3070 = vadd.f32 %v2894, %v3010
        %v3071 = vadd.f32 %v2897, %v3013
        %v3072 = vadd.f32 %v2899, %v3015
        %v3073 = vadd.f32 %v2902, %v3018
        %v3074 = vadd.f32 %v2904, %v3020
        %v3075 = vadd.f32 %v2907, %v3023
        %v3076 = vadd.f32 %v2909, %v3025
        %v3077 = vadd.f32 %v2912, %v3028
        %v3078 = vadd.f32 %v2914, %v3030
        %v3079 = vadd.f32 %v2917, %v3033
        %v3080 = vadd.f32 %v2919, %v3035
        %v3081 = vadd.f32 %v2922, %v3038
        %v3082 = vadd.f32 %v2924, %v3040
        %v3083 = vadd.f32 %v2927, %v3043
        %v3084 = vadd.f32 %v2929, %v3045
        %v3085 = vadd.f32 %v2932, %v3048
        %v3086 = vadd.f32 %v2934, %v3050
        %v3087 = vadd.f32 %v2937, %v3053
        %v3088 = vadd.f32 %v2939, %v3055
        %v3089 = vld [vmem:[%s7] sm:$0x1]
        %v3091 = vperm.slane %v3089, 0
        %v3093 = vadd.f32 %v3057, %v3091
        %v3094 = vadd.f32 %v3058, %v3091
        %v3095 = vadd.f32 %v3059, %v3091
        %v3096 = vadd.f32 %v3060, %v3091
        %v3097 = vadd.f32 %v3061, %v3091
        %v3098 = vadd.f32 %v3062, %v3091
        %v3099 = vadd.f32 %v3063, %v3091
        %v3100 = vadd.f32 %v3064, %v3091
        %v3101 = vadd.f32 %v3065, %v3091
        %v3102 = vadd.f32 %v3066, %v3091
        %v3103 = vadd.f32 %v3067, %v3091
        %v3104 = vadd.f32 %v3068, %v3091
        %v3105 = vadd.f32 %v3069, %v3091
        %v3106 = vadd.f32 %v3070, %v3091
        %v3107 = vadd.f32 %v3071, %v3091
        %v3108 = vadd.f32 %v3072, %v3091
        %v3109 = vadd.f32 %v3073, %v3091
        %v3110 = vadd.f32 %v3074, %v3091
        %v3111 = vadd.f32 %v3075, %v3091
        %v3112 = vadd.f32 %v3076, %v3091
        %v3113 = vadd.f32 %v3077, %v3091
        %v3114 = vadd.f32 %v3078, %v3091
        %v3115 = vadd.f32 %v3079, %v3091
        %v3116 = vadd.f32 %v3080, %v3091
        %v3117 = vadd.f32 %v3081, %v3091
        %v3118 = vadd.f32 %v3082, %v3091
        %v3119 = vadd.f32 %v3083, %v3091
        %v3120 = vadd.f32 %v3084, %v3091
        %v3121 = vadd.f32 %v3085, %v3091
        %v3122 = vadd.f32 %v3086, %v3091
        %v3123 = vadd.f32 %v3087, %v3091
        %v3124 = vadd.f32 %v3088, %v3091
        %v3125 = vadd.f32 %v462, %v3093
        %v3126 = vadd.f32 %v463, %v3094
        %v3127 = vadd.f32 %v464, %v3095
        %v3128 = vadd.f32 %v465, %v3096
        %v3129 = vadd.f32 %v466, %v3097
        %v3130 = vadd.f32 %v467, %v3098
        %v3131 = vadd.f32 %v468, %v3099
        %v3132 = vadd.f32 %v469, %v3100
        %v3133 = vadd.f32 %v470, %v3101
        %v3134 = vadd.f32 %v471, %v3102
        %v3135 = vadd.f32 %v472, %v3103
        %v3136 = vadd.f32 %v473, %v3104
        %v3137 = vadd.f32 %v474, %v3105
        %v3138 = vadd.f32 %v475, %v3106
        %v3139 = vadd.f32 %v476, %v3107
        %v3140 = vadd.f32 %v477, %v3108
        %v3141 = vadd.f32 %v478, %v3109
        %v3142 = vadd.f32 %v479, %v3110
        %v3143 = vadd.f32 %v480, %v3111
        %v3144 = vadd.f32 %v481, %v3112
        %v3145 = vadd.f32 %v482, %v3113
        %v3146 = vadd.f32 %v483, %v3114
        %v3147 = vadd.f32 %v484, %v3115
        %v3148 = vadd.f32 %v485, %v3116
        %v3149 = vadd.f32 %v486, %v3117
        %v3150 = vadd.f32 %v487, %v3118
        %v3151 = vadd.f32 %v488, %v3119
        %v3152 = vadd.f32 %v489, %v3120
        %v3153 = vadd.f32 %v490, %v3121
        %v3154 = vadd.f32 %v491, %v3122
        %v3155 = vadd.f32 %v492, %v3123
        %v3156 = vadd.f32 %v493, %v3124
        %v3157 = vmax.f32 %v3125, 0.0
        %v3158 = vmax.f32 %v3126, 0.0
        %v3159 = vmax.f32 %v3127, 0.0
        %v3160 = vmax.f32 %v3128, 0.0
        %v3161 = vmax.f32 %v3129, 0.0
        %v3162 = vmax.f32 %v3130, 0.0
        %v3163 = vmax.f32 %v3131, 0.0
        %v3164 = vmax.f32 %v3132, 0.0
        %v3165 = vmax.f32 %v3133, 0.0
        %v3166 = vmax.f32 %v3134, 0.0
        %v3167 = vmax.f32 %v3135, 0.0
        %v3168 = vmax.f32 %v3136, 0.0
        %v3169 = vmax.f32 %v3137, 0.0
        %v3170 = vmax.f32 %v3138, 0.0
        %v3171 = vmax.f32 %v3139, 0.0
        %v3172 = vmax.f32 %v3140, 0.0
        %v3173 = vmax.f32 %v3141, 0.0
        %v3174 = vmax.f32 %v3142, 0.0
        %v3175 = vmax.f32 %v3143, 0.0
        %v3176 = vmax.f32 %v3144, 0.0
        %v3177 = vmax.f32 %v3145, 0.0
        %v3178 = vmax.f32 %v3146, 0.0
        %v3179 = vmax.f32 %v3147, 0.0
        %v3180 = vmax.f32 %v3148, 0.0
        %v3181 = vmax.f32 %v3149, 0.0
        %v3182 = vmax.f32 %v3150, 0.0
        %v3183 = vmax.f32 %v3151, 0.0
        %v3184 = vmax.f32 %v3152, 0.0
        %v3185 = vmax.f32 %v3153, 0.0
        %v3186 = vmax.f32 %v3154, 0.0
        %v3187 = vmax.f32 %v3155, 0.0
        %v3188 = vmax.f32 %v3156, 0.0
        %3189 = vst.msk [vmem:[%s381] sm:$0xff] %vm1252, %v3157
        %3190 = vst.msk [vmem:[%s381 + $0x8] sm:$0xff] %vm1252, %v3158
        %3191 = vst.msk [vmem:[%s381 + $0x10] sm:$0xff] %vm1252, %v3159
        %3192 = vst.msk [vmem:[%s381 + $0x18] sm:$0xff] %vm1252, %v3160
        %3193 = vst.msk [vmem:[%s381 + $0x20] sm:$0xff] %vm1252, %v3161
        %3194 = vst.msk [vmem:[%s381 + $0x28] sm:$0xff] %vm1252, %v3162
        %3195 = vst.msk [vmem:[%s381 + $0x30] sm:$0xff] %vm1252, %v3163
        %3196 = vst.msk [vmem:[%s381 + $0x38] sm:$0xff] %vm1252, %v3164
        %3197 = vst.msk [vmem:[%s381 + $0x40] sm:$0xff] %vm1252, %v3165
        %3198 = vst.msk [vmem:[%s381 + $0x48] sm:$0xff] %vm1252, %v3166
        %3199 = vst.msk [vmem:[%s381 + $0x50] sm:$0xff] %vm1252, %v3167
        %3200 = vst.msk [vmem:[%s381 + $0x58] sm:$0xff] %vm1252, %v3168
        %3201 = vst.msk [vmem:[%s381 + $0x60] sm:$0xff] %vm1252, %v3169
        %3202 = vst.msk [vmem:[%s381 + $0x68] sm:$0xff] %vm1252, %v3170
        %3203 = vst.msk [vmem:[%s381 + $0x70] sm:$0xff] %vm1252, %v3171
        %3204 = vst.msk [vmem:[%s381 + $0x78] sm:$0xff] %vm1252, %v3172
        %3205 = vst.msk [vmem:[%s381 + $0x80] sm:$0xff] %vm1252, %v3173
        %3206 = vst.msk [vmem:[%s381 + $0x88] sm:$0xff] %vm1252, %v3174
        %3207 = vst.msk [vmem:[%s381 + $0x90] sm:$0xff] %vm1252, %v3175
        %3208 = vst.msk [vmem:[%s381 + $0x98] sm:$0xff] %vm1252, %v3176
        %3209 = vst.msk [vmem:[%s381 + $0xa0] sm:$0xff] %vm1252, %v3177
        %3210 = vst.msk [vmem:[%s381 + $0xa8] sm:$0xff] %vm1252, %v3178
        %3211 = vst.msk [vmem:[%s381 + $0xb0] sm:$0xff] %vm1252, %v3179
        %3212 = vst.msk [vmem:[%s381 + $0xb8] sm:$0xff] %vm1252, %v3180
        %3213 = vst.msk [vmem:[%s381 + $0xc0] sm:$0xff] %vm1252, %v3181
        %3214 = vst.msk [vmem:[%s381 + $0xc8] sm:$0xff] %vm1252, %v3182
        %3215 = vst.msk [vmem:[%s381 + $0xd0] sm:$0xff] %vm1252, %v3183
        %3216 = vst.msk [vmem:[%s381 + $0xd8] sm:$0xff] %vm1252, %v3184
        %3217 = vst.msk [vmem:[%s381 + $0xe0] sm:$0xff] %vm1252, %v3185
        %3218 = vst.msk [vmem:[%s381 + $0xe8] sm:$0xff] %vm1252, %v3186
        %3219 = vst.msk [vmem:[%s381 + $0xf0] sm:$0xff] %vm1252, %v3187
        %3220 = vst.msk [vmem:[%s381 + $0xf8] sm:$0xff] %vm1252, %v3188
        %s3221 = sand.u32 %s233, 1
        %s3222 = scalar_lea.sflag [#allocation3], %s3221
        %s3223 = sand.u32 %s233, 1
        %s3224 = smul.addr %s3223, 256
        %s3225 = scalar_lea.vmem [#allocation2], %s3224
        // Predicated region
        $region53: #{erb_forward_nhwc.3} parent=51 // pred_check
          %p3226 = pneg %p243
        $region54: #{erb_forward_nhwc.3} parent=51 // pred_check_branch
          %3228 = sbr.rel (%p3226) target = $region56
        $region55: #{erb_forward_nhwc.3} parent=51 // pred_region
          %s3229 = smul.u32 16, %s27
          %3231 = vsyncadd %s3222, 0
          %s3232 = smul.addr %s3229, 2
          %s3233 = smul.addr %s26, 32
          %s3234 = sadd.s32 %s3232, %s3233
          %s3235 = smul.addr %s3234, 8
          %s3236 = scalar_lea.hbm %s8, %s3235
          %s3237 = sshll.u32 %s3225, 4
          %s3238 = int_to_ptr.vmem [resolvable:$true] %s3237
          %s3239 = sshll.u32 %s3236, 4
          %s3240 = int_to_ptr.hbm [resolvable:$true] %s3239
          %3245 = dma.vmem_to_hbm [thread:$0]  %s3238, 4096, %s3240, %s3222, 128, 128, 8
        $region56: #{erb_forward_nhwc.3} parent=51 // pred_fallthru
          _
      $region52: #{erb_forward_nhwc.3} parent=5 // pred_fallthru
        _
      %p3246 = scmp.le.s32.totalorder 2, %s17
      // Predicated region
      $region57: #{erb_forward_nhwc.3} parent=5 // pred_check
        %p3247 = pneg %p3246
      $region58: #{erb_forward_nhwc.3} parent=5 // pred_check_branch
        %3249 = sbr.rel (%p3247) target = $region60
      $region59: #{erb_forward_nhwc.3} parent=5 // pred_region
        %s3250 = ssub.s32 %s17, 2
        // Predicated region
        $region61: #{erb_forward_nhwc.3} parent=59 // pred_check
          %p3251 = pneg %p249
        $region62: #{erb_forward_nhwc.3} parent=59 // pred_check_branch
          %3253 = sbr.rel (%p3251) target = $region64
        $region63: #{erb_forward_nhwc.3} parent=59 // pred_region
          %s3254 = sand.u32 %s234, 1
          %s3255 = scalar_lea.sflag [#allocation3], %s3254
          %s3256 = sand.u32 %s234, 1
          %s3257 = smul.addr %s3256, 256
          %s3258 = scalar_lea.vmem [#allocation2], %s3257
          %3260 = dma.done %s3255, 4096
        $region64: #{erb_forward_nhwc.3} parent=59 // pred_fallthru
          _
      $region60: #{erb_forward_nhwc.3} parent=5 // pred_fallthru
        _
    $region6: #{erb_forward_nhwc.3} parent=1 // loop_footer
      %s21 = sadd.s32 1, %s17
    $region7: #{erb_forward_nhwc.3} parent=1 // loop_footer_branch
      %16 = sbr.rel target = $region3
    $region8: #{erb_forward_nhwc.3} parent=1 // loop_exit
      _
    %3261 = vsyncpa [#allocation3], 1
    %s3262 = scalar_lea.sflag [#allocation3], 1
    %3263 = vsyncpa %s3262, 1

</llo_original>
